<compile_context>
chip_gen: v6e
topology: v6e:2x2x1
jax: 0.10.0
libtpu: 0.0.40
codegen_flags: <defaults>
</compile_context>

<pallas_src>
import functools

import jax
import jax.numpy as jnp
import numpy as np
from jax.experimental import pallas as pl
from jax.experimental.pallas import tpu as pltpu

NEG_SLOPE = 0.01  # F.leaky_relu default

# ---- packed-layout constants (all slice starts are 128-lane aligned) ----
HID = 36                  # GRU hidden / feature size
CONV1_COLS = 176          # 44 positions x 4 channels
GA_COLS = 20              # goal(10) + prev-action(10) embeddings
CONV1_OFF = 128           # conv1 block offset inside layer-A output
LAYER_A_COLS = 304        # [g|a](20) | zero pad | conv1(176) @ col 128
GATE_STRIDE = 128         # r/z/n gate blocks at columns 0 / 128 / 256
GRU_COLS = 3 * GATE_STRIDE
HEAD1_OFF = 512           # layer_4 block offset inside stacked (36, 912)
HEAD1_COLS = 912
HEADA_OFF = 384           # layer_5_a block offset inside stacked (2, 684)
HEADA_COLS = 684


def _lrelu(x):
    return jnp.maximum(x, NEG_SLOPE * x)


# ---------------------------------------------------------------------------
# The single fused kernel
# ---------------------------------------------------------------------------
def _critic_kernel(x_ref, act_ref,
                   wA_ref, bA_ref, m2_ref, b2_ref, m3_ref, b3_ref,
                   wi_ref, bi_ref, wh_ref, bh_ref,
                   w14_ref, b14_ref, w2s_ref, w5s_ref, w25a_ref, b25a_ref,
                   w3_ref, b3q_ref, w6_ref, b6q_ref,
                   q1_ref, q2_ref, *, batch, hist):
    f32 = jnp.float32
    dot = lambda a, b: jnp.dot(a, b, preferred_element_type=f32)

    # ---- conv chain + embeddings: three dense matmuls over all rows ----
    x = x_ref[...]                                        # (H*B, 185), time-major rows
    hA = _lrelu(dot(x, wA_ref[...]) + bA_ref[...])        # (N, 304)
    ga = hA[:, :GA_COLS]                                  # (N, 20) = [goal | act] embeds
    c1 = hA[:, CONV1_OFF:CONV1_OFF + CONV1_COLS]          # (N, 176) conv1 out
    c2 = _lrelu(dot(c1, m2_ref[...]) + b2_ref[...])       # (N, 80)  conv2 out
    c3 = _lrelu(dot(c2, m3_ref[...]) + b3_ref[...])       # (N, 16)  conv3 out, channel-major

    # ---- GRU: hoisted input projection + one fused-gate matmul per step ----
    wi = wi_ref[...]                                      # (36, 384)
    xp = dot(c3, wi[:16, :]) + dot(ga, wi[16:HID, :]) + bi_ref[...]   # (N, 384)
    wh = wh_ref[...]
    bh = bh_ref[...]
    h = jnp.zeros((batch, HID), f32)
    for t in range(hist):                                 # small static unroll
        xt = xp[t * batch:(t + 1) * batch, :]             # contiguous (B, 384) row block
        hp = dot(h, wh) + bh                              # (B, 384)
        r = jax.nn.sigmoid(xt[:, 0:HID] + hp[:, 0:HID])
        z = jax.nn.sigmoid(xt[:, GATE_STRIDE:GATE_STRIDE + HID]
                           + hp[:, GATE_STRIDE:GATE_STRIDE + HID])
        n = jnp.tanh(xt[:, 2 * GATE_STRIDE:2 * GATE_STRIDE + HID]
                     + r * hp[:, 2 * GATE_STRIDE:2 * GATE_STRIDE + HID])
        h = (1.0 - z) * n + z * h

    # ---- double-Q heads (layer_1/layer_4 and layer_2_a/layer_5_a stacked;
    #      layer_2_s / layer_5_s biases intentionally unused, as in reference) ----
    act = act_ref[...]
    s12 = _lrelu(dot(h, w14_ref[...]) + b14_ref[...])     # (B, 912)
    ap = dot(act, w25a_ref[...]) + b25a_ref[...]          # (B, 684)
    s1 = _lrelu(dot(s12[:, 0:400], w2s_ref[...]) + ap[:, 0:300])
    s2 = _lrelu(dot(s12[:, HEAD1_OFF:HEAD1_OFF + 400], w5s_ref[...])
                + ap[:, HEADA_OFF:HEADA_OFF + 300])
    q1_ref[...] = dot(s1, w3_ref[...]) + b3q_ref[...]
    q2_ref[...] = dot(s2, w6_ref[...]) + b6q_ref[...]


def critic_forward(packed, s, action):
    B, H, S = s.shape
    # time-major rows so each GRU step reads a contiguous (B, :) row block
    x = jnp.transpose(s, (1, 0, 2)).reshape(H * B, S)
    vmem = pl.BlockSpec(memory_space=pltpu.MemorySpace.VMEM)
    args = (x, action,
            packed['wA'], packed['bA'], packed['m2'], packed['b2t'],
            packed['m3'], packed['b3t'],
            packed['wi'], packed['bi'], packed['wh'], packed['bh'],
            packed['w14'], packed['b14'], packed['w2s'], packed['w5s'],
            packed['w25a'], packed['b25a'],
            packed['w3'], packed['b3'], packed['w6'], packed['b6'])
    q1, q2 = pl.pallas_call(
        functools.partial(_critic_kernel, batch=B, hist=H),
        out_shape=(jax.ShapeDtypeStruct((B, 1), jnp.float32),
                   jax.ShapeDtypeStruct((B, 1), jnp.float32)),
        in_specs=[vmem] * len(args),
        out_specs=(vmem, vmem),
    )(*args)
    return q1, q2


# ---------------------------------------------------------------------------
# Parameter construction
# ---------------------------------------------------------------------------
def init_raw_params(key, action_dim=2):
    """Synthetic parameters in (transposed) PyTorch layouts."""
    keys = jax.random.split(key, 40)
    it = iter(keys)

    def nrm(shape, scale=0.1):
        return scale * jax.random.normal(next(it), shape, jnp.float32)

    r = {}
    r['cw1'] = nrm((4, 1, 8)); r['cb1'] = nrm((4,))    # Conv1d (out, in, k)
    r['cw2'] = nrm((8, 4, 8)); r['cb2'] = nrm((8,))
    r['cw3'] = nrm((4, 8, 4)); r['cb3'] = nrm((4,))
    r['wg'] = nrm((3, 10)); r['bg'] = nrm((1, 10))
    r['wa'] = nrm((2, 10)); r['ba'] = nrm((1, 10))
    for name in ('ir', 'iz', 'in', 'hr', 'hz', 'hn'):  # GRU gate order r, z, n
        r[f'w_{name}'] = nrm((HID, HID))
        r[f'b_{name}'] = nrm((1, HID))
    r['l1_w'] = nrm((HID, 400)); r['l1_b'] = nrm((1, 400))
    r['l2s_w'] = nrm((400, 300))                       # bias unused in forward
    r['l2a_w'] = nrm((action_dim, 300)); r['l2a_b'] = nrm((1, 300))
    r['l3_w'] = nrm((300, 1)); r['l3_b'] = nrm((1, 1))
    r['l4_w'] = nrm((HID, 400)); r['l4_b'] = nrm((1, 400))
    r['l5s_w'] = nrm((400, 300))                       # bias unused in forward
    r['l5a_w'] = nrm((action_dim, 300)); r['l5a_b'] = nrm((1, 300))
    r['l6_w'] = nrm((300, 1)); r['l6_b'] = nrm((1, 1))
    return r


def _conv_as_matmul(w, l_in, stride, out_channel_major=False):
    """Expand Conv1d weight (out_ch, in_ch, k) into a dense (l_in*in_ch,
    l_out*out_ch) matrix acting on position-major / channel-minor flat inputs."""
    oc, ic, k = w.shape
    l_out = (l_in - k) // stride + 1
    M = np.zeros((l_in * ic, l_out * oc), np.float32)
    for j in range(l_out):
        for o in range(oc):
            col = o * l_out + j if out_channel_major else j * oc + o
            for t in range(k):
                for c in range(ic):
                    M[(j * stride + t) * ic + c, col] = w[o, c, t]
    return M


def pack_params(raw):
    f = lambda a: np.asarray(a, np.float32)
    p = {}

    m1 = _conv_as_matmul(f(raw['cw1']), 180, 4)                      # (180, 176)
    m2 = _conv_as_matmul(f(raw['cw2']), 44, 4)                       # (176, 80)
    m3 = _conv_as_matmul(f(raw['cw3']), 10, 2, out_channel_major=True)  # (80, 16)

    # Layer A: x(185) -> [goal_emb(10) | act_emb(10) | pad | conv1(176)]
    wA = np.zeros((185, LAYER_A_COLS), np.float32)
    wA[180:183, 0:10] = f(raw['wg'])
    wA[183:185, 10:20] = f(raw['wa'])
    wA[0:180, CONV1_OFF:CONV1_OFF + CONV1_COLS] = m1
    bA = np.zeros((1, LAYER_A_COLS), np.float32)
    bA[0, 0:10] = f(raw['bg'])[0]
    bA[0, 10:20] = f(raw['ba'])[0]
    bA[0, CONV1_OFF:CONV1_OFF + CONV1_COLS] = np.tile(f(raw['cb1']), 44)
    p['wA'] = jnp.asarray(wA); p['bA'] = jnp.asarray(bA)
    p['m2'] = jnp.asarray(m2)
    p['b2t'] = jnp.asarray(np.tile(f(raw['cb2']), 10)[None, :])
    p['m3'] = jnp.asarray(m3)
    p['b3t'] = jnp.asarray(np.repeat(f(raw['cb3']), 4)[None, :])     # channel-major

    # GRU: fused gates at 128-lane-aligned offsets (r, z, n)
    wi = np.zeros((HID, GRU_COLS), np.float32)
    wh = np.zeros((HID, GRU_COLS), np.float32)
    bi = np.zeros((1, GRU_COLS), np.float32)
    bh = np.zeros((1, GRU_COLS), np.float32)
    for g, name in enumerate(('r', 'z', 'n')):
        off = g * GATE_STRIDE
        wi[:, off:off + HID] = f(raw[f'w_i{name}'])
        wh[:, off:off + HID] = f(raw[f'w_h{name}'])
        bi[0, off:off + HID] = f(raw[f'b_i{name}'])[0]
        bh[0, off:off + HID] = f(raw[f'b_h{name}'])[0]
    p['wi'] = jnp.asarray(wi); p['bi'] = jnp.asarray(bi)
    p['wh'] = jnp.asarray(wh); p['bh'] = jnp.asarray(bh)

    # Q heads: layer_1 / layer_4 stacked; layer_2_a / layer_5_a stacked
    w14 = np.zeros((HID, HEAD1_COLS), np.float32)
    b14 = np.zeros((1, HEAD1_COLS), np.float32)
    w14[:, 0:400] = f(raw['l1_w']); b14[0, 0:400] = f(raw['l1_b'])[0]
    w14[:, HEAD1_OFF:HEAD1_OFF + 400] = f(raw['l4_w'])
    b14[0, HEAD1_OFF:HEAD1_OFF + 400] = f(raw['l4_b'])[0]
    p['w14'] = jnp.asarray(w14); p['b14'] = jnp.asarray(b14)

    a_dim = f(raw['l2a_w']).shape[0]
    w25a = np.zeros((a_dim, HEADA_COLS), np.float32)
    b25a = np.zeros((1, HEADA_COLS), np.float32)
    w25a[:, 0:300] = f(raw['l2a_w']); b25a[0, 0:300] = f(raw['l2a_b'])[0]
    w25a[:, HEADA_OFF:HEADA_OFF + 300] = f(raw['l5a_w'])
    b25a[0, HEADA_OFF:HEADA_OFF + 300] = f(raw['l5a_b'])[0]
    p['w25a'] = jnp.asarray(w25a); p['b25a'] = jnp.asarray(b25a)

    p['w2s'] = jnp.asarray(f(raw['l2s_w']))
    p['w5s'] = jnp.asarray(f(raw['l5s_w']))
    p['w3'] = jnp.asarray(f(raw['l3_w'])); p['b3'] = jnp.asarray(f(raw['l3_b']))
    p['w6'] = jnp.asarray(f(raw['l6_w'])); p['b6'] = jnp.asarray(f(raw['l6_b']))
    return p


# ---------------------------------------------------------------------------
# Pure-JAX reference (mirrors the PyTorch module) for correctness checking
# ---------------------------------------------------------------------------
def reference_forward(raw, s, action):
    B, H, S = s.shape
    x = s.reshape(B * H, S)
    laser = x[:, :S - 5][:, None, :]
    goal = x[:, S - 5:S - 2]
    prev = x[:, S - 2:]

    def conv1d(z, w, b, stride):
        y = jax.lax.conv_general_dilated(
            z, w, window_strides=(stride,), padding='VALID',
            dimension_numbers=('NCH', 'OIH', 'NCH'))
        return _lrelu(y + b[None, :, None])

    l = conv1d(laser, raw['cw1'], raw['cb1'], 4)
    l = conv1d(l, raw['cw2'], raw['cb2'], 4)
    l = conv1d(l, raw['cw3'], raw['cb3'], 2)
    l = l.reshape(B * H, -1)                       # torch flatten(start_dim=1)
    g = _lrelu(goal @ raw['wg'] + raw['bg'])
    a = _lrelu(prev @ raw['wa'] + raw['ba'])
    feats = jnp.concatenate([l, g, a], axis=-1).reshape(B, H, HID)

    h = jnp.zeros((B, HID), jnp.float32)
    for t in range(H):
        xt = feats[:, t, :]
        r = jax.nn.sigmoid(xt @ raw['w_ir'] + raw['b_ir'] + h @ raw['w_hr'] + raw['b_hr'])
        z = jax.nn.sigmoid(xt @ raw['w_iz'] + raw['b_iz'] + h @ raw['w_hz'] + raw['b_hz'])
        n = jnp.tanh(xt @ raw['w_in'] + raw['b_in'] + r * (h @ raw['w_hn'] + raw['b_hn']))
        h = (1.0 - z) * n + z * h

    s1 = _lrelu(h @ raw['l1_w'] + raw['l1_b'])
    s1 = _lrelu(s1 @ raw['l2s_w'] + action @ raw['l2a_w'] + raw['l2a_b'])
    q1 = s1 @ raw['l3_w'] + raw['l3_b']
    s2 = _lrelu(h @ raw['l4_w'] + raw['l4_b'])
    s2 = _lrelu(s2 @ raw['l5s_w'] + action @ raw['l5a_w'] + raw['l5a_b'])
    q2 = s2 @ raw['l6_w'] + raw['l6_b']
    return q1, q2


if __name__ == "__main__":
    key = jax.random.PRNGKey(0)
    kp, ks, ka = jax.random.split(key, 3)

    action_dim = 2
    raw = init_raw_params(kp, action_dim)
    packed = pack_params(raw)

    B, H, STATE = 2, 8, 185            # 180 laser + 3 goal + 2 prev action
    s = jax.random.normal(ks, (B, H, STATE), dtype=jnp.float32)
    action = jax.random.normal(ka, (B, action_dim), dtype=jnp.float32)

    fwd = jax.jit(lambda s_, a_: critic_forward(packed, s_, a_))
    q1, q2 = fwd(s, action)
    jax.block_until_ready((q1, q2))

    assert q1.shape == (B, 1) and q2.shape == (B, 1)
    assert q1.dtype == jnp.float32 and q2.dtype == jnp.float32

    # correctness vs pure-JAX reference of the PyTorch module
    r1, r2 = jax.jit(lambda s_, a_: reference_forward(raw, s_, a_))(s, action)
    assert jnp.allclose(q1, r1, atol=5e-3, rtol=5e-3)
    assert jnp.allclose(q2, r2, atol=5e-3, rtol=5e-3)

    print("KERNEL_OK")
</pallas_src>

<mosaic_0001>
module attributes {stable_mosaic.version = 11 : i64} {
  func.func @_critic_kernel(%arg0: memref<16x185xf32, #tpu.memory_space<vmem>>, %arg1: memref<2x2xf32, #tpu.memory_space<vmem>>, %arg2: memref<185x304xf32, #tpu.memory_space<vmem>>, %arg3: memref<1x304xf32, #tpu.memory_space<vmem>>, %arg4: memref<176x80xf32, #tpu.memory_space<vmem>>, %arg5: memref<1x80xf32, #tpu.memory_space<vmem>>, %arg6: memref<80x16xf32, #tpu.memory_space<vmem>>, %arg7: memref<1x16xf32, #tpu.memory_space<vmem>>, %arg8: memref<36x384xf32, #tpu.memory_space<vmem>>, %arg9: memref<1x384xf32, #tpu.memory_space<vmem>>, %arg10: memref<36x384xf32, #tpu.memory_space<vmem>>, %arg11: memref<1x384xf32, #tpu.memory_space<vmem>>, %arg12: memref<36x912xf32, #tpu.memory_space<vmem>>, %arg13: memref<1x912xf32, #tpu.memory_space<vmem>>, %arg14: memref<400x300xf32, #tpu.memory_space<vmem>>, %arg15: memref<400x300xf32, #tpu.memory_space<vmem>>, %arg16: memref<2x684xf32, #tpu.memory_space<vmem>>, %arg17: memref<1x684xf32, #tpu.memory_space<vmem>>, %arg18: memref<300x1xf32, #tpu.memory_space<vmem>>, %arg19: memref<1x1xf32, #tpu.memory_space<vmem>>, %arg20: memref<300x1xf32, #tpu.memory_space<vmem>>, %arg21: memref<1x1xf32, #tpu.memory_space<vmem>>, %arg22: memref<2x1xf32, #tpu.memory_space<vmem>>, %arg23: memref<2x1xf32, #tpu.memory_space<vmem>>) attributes {dimension_semantics = [], scalar_prefetch = 0 : i64, scratch_operands = 0 : i64, tpu.core_type = #tpu.core_type<tc>} {
    %c0 = arith.constant 0 : index
    %c0_0 = arith.constant 0 : index
    %0 = vector.load %arg0[%c0, %c0_0] : memref<16x185xf32, #tpu.memory_space<vmem>>, vector<16x185xf32>
    %c0_1 = arith.constant 0 : index
    %c0_2 = arith.constant 0 : index
    %1 = vector.load %arg2[%c0_1, %c0_2] : memref<185x304xf32, #tpu.memory_space<vmem>>, vector<185x304xf32>
    %cst = arith.constant dense<0.000000e+00> : vector<16x304xf32>
    %2 = tpu.matmul %0, %1, %cst {dimension_numbers = #tpu.dot_dimension_numbers<[1], [0], [0], [1], [0, 0, 1, 1], [], []>} : vector<16x185xf32>, vector<185x304xf32>, vector<16x304xf32> -> vector<16x304xf32>
    %c0_3 = arith.constant 0 : index
    %c0_4 = arith.constant 0 : index
    %3 = vector.load %arg3[%c0_3, %c0_4] : memref<1x304xf32, #tpu.memory_space<vmem>>, vector<1x304xf32>
    %4 = vector.broadcast %3 : vector<1x304xf32> to vector<16x304xf32>
    %5 = arith.addf %2, %4 : vector<16x304xf32>
    %cst_5 = arith.constant 0.00999999977 : f32
    %6 = vector.broadcast %cst_5 : f32 to vector<16x304xf32>
    %7 = arith.mulf %6, %5 : vector<16x304xf32>
    %8 = arith.maximumf %5, %7 : vector<16x304xf32>
    %9 = vector.extract_strided_slice %8 {offsets = [0, 0], sizes = [16, 20], strides = [1, 1]} : vector<16x304xf32> to vector<16x20xf32>
    %10 = vector.extract_strided_slice %8 {offsets = [0, 128], sizes = [16, 176], strides = [1, 1]} : vector<16x304xf32> to vector<16x176xf32>
    %c0_6 = arith.constant 0 : index
    %c0_7 = arith.constant 0 : index
    %11 = vector.load %arg4[%c0_6, %c0_7] : memref<176x80xf32, #tpu.memory_space<vmem>>, vector<176x80xf32>
    %cst_8 = arith.constant dense<0.000000e+00> : vector<16x80xf32>
    %12 = tpu.matmul %10, %11, %cst_8 {dimension_numbers = #tpu.dot_dimension_numbers<[1], [0], [0], [1], [0, 0, 1, 1], [], []>} : vector<16x176xf32>, vector<176x80xf32>, vector<16x80xf32> -> vector<16x80xf32>
    %c0_9 = arith.constant 0 : index
    %c0_10 = arith.constant 0 : index
    %13 = vector.load %arg5[%c0_9, %c0_10] : memref<1x80xf32, #tpu.memory_space<vmem>>, vector<1x80xf32>
    %14 = vector.broadcast %13 : vector<1x80xf32> to vector<16x80xf32>
    %15 = arith.addf %12, %14 : vector<16x80xf32>
    %cst_11 = arith.constant 0.00999999977 : f32
    %16 = vector.broadcast %cst_11 : f32 to vector<16x80xf32>
    %17 = arith.mulf %16, %15 : vector<16x80xf32>
    %18 = arith.maximumf %15, %17 : vector<16x80xf32>
    %c0_12 = arith.constant 0 : index
    %c0_13 = arith.constant 0 : index
    %19 = vector.load %arg6[%c0_12, %c0_13] : memref<80x16xf32, #tpu.memory_space<vmem>>, vector<80x16xf32>
    %cst_14 = arith.constant dense<0.000000e+00> : vector<16x16xf32>
    %20 = tpu.matmul %18, %19, %cst_14 {dimension_numbers = #tpu.dot_dimension_numbers<[1], [0], [0], [1], [0, 0, 1, 1], [], []>} : vector<16x80xf32>, vector<80x16xf32>, vector<16x16xf32> -> vector<16x16xf32>
    %c0_15 = arith.constant 0 : index
    %c0_16 = arith.constant 0 : index
    %21 = vector.load %arg7[%c0_15, %c0_16] : memref<1x16xf32, #tpu.memory_space<vmem>>, vector<1x16xf32>
    %22 = vector.broadcast %21 : vector<1x16xf32> to vector<16x16xf32>
    %23 = arith.addf %20, %22 : vector<16x16xf32>
    %cst_17 = arith.constant 0.00999999977 : f32
    %24 = vector.broadcast %cst_17 : f32 to vector<16x16xf32>
    %25 = arith.mulf %24, %23 : vector<16x16xf32>
    %26 = arith.maximumf %23, %25 : vector<16x16xf32>
    %c0_18 = arith.constant 0 : index
    %c0_19 = arith.constant 0 : index
    %27 = vector.load %arg8[%c0_18, %c0_19] : memref<36x384xf32, #tpu.memory_space<vmem>>, vector<36x384xf32>
    %28 = vector.extract_strided_slice %27 {offsets = [0, 0], sizes = [16, 384], strides = [1, 1]} : vector<36x384xf32> to vector<16x384xf32>
    %cst_20 = arith.constant dense<0.000000e+00> : vector<16x384xf32>
    %29 = tpu.matmul %26, %28, %cst_20 {dimension_numbers = #tpu.dot_dimension_numbers<[1], [0], [0], [1], [0, 0, 1, 1], [], []>} : vector<16x16xf32>, vector<16x384xf32>, vector<16x384xf32> -> vector<16x384xf32>
    %30 = vector.extract_strided_slice %27 {offsets = [16, 0], sizes = [20, 384], strides = [1, 1]} : vector<36x384xf32> to vector<20x384xf32>
    %cst_21 = arith.constant dense<0.000000e+00> : vector<16x384xf32>
    %31 = tpu.matmul %9, %30, %cst_21 {dimension_numbers = #tpu.dot_dimension_numbers<[1], [0], [0], [1], [0, 0, 1, 1], [], []>} : vector<16x20xf32>, vector<20x384xf32>, vector<16x384xf32> -> vector<16x384xf32>
    %32 = arith.addf %29, %31 : vector<16x384xf32>
    %c0_22 = arith.constant 0 : index
    %c0_23 = arith.constant 0 : index
    %33 = vector.load %arg9[%c0_22, %c0_23] : memref<1x384xf32, #tpu.memory_space<vmem>>, vector<1x384xf32>
    %34 = vector.broadcast %33 : vector<1x384xf32> to vector<16x384xf32>
    %35 = arith.addf %32, %34 : vector<16x384xf32>
    %c0_24 = arith.constant 0 : index
    %c0_25 = arith.constant 0 : index
    %36 = vector.load %arg10[%c0_24, %c0_25] : memref<36x384xf32, #tpu.memory_space<vmem>>, vector<36x384xf32>
    %c0_26 = arith.constant 0 : index
    %c0_27 = arith.constant 0 : index
    %37 = vector.load %arg11[%c0_26, %c0_27] : memref<1x384xf32, #tpu.memory_space<vmem>>, vector<1x384xf32>
    %cst_28 = arith.constant 0.000000e+00 : f32
    %38 = vector.broadcast %cst_28 : f32 to vector<2x36xf32>
    %39 = vector.extract_strided_slice %35 {offsets = [0, 0], sizes = [2, 384], strides = [1, 1]} : vector<16x384xf32> to vector<2x384xf32>
    %cst_29 = arith.constant dense<0.000000e+00> : vector<2x384xf32>
    %40 = tpu.matmul %38, %36, %cst_29 {dimension_numbers = #tpu.dot_dimension_numbers<[1], [0], [0], [1], [0, 0, 1, 1], [], []>} : vector<2x36xf32>, vector<36x384xf32>, vector<2x384xf32> -> vector<2x384xf32>
    %41 = vector.broadcast %37 : vector<1x384xf32> to vector<2x384xf32>
    %42 = arith.addf %40, %41 : vector<2x384xf32>
    %43 = vector.extract_strided_slice %39 {offsets = [0, 0], sizes = [2, 36], strides = [1, 1]} : vector<2x384xf32> to vector<2x36xf32>
    %44 = vector.extract_strided_slice %42 {offsets = [0, 0], sizes = [2, 36], strides = [1, 1]} : vector<2x384xf32> to vector<2x36xf32>
    %45 = arith.addf %43, %44 : vector<2x36xf32>
    %46 = arith.negf %45 : vector<2x36xf32>
    %47 = math.exp %46 : vector<2x36xf32>
    %cst_30 = arith.constant 1.000000e+00 : f32
    %48 = vector.broadcast %cst_30 : f32 to vector<2x36xf32>
    %49 = arith.addf %48, %47 : vector<2x36xf32>
    %50 = arith.divf %48, %49 : vector<2x36xf32>
    %51 = vector.extract_strided_slice %39 {offsets = [0, 128], sizes = [2, 36], strides = [1, 1]} : vector<2x384xf32> to vector<2x36xf32>
    %52 = vector.extract_strided_slice %42 {offsets = [0, 128], sizes = [2, 36], strides = [1, 1]} : vector<2x384xf32> to vector<2x36xf32>
    %53 = arith.addf %51, %52 : vector<2x36xf32>
    %54 = arith.negf %53 : vector<2x36xf32>
    %55 = math.exp %54 : vector<2x36xf32>
    %cst_31 = arith.constant 1.000000e+00 : f32
    %56 = vector.broadcast %cst_31 : f32 to vector<2x36xf32>
    %57 = arith.addf %56, %55 : vector<2x36xf32>
    %58 = arith.divf %56, %57 : vector<2x36xf32>
    %59 = vector.extract_strided_slice %39 {offsets = [0, 256], sizes = [2, 36], strides = [1, 1]} : vector<2x384xf32> to vector<2x36xf32>
    %60 = vector.extract_strided_slice %42 {offsets = [0, 256], sizes = [2, 36], strides = [1, 1]} : vector<2x384xf32> to vector<2x36xf32>
    %61 = arith.mulf %50, %60 : vector<2x36xf32>
    %62 = arith.addf %59, %61 : vector<2x36xf32>
    %63 = math.tanh %62 : vector<2x36xf32>
    %cst_32 = arith.constant 1.000000e+00 : f32
    %64 = vector.broadcast %cst_32 : f32 to vector<2x36xf32>
    %65 = arith.subf %64, %58 : vector<2x36xf32>
    %66 = arith.mulf %65, %63 : vector<2x36xf32>
    %67 = arith.mulf %58, %38 : vector<2x36xf32>
    %68 = arith.addf %66, %67 : vector<2x36xf32>
    %69 = vector.extract_strided_slice %35 {offsets = [2, 0], sizes = [2, 384], strides = [1, 1]} : vector<16x384xf32> to vector<2x384xf32>
    %cst_33 = arith.constant dense<0.000000e+00> : vector<2x384xf32>
    %70 = tpu.matmul %68, %36, %cst_33 {dimension_numbers = #tpu.dot_dimension_numbers<[1], [0], [0], [1], [0, 0, 1, 1], [], []>} : vector<2x36xf32>, vector<36x384xf32>, vector<2x384xf32> -> vector<2x384xf32>
    %71 = vector.broadcast %37 : vector<1x384xf32> to vector<2x384xf32>
    %72 = arith.addf %70, %71 : vector<2x384xf32>
    %73 = vector.extract_strided_slice %69 {offsets = [0, 0], sizes = [2, 36], strides = [1, 1]} : vector<2x384xf32> to vector<2x36xf32>
    %74 = vector.extract_strided_slice %72 {offsets = [0, 0], sizes = [2, 36], strides = [1, 1]} : vector<2x384xf32> to vector<2x36xf32>
    %75 = arith.addf %73, %74 : vector<2x36xf32>
    %76 = arith.negf %75 : vector<2x36xf32>
    %77 = math.exp %76 : vector<2x36xf32>
    %cst_34 = arith.constant 1.000000e+00 : f32
    %78 = vector.broadcast %cst_34 : f32 to vector<2x36xf32>
    %79 = arith.addf %78, %77 : vector<2x36xf32>
    %80 = arith.divf %78, %79 : vector<2x36xf32>
    %81 = vector.extract_strided_slice %69 {offsets = [0, 128], sizes = [2, 36], strides = [1, 1]} : vector<2x384xf32> to vector<2x36xf32>
    %82 = vector.extract_strided_slice %72 {offsets = [0, 128], sizes = [2, 36], strides = [1, 1]} : vector<2x384xf32> to vector<2x36xf32>
    %83 = arith.addf %81, %82 : vector<2x36xf32>
    %84 = arith.negf %83 : vector<2x36xf32>
    %85 = math.exp %84 : vector<2x36xf32>
    %cst_35 = arith.constant 1.000000e+00 : f32
    %86 = vector.broadcast %cst_35 : f32 to vector<2x36xf32>
    %87 = arith.addf %86, %85 : vector<2x36xf32>
    %88 = arith.divf %86, %87 : vector<2x36xf32>
    %89 = vector.extract_strided_slice %69 {offsets = [0, 256], sizes = [2, 36], strides = [1, 1]} : vector<2x384xf32> to vector<2x36xf32>
    %90 = vector.extract_strided_slice %72 {offsets = [0, 256], sizes = [2, 36], strides = [1, 1]} : vector<2x384xf32> to vector<2x36xf32>
    %91 = arith.mulf %80, %90 : vector<2x36xf32>
    %92 = arith.addf %89, %91 : vector<2x36xf32>
    %93 = math.tanh %92 : vector<2x36xf32>
    %cst_36 = arith.constant 1.000000e+00 : f32
    %94 = vector.broadcast %cst_36 : f32 to vector<2x36xf32>
    %95 = arith.subf %94, %88 : vector<2x36xf32>
    %96 = arith.mulf %95, %93 : vector<2x36xf32>
    %97 = arith.mulf %88, %68 : vector<2x36xf32>
    %98 = arith.addf %96, %97 : vector<2x36xf32>
    %99 = vector.extract_strided_slice %35 {offsets = [4, 0], sizes = [2, 384], strides = [1, 1]} : vector<16x384xf32> to vector<2x384xf32>
    %cst_37 = arith.constant dense<0.000000e+00> : vector<2x384xf32>
    %100 = tpu.matmul %98, %36, %cst_37 {dimension_numbers = #tpu.dot_dimension_numbers<[1], [0], [0], [1], [0, 0, 1, 1], [], []>} : vector<2x36xf32>, vector<36x384xf32>, vector<2x384xf32> -> vector<2x384xf32>
    %101 = vector.broadcast %37 : vector<1x384xf32> to vector<2x384xf32>
    %102 = arith.addf %100, %101 : vector<2x384xf32>
    %103 = vector.extract_strided_slice %99 {offsets = [0, 0], sizes = [2, 36], strides = [1, 1]} : vector<2x384xf32> to vector<2x36xf32>
    %104 = vector.extract_strided_slice %102 {offsets = [0, 0], sizes = [2, 36], strides = [1, 1]} : vector<2x384xf32> to vector<2x36xf32>
    %105 = arith.addf %103, %104 : vector<2x36xf32>
    %106 = arith.negf %105 : vector<2x36xf32>
    %107 = math.exp %106 : vector<2x36xf32>
    %cst_38 = arith.constant 1.000000e+00 : f32
    %108 = vector.broadcast %cst_38 : f32 to vector<2x36xf32>
    %109 = arith.addf %108, %107 : vector<2x36xf32>
    %110 = arith.divf %108, %109 : vector<2x36xf32>
    %111 = vector.extract_strided_slice %99 {offsets = [0, 128], sizes = [2, 36], strides = [1, 1]} : vector<2x384xf32> to vector<2x36xf32>
    %112 = vector.extract_strided_slice %102 {offsets = [0, 128], sizes = [2, 36], strides = [1, 1]} : vector<2x384xf32> to vector<2x36xf32>
    %113 = arith.addf %111, %112 : vector<2x36xf32>
    %114 = arith.negf %113 : vector<2x36xf32>
    %115 = math.exp %114 : vector<2x36xf32>
    %cst_39 = arith.constant 1.000000e+00 : f32
    %116 = vector.broadcast %cst_39 : f32 to vector<2x36xf32>
    %117 = arith.addf %116, %115 : vector<2x36xf32>
    %118 = arith.divf %116, %117 : vector<2x36xf32>
    %119 = vector.extract_strided_slice %99 {offsets = [0, 256], sizes = [2, 36], strides = [1, 1]} : vector<2x384xf32> to vector<2x36xf32>
    %120 = vector.extract_strided_slice %102 {offsets = [0, 256], sizes = [2, 36], strides = [1, 1]} : vector<2x384xf32> to vector<2x36xf32>
    %121 = arith.mulf %110, %120 : vector<2x36xf32>
    %122 = arith.addf %119, %121 : vector<2x36xf32>
    %123 = math.tanh %122 : vector<2x36xf32>
    %cst_40 = arith.constant 1.000000e+00 : f32
    %124 = vector.broadcast %cst_40 : f32 to vector<2x36xf32>
    %125 = arith.subf %124, %118 : vector<2x36xf32>
    %126 = arith.mulf %125, %123 : vector<2x36xf32>
    %127 = arith.mulf %118, %98 : vector<2x36xf32>
    %128 = arith.addf %126, %127 : vector<2x36xf32>
    %129 = vector.extract_strided_slice %35 {offsets = [6, 0], sizes = [2, 384], strides = [1, 1]} : vector<16x384xf32> to vector<2x384xf32>
    %cst_41 = arith.constant dense<0.000000e+00> : vector<2x384xf32>
    %130 = tpu.matmul %128, %36, %cst_41 {dimension_numbers = #tpu.dot_dimension_numbers<[1], [0], [0], [1], [0, 0, 1, 1], [], []>} : vector<2x36xf32>, vector<36x384xf32>, vector<2x384xf32> -> vector<2x384xf32>
    %131 = vector.broadcast %37 : vector<1x384xf32> to vector<2x384xf32>
    %132 = arith.addf %130, %131 : vector<2x384xf32>
    %133 = vector.extract_strided_slice %129 {offsets = [0, 0], sizes = [2, 36], strides = [1, 1]} : vector<2x384xf32> to vector<2x36xf32>
    %134 = vector.extract_strided_slice %132 {offsets = [0, 0], sizes = [2, 36], strides = [1, 1]} : vector<2x384xf32> to vector<2x36xf32>
    %135 = arith.addf %133, %134 : vector<2x36xf32>
    %136 = arith.negf %135 : vector<2x36xf32>
    %137 = math.exp %136 : vector<2x36xf32>
    %cst_42 = arith.constant 1.000000e+00 : f32
    %138 = vector.broadcast %cst_42 : f32 to vector<2x36xf32>
    %139 = arith.addf %138, %137 : vector<2x36xf32>
    %140 = arith.divf %138, %139 : vector<2x36xf32>
    %141 = vector.extract_strided_slice %129 {offsets = [0, 128], sizes = [2, 36], strides = [1, 1]} : vector<2x384xf32> to vector<2x36xf32>
    %142 = vector.extract_strided_slice %132 {offsets = [0, 128], sizes = [2, 36], strides = [1, 1]} : vector<2x384xf32> to vector<2x36xf32>
    %143 = arith.addf %141, %142 : vector<2x36xf32>
    %144 = arith.negf %143 : vector<2x36xf32>
    %145 = math.exp %144 : vector<2x36xf32>
    %cst_43 = arith.constant 1.000000e+00 : f32
    %146 = vector.broadcast %cst_43 : f32 to vector<2x36xf32>
    %147 = arith.addf %146, %145 : vector<2x36xf32>
    %148 = arith.divf %146, %147 : vector<2x36xf32>
    %149 = vector.extract_strided_slice %129 {offsets = [0, 256], sizes = [2, 36], strides = [1, 1]} : vector<2x384xf32> to vector<2x36xf32>
    %150 = vector.extract_strided_slice %132 {offsets = [0, 256], sizes = [2, 36], strides = [1, 1]} : vector<2x384xf32> to vector<2x36xf32>
    %151 = arith.mulf %140, %150 : vector<2x36xf32>
    %152 = arith.addf %149, %151 : vector<2x36xf32>
    %153 = math.tanh %152 : vector<2x36xf32>
    %cst_44 = arith.constant 1.000000e+00 : f32
    %154 = vector.broadcast %cst_44 : f32 to vector<2x36xf32>
    %155 = arith.subf %154, %148 : vector<2x36xf32>
    %156 = arith.mulf %155, %153 : vector<2x36xf32>
    %157 = arith.mulf %148, %128 : vector<2x36xf32>
    %158 = arith.addf %156, %157 : vector<2x36xf32>
    %159 = vector.extract_strided_slice %35 {offsets = [8, 0], sizes = [2, 384], strides = [1, 1]} : vector<16x384xf32> to vector<2x384xf32>
    %cst_45 = arith.constant dense<0.000000e+00> : vector<2x384xf32>
    %160 = tpu.matmul %158, %36, %cst_45 {dimension_numbers = #tpu.dot_dimension_numbers<[1], [0], [0], [1], [0, 0, 1, 1], [], []>} : vector<2x36xf32>, vector<36x384xf32>, vector<2x384xf32> -> vector<2x384xf32>
    %161 = vector.broadcast %37 : vector<1x384xf32> to vector<2x384xf32>
    %162 = arith.addf %160, %161 : vector<2x384xf32>
    %163 = vector.extract_strided_slice %159 {offsets = [0, 0], sizes = [2, 36], strides = [1, 1]} : vector<2x384xf32> to vector<2x36xf32>
    %164 = vector.extract_strided_slice %162 {offsets = [0, 0], sizes = [2, 36], strides = [1, 1]} : vector<2x384xf32> to vector<2x36xf32>
    %165 = arith.addf %163, %164 : vector<2x36xf32>
    %166 = arith.negf %165 : vector<2x36xf32>
    %167 = math.exp %166 : vector<2x36xf32>
    %cst_46 = arith.constant 1.000000e+00 : f32
    %168 = vector.broadcast %cst_46 : f32 to vector<2x36xf32>
    %169 = arith.addf %168, %167 : vector<2x36xf32>
    %170 = arith.divf %168, %169 : vector<2x36xf32>
    %171 = vector.extract_strided_slice %159 {offsets = [0, 128], sizes = [2, 36], strides = [1, 1]} : vector<2x384xf32> to vector<2x36xf32>
    %172 = vector.extract_strided_slice %162 {offsets = [0, 128], sizes = [2, 36], strides = [1, 1]} : vector<2x384xf32> to vector<2x36xf32>
    %173 = arith.addf %171, %172 : vector<2x36xf32>
    %174 = arith.negf %173 : vector<2x36xf32>
    %175 = math.exp %174 : vector<2x36xf32>
    %cst_47 = arith.constant 1.000000e+00 : f32
    %176 = vector.broadcast %cst_47 : f32 to vector<2x36xf32>
    %177 = arith.addf %176, %175 : vector<2x36xf32>
    %178 = arith.divf %176, %177 : vector<2x36xf32>
    %179 = vector.extract_strided_slice %159 {offsets = [0, 256], sizes = [2, 36], strides = [1, 1]} : vector<2x384xf32> to vector<2x36xf32>
    %180 = vector.extract_strided_slice %162 {offsets = [0, 256], sizes = [2, 36], strides = [1, 1]} : vector<2x384xf32> to vector<2x36xf32>
    %181 = arith.mulf %170, %180 : vector<2x36xf32>
    %182 = arith.addf %179, %181 : vector<2x36xf32>
    %183 = math.tanh %182 : vector<2x36xf32>
    %cst_48 = arith.constant 1.000000e+00 : f32
    %184 = vector.broadcast %cst_48 : f32 to vector<2x36xf32>
    %185 = arith.subf %184, %178 : vector<2x36xf32>
    %186 = arith.mulf %185, %183 : vector<2x36xf32>
    %187 = arith.mulf %178, %158 : vector<2x36xf32>
    %188 = arith.addf %186, %187 : vector<2x36xf32>
    %189 = vector.extract_strided_slice %35 {offsets = [10, 0], sizes = [2, 384], strides = [1, 1]} : vector<16x384xf32> to vector<2x384xf32>
    %cst_49 = arith.constant dense<0.000000e+00> : vector<2x384xf32>
    %190 = tpu.matmul %188, %36, %cst_49 {dimension_numbers = #tpu.dot_dimension_numbers<[1], [0], [0], [1], [0, 0, 1, 1], [], []>} : vector<2x36xf32>, vector<36x384xf32>, vector<2x384xf32> -> vector<2x384xf32>
    %191 = vector.broadcast %37 : vector<1x384xf32> to vector<2x384xf32>
    %192 = arith.addf %190, %191 : vector<2x384xf32>
    %193 = vector.extract_strided_slice %189 {offsets = [0, 0], sizes = [2, 36], strides = [1, 1]} : vector<2x384xf32> to vector<2x36xf32>
    %194 = vector.extract_strided_slice %192 {offsets = [0, 0], sizes = [2, 36], strides = [1, 1]} : vector<2x384xf32> to vector<2x36xf32>
    %195 = arith.addf %193, %194 : vector<2x36xf32>
    %196 = arith.negf %195 : vector<2x36xf32>
    %197 = math.exp %196 : vector<2x36xf32>
    %cst_50 = arith.constant 1.000000e+00 : f32
    %198 = vector.broadcast %cst_50 : f32 to vector<2x36xf32>
    %199 = arith.addf %198, %197 : vector<2x36xf32>
    %200 = arith.divf %198, %199 : vector<2x36xf32>
    %201 = vector.extract_strided_slice %189 {offsets = [0, 128], sizes = [2, 36], strides = [1, 1]} : vector<2x384xf32> to vector<2x36xf32>
    %202 = vector.extract_strided_slice %192 {offsets = [0, 128], sizes = [2, 36], strides = [1, 1]} : vector<2x384xf32> to vector<2x36xf32>
    %203 = arith.addf %201, %202 : vector<2x36xf32>
    %204 = arith.negf %203 : vector<2x36xf32>
    %205 = math.exp %204 : vector<2x36xf32>
    %cst_51 = arith.constant 1.000000e+00 : f32
    %206 = vector.broadcast %cst_51 : f32 to vector<2x36xf32>
    %207 = arith.addf %206, %205 : vector<2x36xf32>
    %208 = arith.divf %206, %207 : vector<2x36xf32>
    %209 = vector.extract_strided_slice %189 {offsets = [0, 256], sizes = [2, 36], strides = [1, 1]} : vector<2x384xf32> to vector<2x36xf32>
    %210 = vector.extract_strided_slice %192 {offsets = [0, 256], sizes = [2, 36], strides = [1, 1]} : vector<2x384xf32> to vector<2x36xf32>
    %211 = arith.mulf %200, %210 : vector<2x36xf32>
    %212 = arith.addf %209, %211 : vector<2x36xf32>
    %213 = math.tanh %212 : vector<2x36xf32>
    %cst_52 = arith.constant 1.000000e+00 : f32
    %214 = vector.broadcast %cst_52 : f32 to vector<2x36xf32>
    %215 = arith.subf %214, %208 : vector<2x36xf32>
    %216 = arith.mulf %215, %213 : vector<2x36xf32>
    %217 = arith.mulf %208, %188 : vector<2x36xf32>
    %218 = arith.addf %216, %217 : vector<2x36xf32>
    %219 = vector.extract_strided_slice %35 {offsets = [12, 0], sizes = [2, 384], strides = [1, 1]} : vector<16x384xf32> to vector<2x384xf32>
    %cst_53 = arith.constant dense<0.000000e+00> : vector<2x384xf32>
    %220 = tpu.matmul %218, %36, %cst_53 {dimension_numbers = #tpu.dot_dimension_numbers<[1], [0], [0], [1], [0, 0, 1, 1], [], []>} : vector<2x36xf32>, vector<36x384xf32>, vector<2x384xf32> -> vector<2x384xf32>
    %221 = vector.broadcast %37 : vector<1x384xf32> to vector<2x384xf32>
    %222 = arith.addf %220, %221 : vector<2x384xf32>
    %223 = vector.extract_strided_slice %219 {offsets = [0, 0], sizes = [2, 36], strides = [1, 1]} : vector<2x384xf32> to vector<2x36xf32>
    %224 = vector.extract_strided_slice %222 {offsets = [0, 0], sizes = [2, 36], strides = [1, 1]} : vector<2x384xf32> to vector<2x36xf32>
    %225 = arith.addf %223, %224 : vector<2x36xf32>
    %226 = arith.negf %225 : vector<2x36xf32>
    %227 = math.exp %226 : vector<2x36xf32>
    %cst_54 = arith.constant 1.000000e+00 : f32
    %228 = vector.broadcast %cst_54 : f32 to vector<2x36xf32>
    %229 = arith.addf %228, %227 : vector<2x36xf32>
    %230 = arith.divf %228, %229 : vector<2x36xf32>
    %231 = vector.extract_strided_slice %219 {offsets = [0, 128], sizes = [2, 36], strides = [1, 1]} : vector<2x384xf32> to vector<2x36xf32>
    %232 = vector.extract_strided_slice %222 {offsets = [0, 128], sizes = [2, 36], strides = [1, 1]} : vector<2x384xf32> to vector<2x36xf32>
    %233 = arith.addf %231, %232 : vector<2x36xf32>
    %234 = arith.negf %233 : vector<2x36xf32>
    %235 = math.exp %234 : vector<2x36xf32>
    %cst_55 = arith.constant 1.000000e+00 : f32
    %236 = vector.broadcast %cst_55 : f32 to vector<2x36xf32>
    %237 = arith.addf %236, %235 : vector<2x36xf32>
    %238 = arith.divf %236, %237 : vector<2x36xf32>
    %239 = vector.extract_strided_slice %219 {offsets = [0, 256], sizes = [2, 36], strides = [1, 1]} : vector<2x384xf32> to vector<2x36xf32>
    %240 = vector.extract_strided_slice %222 {offsets = [0, 256], sizes = [2, 36], strides = [1, 1]} : vector<2x384xf32> to vector<2x36xf32>
    %241 = arith.mulf %230, %240 : vector<2x36xf32>
    %242 = arith.addf %239, %241 : vector<2x36xf32>
    %243 = math.tanh %242 : vector<2x36xf32>
    %cst_56 = arith.constant 1.000000e+00 : f32
    %244 = vector.broadcast %cst_56 : f32 to vector<2x36xf32>
    %245 = arith.subf %244, %238 : vector<2x36xf32>
    %246 = arith.mulf %245, %243 : vector<2x36xf32>
    %247 = arith.mulf %238, %218 : vector<2x36xf32>
    %248 = arith.addf %246, %247 : vector<2x36xf32>
    %249 = vector.extract_strided_slice %35 {offsets = [14, 0], sizes = [2, 384], strides = [1, 1]} : vector<16x384xf32> to vector<2x384xf32>
    %cst_57 = arith.constant dense<0.000000e+00> : vector<2x384xf32>
    %250 = tpu.matmul %248, %36, %cst_57 {dimension_numbers = #tpu.dot_dimension_numbers<[1], [0], [0], [1], [0, 0, 1, 1], [], []>} : vector<2x36xf32>, vector<36x384xf32>, vector<2x384xf32> -> vector<2x384xf32>
    %251 = vector.broadcast %37 : vector<1x384xf32> to vector<2x384xf32>
    %252 = arith.addf %250, %251 : vector<2x384xf32>
    %253 = vector.extract_strided_slice %249 {offsets = [0, 0], sizes = [2, 36], strides = [1, 1]} : vector<2x384xf32> to vector<2x36xf32>
    %254 = vector.extract_strided_slice %252 {offsets = [0, 0], sizes = [2, 36], strides = [1, 1]} : vector<2x384xf32> to vector<2x36xf32>
    %255 = arith.addf %253, %254 : vector<2x36xf32>
    %256 = arith.negf %255 : vector<2x36xf32>
    %257 = math.exp %256 : vector<2x36xf32>
    %cst_58 = arith.constant 1.000000e+00 : f32
    %258 = vector.broadcast %cst_58 : f32 to vector<2x36xf32>
    %259 = arith.addf %258, %257 : vector<2x36xf32>
    %260 = arith.divf %258, %259 : vector<2x36xf32>
    %261 = vector.extract_strided_slice %249 {offsets = [0, 128], sizes = [2, 36], strides = [1, 1]} : vector<2x384xf32> to vector<2x36xf32>
    %262 = vector.extract_strided_slice %252 {offsets = [0, 128], sizes = [2, 36], strides = [1, 1]} : vector<2x384xf32> to vector<2x36xf32>
    %263 = arith.addf %261, %262 : vector<2x36xf32>
    %264 = arith.negf %263 : vector<2x36xf32>
    %265 = math.exp %264 : vector<2x36xf32>
    %cst_59 = arith.constant 1.000000e+00 : f32
    %266 = vector.broadcast %cst_59 : f32 to vector<2x36xf32>
    %267 = arith.addf %266, %265 : vector<2x36xf32>
    %268 = arith.divf %266, %267 : vector<2x36xf32>
    %269 = vector.extract_strided_slice %249 {offsets = [0, 256], sizes = [2, 36], strides = [1, 1]} : vector<2x384xf32> to vector<2x36xf32>
    %270 = vector.extract_strided_slice %252 {offsets = [0, 256], sizes = [2, 36], strides = [1, 1]} : vector<2x384xf32> to vector<2x36xf32>
    %271 = arith.mulf %260, %270 : vector<2x36xf32>
    %272 = arith.addf %269, %271 : vector<2x36xf32>
    %273 = math.tanh %272 : vector<2x36xf32>
    %cst_60 = arith.constant 1.000000e+00 : f32
    %274 = vector.broadcast %cst_60 : f32 to vector<2x36xf32>
    %275 = arith.subf %274, %268 : vector<2x36xf32>
    %276 = arith.mulf %275, %273 : vector<2x36xf32>
    %277 = arith.mulf %268, %248 : vector<2x36xf32>
    %278 = arith.addf %276, %277 : vector<2x36xf32>
    %c0_61 = arith.constant 0 : index
    %c0_62 = arith.constant 0 : index
    %279 = vector.load %arg1[%c0_61, %c0_62] : memref<2x2xf32, #tpu.memory_space<vmem>>, vector<2x2xf32>
    %c0_63 = arith.constant 0 : index
    %c0_64 = arith.constant 0 : index
    %280 = vector.load %arg12[%c0_63, %c0_64] : memref<36x912xf32, #tpu.memory_space<vmem>>, vector<36x912xf32>
    %cst_65 = arith.constant dense<0.000000e+00> : vector<2x912xf32>
    %281 = tpu.matmul %278, %280, %cst_65 {dimension_numbers = #tpu.dot_dimension_numbers<[1], [0], [0], [1], [0, 0, 1, 1], [], []>} : vector<2x36xf32>, vector<36x912xf32>, vector<2x912xf32> -> vector<2x912xf32>
    %c0_66 = arith.constant 0 : index
    %c0_67 = arith.constant 0 : index
    %282 = vector.load %arg13[%c0_66, %c0_67] : memref<1x912xf32, #tpu.memory_space<vmem>>, vector<1x912xf32>
    %283 = vector.broadcast %282 : vector<1x912xf32> to vector<2x912xf32>
    %284 = arith.addf %281, %283 : vector<2x912xf32>
    %cst_68 = arith.constant 0.00999999977 : f32
    %285 = vector.broadcast %cst_68 : f32 to vector<2x912xf32>
    %286 = arith.mulf %285, %284 : vector<2x912xf32>
    %287 = arith.maximumf %284, %286 : vector<2x912xf32>
    %c0_69 = arith.constant 0 : index
    %c0_70 = arith.constant 0 : index
    %288 = vector.load %arg16[%c0_69, %c0_70] : memref<2x684xf32, #tpu.memory_space<vmem>>, vector<2x684xf32>
    %cst_71 = arith.constant dense<0.000000e+00> : vector<2x684xf32>
    %289 = tpu.matmul %279, %288, %cst_71 {dimension_numbers = #tpu.dot_dimension_numbers<[1], [0], [0], [1], [0, 0, 1, 1], [], []>} : vector<2x2xf32>, vector<2x684xf32>, vector<2x684xf32> -> vector<2x684xf32>
    %c0_72 = arith.constant 0 : index
    %c0_73 = arith.constant 0 : index
    %290 = vector.load %arg17[%c0_72, %c0_73] : memref<1x684xf32, #tpu.memory_space<vmem>>, vector<1x684xf32>
    %291 = vector.broadcast %290 : vector<1x684xf32> to vector<2x684xf32>
    %292 = arith.addf %289, %291 : vector<2x684xf32>
    %293 = vector.extract_strided_slice %287 {offsets = [0, 0], sizes = [2, 400], strides = [1, 1]} : vector<2x912xf32> to vector<2x400xf32>
    %c0_74 = arith.constant 0 : index
    %c0_75 = arith.constant 0 : index
    %294 = vector.load %arg14[%c0_74, %c0_75] : memref<400x300xf32, #tpu.memory_space<vmem>>, vector<400x300xf32>
    %cst_76 = arith.constant dense<0.000000e+00> : vector<2x300xf32>
    %295 = tpu.matmul %293, %294, %cst_76 {dimension_numbers = #tpu.dot_dimension_numbers<[1], [0], [0], [1], [0, 0, 1, 1], [], []>} : vector<2x400xf32>, vector<400x300xf32>, vector<2x300xf32> -> vector<2x300xf32>
    %296 = vector.extract_strided_slice %292 {offsets = [0, 0], sizes = [2, 300], strides = [1, 1]} : vector<2x684xf32> to vector<2x300xf32>
    %297 = arith.addf %295, %296 : vector<2x300xf32>
    %cst_77 = arith.constant 0.00999999977 : f32
    %298 = vector.broadcast %cst_77 : f32 to vector<2x300xf32>
    %299 = arith.mulf %298, %297 : vector<2x300xf32>
    %300 = arith.maximumf %297, %299 : vector<2x300xf32>
    %301 = vector.extract_strided_slice %287 {offsets = [0, 512], sizes = [2, 400], strides = [1, 1]} : vector<2x912xf32> to vector<2x400xf32>
    %c0_78 = arith.constant 0 : index
    %c0_79 = arith.constant 0 : index
    %302 = vector.load %arg15[%c0_78, %c0_79] : memref<400x300xf32, #tpu.memory_space<vmem>>, vector<400x300xf32>
    %cst_80 = arith.constant dense<0.000000e+00> : vector<2x300xf32>
    %303 = tpu.matmul %301, %302, %cst_80 {dimension_numbers = #tpu.dot_dimension_numbers<[1], [0], [0], [1], [0, 0, 1, 1], [], []>} : vector<2x400xf32>, vector<400x300xf32>, vector<2x300xf32> -> vector<2x300xf32>
    %304 = vector.extract_strided_slice %292 {offsets = [0, 384], sizes = [2, 300], strides = [1, 1]} : vector<2x684xf32> to vector<2x300xf32>
    %305 = arith.addf %303, %304 : vector<2x300xf32>
    %cst_81 = arith.constant 0.00999999977 : f32
    %306 = vector.broadcast %cst_81 : f32 to vector<2x300xf32>
    %307 = arith.mulf %306, %305 : vector<2x300xf32>
    %308 = arith.maximumf %305, %307 : vector<2x300xf32>
    %c0_82 = arith.constant 0 : index
    %c0_83 = arith.constant 0 : index
    %309 = vector.load %arg18[%c0_82, %c0_83] : memref<300x1xf32, #tpu.memory_space<vmem>>, vector<300x1xf32>
    %cst_84 = arith.constant dense<0.000000e+00> : vector<2x1xf32>
    %310 = tpu.matmul %300, %309, %cst_84 {dimension_numbers = #tpu.dot_dimension_numbers<[1], [0], [0], [1], [0, 0, 1, 1], [], []>} : vector<2x300xf32>, vector<300x1xf32>, vector<2x1xf32> -> vector<2x1xf32>
    %c0_85 = arith.constant 0 : index
    %c0_86 = arith.constant 0 : index
    %311 = vector.load %arg19[%c0_85, %c0_86] : memref<1x1xf32, #tpu.memory_space<vmem>>, vector<1x1xf32>
    %312 = vector.broadcast %311 : vector<1x1xf32> to vector<2x1xf32>
    %313 = arith.addf %310, %312 : vector<2x1xf32>
    %c0_87 = arith.constant 0 : index
    %c0_88 = arith.constant 0 : index
    %314 = vector.load %arg22[%c0_87, %c0_88] : memref<2x1xf32, #tpu.memory_space<vmem>>, vector<2x1xf32>
    tpu.vector_store %arg22[%c0_87, %c0_88], %313 {strides = array<i32>} : memref<2x1xf32, #tpu.memory_space<vmem>>, vector<2x1xf32>,
    %c0_89 = arith.constant 0 : index
    %c0_90 = arith.constant 0 : index
    %315 = vector.load %arg20[%c0_89, %c0_90] : memref<300x1xf32, #tpu.memory_space<vmem>>, vector<300x1xf32>
    %cst_91 = arith.constant dense<0.000000e+00> : vector<2x1xf32>
    %316 = tpu.matmul %308, %315, %cst_91 {dimension_numbers = #tpu.dot_dimension_numbers<[1], [0], [0], [1], [0, 0, 1, 1], [], []>} : vector<2x300xf32>, vector<300x1xf32>, vector<2x1xf32> -> vector<2x1xf32>
    %c0_92 = arith.constant 0 : index
    %c0_93 = arith.constant 0 : index
    %317 = vector.load %arg21[%c0_92, %c0_93] : memref<1x1xf32, #tpu.memory_space<vmem>>, vector<1x1xf32>
    %318 = vector.broadcast %317 : vector<1x1xf32> to vector<2x1xf32>
    %319 = arith.addf %316, %318 : vector<2x1xf32>
    %c0_94 = arith.constant 0 : index
    %c0_95 = arith.constant 0 : index
    %320 = vector.load %arg23[%c0_94, %c0_95] : memref<2x1xf32, #tpu.memory_space<vmem>>, vector<2x1xf32>
    tpu.vector_store %arg23[%c0_94, %c0_95], %319 {strides = array<i32>} : memref<2x1xf32, #tpu.memory_space<vmem>>, vector<2x1xf32>,
    return
  }
}

</mosaic_0001>

<llo_original>
// kernel: _lambda_.1
$region0: #{_lambda_.1}
  #allocation0 [shape = 'u32[]', space=smem, size = 0x4, offset = 0x4, fixed_abs, tag = 'smem constant byte address 0x4 - core index']
  #allocation1 [shape = 'u32[144,128]{1,0:T(1,128)}', space=vmem, size = 0x12000, scoped, tag = 'internal scratch']
  #allocation2 [shape = 'f32[1,1]{1,0:T(1,128)S(1)}', space=vmem, size = 0x200, scoped, tag = 'scoped memory for _lambda_.1']
  #allocation3 [shape = 'f32[1,1]{1,0:T(1,128)S(1)}', space=vmem, size = 0x200, scoped, tag = 'scoped memory for _lambda_.1']
  %s0 = inlined_call_operand.vmem [shape: f32[16,185], index: 0, kind: input, shape index: {}]
  %s1 = inlined_call_operand.hbm [shape: f32[2,2], index: 1, kind: input, shape index: {}]
  %s2 = inlined_call_operand.hbm [shape: f32[185,304], index: 2, kind: input, shape index: {}]
  %s3 = inlined_call_operand.hbm [shape: f32[1,304], index: 3, kind: input, shape index: {}]
  %s4 = inlined_call_operand.hbm [shape: f32[176,80], index: 4, kind: input, shape index: {}]
  %s5 = inlined_call_operand.hbm [shape: f32[1,80], index: 5, kind: input, shape index: {}]
  %s6 = inlined_call_operand.hbm [shape: f32[80,16], index: 6, kind: input, shape index: {}]
  %s7 = inlined_call_operand.hbm [shape: f32[1,16], index: 7, kind: input, shape index: {}]
  %s8 = inlined_call_operand.hbm [shape: f32[36,384], index: 8, kind: input, shape index: {}]
  %s9 = inlined_call_operand.hbm [shape: f32[1,384], index: 9, kind: input, shape index: {}]
  %s10 = inlined_call_operand.vmem [shape: f32[36,384], index: 10, kind: input, shape index: {}]
  %s11 = inlined_call_operand.vmem [shape: f32[1,384], index: 11, kind: input, shape index: {}]
  %s12 = inlined_call_operand.hbm [shape: f32[36,912], index: 12, kind: input, shape index: {}]
  %s13 = inlined_call_operand.vmem [shape: f32[1,912], index: 13, kind: input, shape index: {}]
  %s14 = inlined_call_operand.hbm [shape: f32[400,300], index: 14, kind: input, shape index: {}]
  %s15 = inlined_call_operand.hbm [shape: f32[400,300], index: 15, kind: input, shape index: {}]
  %s16 = inlined_call_operand.vmem [shape: f32[2,684], index: 16, kind: input, shape index: {}]
  %s17 = inlined_call_operand.vmem [shape: f32[1,684], index: 17, kind: input, shape index: {}]
  %s18 = inlined_call_operand.hbm [shape: f32[300,1], index: 18, kind: input, shape index: {}]
  %s19 = inlined_call_operand.<no memory space> [shape: f32[1,1], index: 19, kind: input, shape index: {}]
  %s20 = inlined_call_operand.hbm [shape: f32[300,1], index: 20, kind: input, shape index: {}]
  %s21 = inlined_call_operand.<no memory space> [shape: f32[1,1], index: 21, kind: input, shape index: {}]
  %s22 = inlined_call_operand.vmem [shape: f32[2,1], index: 22, kind: output, shape index: {0}]
  %s23 = inlined_call_operand.vmem [shape: f32[2,1], index: 23, kind: output, shape index: {1}]
  %24 = xla_tuple %s22, %s23
  %s25 = sld [smem:[#allocation0]]
  $region162: #{_lambda_.1} parent=0
    _
  %s27 = ssub.s32 1, %s25
  %s28 = scalar_select 0, %s27, %s25
  %v29 = vstv %s19
  %30 = vst [vmem:[#allocation2] sm:$0x1] %v29
  %v31 = vstv %s21
  %32 = vst [vmem:[#allocation3] sm:$0x1] %v31
  $region1: #{_lambda_.1} parent=0
    #allocation4 [shape = 'u8[1024]{0}', space=vmem, size = 0x400, scoped, tag = 'input window, operand 1, single buffered']
    #allocation5 [shape = 's32[1]{0}', space=sflag, size = 0x4, scoped, tag = 'scoped memory for _lambda_.1']
    #allocation6 [shape = 'u8[294912]{0}', space=vmem, size = 0x48000, scoped, tag = 'input window, operand 2, single buffered']
    #allocation7 [shape = 's32[1]{0}', space=sflag, size = 0x4, scoped, tag = 'scoped memory for _lambda_.1']
    #allocation8 [shape = 'u8[1536]{0}', space=vmem, size = 0x800, scoped, tag = 'input window, operand 3, single buffered']
    #allocation9 [shape = 'u8[90112]{0}', space=vmem, size = 0x16000, scoped, tag = 'input window, operand 4, single buffered']
    #allocation10 [shape = 's32[1]{0}', space=sflag, size = 0x4, scoped, tag = 'scoped memory for _lambda_.1']
    #allocation11 [shape = 'u8[512]{0}', space=vmem, size = 0x400, scoped, tag = 'input window, operand 5, single buffered']
    #allocation12 [shape = 'u8[40960]{0}', space=vmem, size = 0xa000, scoped, tag = 'input window, operand 6, single buffered']
    #allocation13 [shape = 's32[1]{0}', space=sflag, size = 0x4, scoped, tag = 'scoped memory for _lambda_.1']
    #allocation14 [shape = 'u8[512]{0}', space=vmem, size = 0x400, scoped, tag = 'input window, operand 7, single buffered']
    #allocation15 [shape = 'u8[61440]{0}', space=vmem, size = 0xf000, scoped, tag = 'input window, operand 8, single buffered']
    #allocation16 [shape = 's32[1]{0}', space=sflag, size = 0x4, scoped, tag = 'scoped memory for _lambda_.1']
    #allocation17 [shape = 'u8[1536]{0}', space=vmem, size = 0x800, scoped, tag = 'input window, operand 9, single buffered']
    #allocation18 [shape = 'u8[163840]{0}', space=vmem, size = 0x28000, scoped, tag = 'input window, operand 12, single buffered']
    #allocation19 [shape = 's32[1]{0}', space=sflag, size = 0x4, scoped, tag = 'scoped memory for _lambda_.1']
    #allocation20 [shape = 'u8[614400]{0}', space=vmem, size = 0x96000, scoped, tag = 'input window, operand 14, single buffered']
    #allocation21 [shape = 'u8[614400]{0}', space=vmem, size = 0x96000, scoped, tag = 'input window, operand 15, single buffered']
    #allocation22 [shape = 's32[1]{0}', space=sflag, size = 0x4, scoped, tag = 'scoped memory for _lambda_.1']
    #allocation23 [shape = 'u8[155648]{0}', space=vmem, size = 0x26000, scoped, tag = 'input window, operand 18, single buffered']
    #allocation24 [shape = 'u8[155648]{0}', space=vmem, size = 0x26000, scoped, tag = 'input window, operand 20, single buffered']
    #allocation25 [shape = 's32[1]{0}', space=sflag, size = 0x4, scoped, tag = 'scoped memory for _lambda_.1']
    %33 = vsyncpa [#allocation5], 0
    %34 = vsyncpa [#allocation7], 0
    %35 = vsyncpa [#allocation10], 0
    %36 = vsyncpa [#allocation13], 0
    %37 = vsyncpa [#allocation16], 0
    %38 = vsyncpa [#allocation19], 0
    %39 = vsyncpa [#allocation22], 0
    %40 = vsyncpa [#allocation25], 0
    // Predicated region
    $region2: #{_lambda_.1} parent=1 // pred_check
      _
    $region3: #{_lambda_.1} parent=1 // pred_check_branch
      %42 = sbr.rel (0) target = $region5
    $region4: #{_lambda_.1} parent=1 // pred_region
      _
    $region5: #{_lambda_.1} parent=1 // pred_fallthru
      _
    // Predicated region
    $region6: #{_lambda_.1} parent=1 // pred_check
      _
    $region7: #{_lambda_.1} parent=1 // pred_check_branch
      %44 = sbr.rel (0) target = $region9
    $region8: #{_lambda_.1} parent=1 // pred_region
      %s46 = ssub.s32 32, 32
      %47 = vsyncadd [#allocation5], %s46
      %s49 = sshll.u32 [#allocation4], 4
      %s50 = int_to_ptr.vmem [resolvable:$true] %s49
      %52 = dma.hbm_to_vmem [thread:$0]  %s1, 32, %s50, [#allocation5]
    $region9: #{_lambda_.1} parent=1 // pred_fallthru
      _
    // Predicated region
    $region10: #{_lambda_.1} parent=1 // pred_check
      _
    $region11: #{_lambda_.1} parent=1 // pred_check_branch
      %54 = sbr.rel (0) target = $region13
    $region12: #{_lambda_.1} parent=1 // pred_region
      %s56 = ssub.s32 9216, 9216
      %57 = vsyncadd [#allocation7], %s56
      %s58 = sshll.u32 [#allocation6], 4
      %s59 = int_to_ptr.vmem [resolvable:$true] %s58
      %64 = dma.hbm_to_vmem [thread:$0]  %s2, 9216, %s59, [#allocation7], 384, 384, 24
    $region13: #{_lambda_.1} parent=1 // pred_fallthru
      _
    // Predicated region
    $region14: #{_lambda_.1} parent=1 // pred_check
      _
    $region15: #{_lambda_.1} parent=1 // pred_check_branch
      %66 = sbr.rel (0) target = $region17
    $region16: #{_lambda_.1} parent=1 // pred_region
      %s68 = ssub.s32 48, 48
      %69 = vsyncadd [#allocation7], %s68
      %s71 = sshll.u32 [#allocation8], 4
      %s72 = int_to_ptr.vmem [resolvable:$true] %s71
      %74 = dma.hbm_to_vmem [thread:$0]  %s3, 48, %s72, [#allocation7]
    $region17: #{_lambda_.1} parent=1 // pred_fallthru
      _
    // Predicated region
    $region18: #{_lambda_.1} parent=1 // pred_check
      _
    $region19: #{_lambda_.1} parent=1 // pred_check_branch
      %76 = sbr.rel (0) target = $region21
    $region20: #{_lambda_.1} parent=1 // pred_region
      %s78 = ssub.s32 2816, 2816
      %79 = vsyncadd [#allocation10], %s78
      %s80 = sshll.u32 [#allocation9], 4
      %s81 = int_to_ptr.vmem [resolvable:$true] %s80
      %86 = dma.hbm_to_vmem [thread:$0]  %s4, 2816, %s81, [#allocation10], 128, 128, 8
    $region21: #{_lambda_.1} parent=1 // pred_fallthru
      _
    // Predicated region
    $region22: #{_lambda_.1} parent=1 // pred_check
      _
    $region23: #{_lambda_.1} parent=1 // pred_check_branch
      %88 = sbr.rel (0) target = $region25
    $region24: #{_lambda_.1} parent=1 // pred_region
      %s90 = ssub.s32 16, 16
      %91 = vsyncadd [#allocation10], %s90
      %s93 = sshll.u32 [#allocation11], 4
      %s94 = int_to_ptr.vmem [resolvable:$true] %s93
      %96 = dma.hbm_to_vmem [thread:$0]  %s5, 16, %s94, [#allocation10]
    $region25: #{_lambda_.1} parent=1 // pred_fallthru
      _
    // Predicated region
    $region26: #{_lambda_.1} parent=1 // pred_check
      _
    $region27: #{_lambda_.1} parent=1 // pred_check_branch
      %98 = sbr.rel (0) target = $region29
    $region28: #{_lambda_.1} parent=1 // pred_region
      %s100 = ssub.s32 1280, 1280
      %101 = vsyncadd [#allocation13], %s100
      %s102 = sshll.u32 [#allocation12], 4
      %s103 = int_to_ptr.vmem [resolvable:$true] %s102
      %108 = dma.hbm_to_vmem [thread:$0]  %s6, 1280, %s103, [#allocation13], 128, 128, 8
    $region29: #{_lambda_.1} parent=1 // pred_fallthru
      _
    // Predicated region
    $region30: #{_lambda_.1} parent=1 // pred_check
      _
    $region31: #{_lambda_.1} parent=1 // pred_check_branch
      %110 = sbr.rel (0) target = $region33
    $region32: #{_lambda_.1} parent=1 // pred_region
      %s112 = ssub.s32 16, 16
      %113 = vsyncadd [#allocation13], %s112
      %s115 = sshll.u32 [#allocation14], 4
      %s116 = int_to_ptr.vmem [resolvable:$true] %s115
      %118 = dma.hbm_to_vmem [thread:$0]  %s7, 16, %s116, [#allocation13]
    $region33: #{_lambda_.1} parent=1 // pred_fallthru
      _
    // Predicated region
    $region34: #{_lambda_.1} parent=1 // pred_check
      _
    $region35: #{_lambda_.1} parent=1 // pred_check_branch
      %120 = sbr.rel (0) target = $region37
    $region36: #{_lambda_.1} parent=1 // pred_region
      %s122 = ssub.s32 1920, 1920
      %123 = vsyncadd [#allocation16], %s122
      %s124 = sshll.u32 [#allocation15], 4
      %s125 = int_to_ptr.vmem [resolvable:$true] %s124
      %130 = dma.hbm_to_vmem [thread:$0]  %s8, 1920, %s125, [#allocation16], 384, 384, 24
    $region37: #{_lambda_.1} parent=1 // pred_fallthru
      _
    // Predicated region
    $region38: #{_lambda_.1} parent=1 // pred_check
      _
    $region39: #{_lambda_.1} parent=1 // pred_check_branch
      %132 = sbr.rel (0) target = $region41
    $region40: #{_lambda_.1} parent=1 // pred_region
      %s134 = ssub.s32 48, 48
      %135 = vsyncadd [#allocation16], %s134
      %s137 = sshll.u32 [#allocation17], 4
      %s138 = int_to_ptr.vmem [resolvable:$true] %s137
      %140 = dma.hbm_to_vmem [thread:$0]  %s9, 48, %s138, [#allocation16]
    $region41: #{_lambda_.1} parent=1 // pred_fallthru
      _
    // Predicated region
    $region42: #{_lambda_.1} parent=1 // pred_check
      _
    $region43: #{_lambda_.1} parent=1 // pred_check_branch
      %142 = sbr.rel (0) target = $region45
    $region44: #{_lambda_.1} parent=1 // pred_region
      _
    $region45: #{_lambda_.1} parent=1 // pred_fallthru
      _
    // Predicated region
    $region46: #{_lambda_.1} parent=1 // pred_check
      _
    $region47: #{_lambda_.1} parent=1 // pred_check_branch
      %144 = sbr.rel (0) target = $region49
    $region48: #{_lambda_.1} parent=1 // pred_region
      _
    $region49: #{_lambda_.1} parent=1 // pred_fallthru
      _
    // Predicated region
    $region50: #{_lambda_.1} parent=1 // pred_check
      _
    $region51: #{_lambda_.1} parent=1 // pred_check_branch
      %146 = sbr.rel (0) target = $region53
    $region52: #{_lambda_.1} parent=1 // pred_region
      %s148 = ssub.s32 5120, 5120
      %149 = vsyncadd [#allocation19], %s148
      %s150 = sshll.u32 [#allocation18], 4
      %s151 = int_to_ptr.vmem [resolvable:$true] %s150
      %156 = dma.hbm_to_vmem [thread:$0]  %s12, 5120, %s151, [#allocation19], 1024, 1024, 64
    $region53: #{_lambda_.1} parent=1 // pred_fallthru
      _
    // Predicated region
    $region54: #{_lambda_.1} parent=1 // pred_check
      _
    $region55: #{_lambda_.1} parent=1 // pred_check_branch
      %158 = sbr.rel (0) target = $region57
    $region56: #{_lambda_.1} parent=1 // pred_region
      _
    $region57: #{_lambda_.1} parent=1 // pred_fallthru
      _
    // Predicated region
    $region58: #{_lambda_.1} parent=1 // pred_check
      _
    $region59: #{_lambda_.1} parent=1 // pred_check_branch
      %160 = sbr.rel (0) target = $region61
    $region60: #{_lambda_.1} parent=1 // pred_region
      %s162 = ssub.s32 19200, 19200
      %163 = vsyncadd [#allocation19], %s162
      %s164 = sshll.u32 [#allocation20], 4
      %s165 = int_to_ptr.vmem [resolvable:$true] %s164
      %170 = dma.hbm_to_vmem [thread:$0]  %s14, 19200, %s165, [#allocation19], 384, 384, 24
    $region61: #{_lambda_.1} parent=1 // pred_fallthru
      _
    // Predicated region
    $region62: #{_lambda_.1} parent=1 // pred_check
      _
    $region63: #{_lambda_.1} parent=1 // pred_check_branch
      %172 = sbr.rel (0) target = $region65
    $region64: #{_lambda_.1} parent=1 // pred_region
      %s174 = ssub.s32 19200, 19200
      %175 = vsyncadd [#allocation22], %s174
      %s176 = sshll.u32 [#allocation21], 4
      %s177 = int_to_ptr.vmem [resolvable:$true] %s176
      %182 = dma.hbm_to_vmem [thread:$0]  %s15, 19200, %s177, [#allocation22], 384, 384, 24
    $region65: #{_lambda_.1} parent=1 // pred_fallthru
      _
    // Predicated region
    $region66: #{_lambda_.1} parent=1 // pred_check
      _
    $region67: #{_lambda_.1} parent=1 // pred_check_branch
      %184 = sbr.rel (0) target = $region69
    $region68: #{_lambda_.1} parent=1 // pred_region
      _
    $region69: #{_lambda_.1} parent=1 // pred_fallthru
      _
    // Predicated region
    $region70: #{_lambda_.1} parent=1 // pred_check
      _
    $region71: #{_lambda_.1} parent=1 // pred_check_branch
      %186 = sbr.rel (0) target = $region73
    $region72: #{_lambda_.1} parent=1 // pred_region
      _
    $region73: #{_lambda_.1} parent=1 // pred_fallthru
      _
    // Predicated region
    $region74: #{_lambda_.1} parent=1 // pred_check
      _
    $region75: #{_lambda_.1} parent=1 // pred_check_branch
      %188 = sbr.rel (0) target = $region77
    $region76: #{_lambda_.1} parent=1 // pred_region
      %s190 = ssub.s32 4864, 4864
      %191 = vsyncadd [#allocation22], %s190
      %s192 = sshll.u32 [#allocation23], 4
      %s193 = int_to_ptr.vmem [resolvable:$true] %s192
      %198 = dma.hbm_to_vmem [thread:$0]  %s18, 4864, %s193, [#allocation22], 128, 128, 8
    $region77: #{_lambda_.1} parent=1 // pred_fallthru
      _
    // Predicated region
    $region78: #{_lambda_.1} parent=1 // pred_check
      _
    $region79: #{_lambda_.1} parent=1 // pred_check_branch
      %200 = sbr.rel (0) target = $region81
    $region80: #{_lambda_.1} parent=1 // pred_region
      _
    $region81: #{_lambda_.1} parent=1 // pred_fallthru
      _
    // Predicated region
    $region82: #{_lambda_.1} parent=1 // pred_check
      _
    $region83: #{_lambda_.1} parent=1 // pred_check_branch
      %202 = sbr.rel (0) target = $region85
    $region84: #{_lambda_.1} parent=1 // pred_region
      %s204 = ssub.s32 4864, 4864
      %205 = vsyncadd [#allocation25], %s204
      %s206 = sshll.u32 [#allocation24], 4
      %s207 = int_to_ptr.vmem [resolvable:$true] %s206
      %212 = dma.hbm_to_vmem [thread:$0]  %s20, 4864, %s207, [#allocation25], 128, 128, 8
    $region85: #{_lambda_.1} parent=1 // pred_fallthru
      _
    // Predicated region
    $region86: #{_lambda_.1} parent=1 // pred_check
      _
    $region87: #{_lambda_.1} parent=1 // pred_check_branch
      %214 = sbr.rel (0) target = $region89
    $region88: #{_lambda_.1} parent=1 // pred_region
      _
    $region89: #{_lambda_.1} parent=1 // pred_fallthru
      _
    // Predicated region
    $region90: #{_lambda_.1} parent=1 // pred_check
      _
    $region91: #{_lambda_.1} parent=1 // pred_check_branch
      %216 = sbr.rel (0) target = $region93
    $region92: #{_lambda_.1} parent=1 // pred_region
      %217 = dma.done [#allocation5], 32
    $region93: #{_lambda_.1} parent=1 // pred_fallthru
      _
    // Predicated region
    $region94: #{_lambda_.1} parent=1 // pred_check
      _
    $region95: #{_lambda_.1} parent=1 // pred_check_branch
      %219 = sbr.rel (0) target = $region97
    $region96: #{_lambda_.1} parent=1 // pred_region
      %220 = dma.done [#allocation7], 9216
    $region97: #{_lambda_.1} parent=1 // pred_fallthru
      _
    // Predicated region
    $region98: #{_lambda_.1} parent=1 // pred_check
      _
    $region99: #{_lambda_.1} parent=1 // pred_check_branch
      %222 = sbr.rel (0) target = $region101
    $region100: #{_lambda_.1} parent=1 // pred_region
      %223 = dma.done [#allocation7], 48
    $region101: #{_lambda_.1} parent=1 // pred_fallthru
      _
    // Predicated region
    $region102: #{_lambda_.1} parent=1 // pred_check
      _
    $region103: #{_lambda_.1} parent=1 // pred_check_branch
      %225 = sbr.rel (0) target = $region105
    $region104: #{_lambda_.1} parent=1 // pred_region
      %226 = dma.done [#allocation10], 2816
    $region105: #{_lambda_.1} parent=1 // pred_fallthru
      _
    // Predicated region
    $region106: #{_lambda_.1} parent=1 // pred_check
      _
    $region107: #{_lambda_.1} parent=1 // pred_check_branch
      %228 = sbr.rel (0) target = $region109
    $region108: #{_lambda_.1} parent=1 // pred_region
      %229 = dma.done [#allocation10], 16
    $region109: #{_lambda_.1} parent=1 // pred_fallthru
      _
    // Predicated region
    $region110: #{_lambda_.1} parent=1 // pred_check
      _
    $region111: #{_lambda_.1} parent=1 // pred_check_branch
      %231 = sbr.rel (0) target = $region113
    $region112: #{_lambda_.1} parent=1 // pred_region
      %232 = dma.done [#allocation13], 1280
    $region113: #{_lambda_.1} parent=1 // pred_fallthru
      _
    // Predicated region
    $region114: #{_lambda_.1} parent=1 // pred_check
      _
    $region115: #{_lambda_.1} parent=1 // pred_check_branch
      %234 = sbr.rel (0) target = $region117
    $region116: #{_lambda_.1} parent=1 // pred_region
      %235 = dma.done [#allocation13], 16
    $region117: #{_lambda_.1} parent=1 // pred_fallthru
      _
    // Predicated region
    $region118: #{_lambda_.1} parent=1 // pred_check
      _
    $region119: #{_lambda_.1} parent=1 // pred_check_branch
      %237 = sbr.rel (0) target = $region121
    $region120: #{_lambda_.1} parent=1 // pred_region
      %238 = dma.done [#allocation16], 1920
    $region121: #{_lambda_.1} parent=1 // pred_fallthru
      _
    // Predicated region
    $region122: #{_lambda_.1} parent=1 // pred_check
      _
    $region123: #{_lambda_.1} parent=1 // pred_check_branch
      %240 = sbr.rel (0) target = $region125
    $region124: #{_lambda_.1} parent=1 // pred_region
      %241 = dma.done [#allocation16], 48
    $region125: #{_lambda_.1} parent=1 // pred_fallthru
      _
    // Predicated region
    $region126: #{_lambda_.1} parent=1 // pred_check
      _
    $region127: #{_lambda_.1} parent=1 // pred_check_branch
      %243 = sbr.rel (0) target = $region129
    $region128: #{_lambda_.1} parent=1 // pred_region
      %244 = dma.done [#allocation19], 5120
    $region129: #{_lambda_.1} parent=1 // pred_fallthru
      _
    // Predicated region
    $region130: #{_lambda_.1} parent=1 // pred_check
      _
    $region131: #{_lambda_.1} parent=1 // pred_check_branch
      %246 = sbr.rel (0) target = $region133
    $region132: #{_lambda_.1} parent=1 // pred_region
      %247 = dma.done [#allocation19], 19200
    $region133: #{_lambda_.1} parent=1 // pred_fallthru
      _
    // Predicated region
    $region134: #{_lambda_.1} parent=1 // pred_check
      _
    $region135: #{_lambda_.1} parent=1 // pred_check_branch
      %249 = sbr.rel (0) target = $region137
    $region136: #{_lambda_.1} parent=1 // pred_region
      %250 = dma.done [#allocation22], 19200
    $region137: #{_lambda_.1} parent=1 // pred_fallthru
      _
    // Predicated region
    $region138: #{_lambda_.1} parent=1 // pred_check
      _
    $region139: #{_lambda_.1} parent=1 // pred_check_branch
      %252 = sbr.rel (0) target = $region141
    $region140: #{_lambda_.1} parent=1 // pred_region
      %253 = dma.done [#allocation22], 4864
    $region141: #{_lambda_.1} parent=1 // pred_fallthru
      _
    // Predicated region
    $region142: #{_lambda_.1} parent=1 // pred_check
      _
    $region143: #{_lambda_.1} parent=1 // pred_check_branch
      %255 = sbr.rel (0) target = $region145
    $region144: #{_lambda_.1} parent=1 // pred_region
      %256 = dma.done [#allocation25], 4864
    $region145: #{_lambda_.1} parent=1 // pred_fallthru
      _
    %v257 = vld [vmem:[%s0] sm:$0xff]
    %v258 = vld [vmem:[%s0 + $0x8] sm:$0xff]
    %v259 = vld [vmem:[%s0 + $0x10] sm:$0xff]
    %v260 = vld [vmem:[%s0 + $0x18] sm:$0xff]
    %v261 = vld [vmem:[#allocation6] sm:$0xff]
    %v262 = vld [vmem:[#allocation6 + $0x8] sm:$0xff]
    %v263 = vld [vmem:[#allocation6 + $0x10] sm:$0xff]
    %v264 = vld [vmem:[#allocation6 + $0x18] sm:$0xff]
    %v265 = vld [vmem:[#allocation6 + $0x20] sm:$0xff]
    %v266 = vld [vmem:[#allocation6 + $0x28] sm:$0xff]
    %v267 = vld [vmem:[#allocation6 + $0x30] sm:$0xff]
    %v268 = vld [vmem:[#allocation6 + $0x38] sm:$0xff]
    %v269 = vld [vmem:[#allocation6 + $0x40] sm:$0xff]
    %v270 = vld [vmem:[#allocation6 + $0x48] sm:$0xff]
    %v271 = vld [vmem:[#allocation6 + $0x50] sm:$0xff]
    %v272 = vld [vmem:[#allocation6 + $0x58] sm:$0xff]
    %v273 = vld [vmem:[#allocation6 + $0x60] sm:$0xff]
    %v274 = vld [vmem:[#allocation6 + $0x68] sm:$0xff]
    %v275 = vld [vmem:[#allocation6 + $0x70] sm:$0xff]
    %v276 = vld [vmem:[#allocation6 + $0x78] sm:$0xff]
    %v277 = vld [vmem:[#allocation6 + $0x80] sm:$0xff]
    %v278 = vld [vmem:[#allocation6 + $0x88] sm:$0xff]
    %v279 = vld [vmem:[#allocation6 + $0x90] sm:$0xff]
    %v280 = vld [vmem:[#allocation6 + $0x98] sm:$0xff]
    %v281 = vld [vmem:[#allocation6 + $0xa0] sm:$0xff]
    %v282 = vld [vmem:[#allocation6 + $0xa8] sm:$0xff]
    %v283 = vld [vmem:[#allocation6 + $0xb0] sm:$0xff]
    %v284 = vld [vmem:[#allocation6 + $0xb8] sm:$0xff]
    %v285 = vld [vmem:[#allocation6 + $0xc0] sm:$0xff]
    %v286 = vld [vmem:[#allocation6 + $0xc8] sm:$0xff]
    %v287 = vld [vmem:[#allocation6 + $0xd0] sm:$0xff]
    %v288 = vld [vmem:[#allocation6 + $0xd8] sm:$0xff]
    %v289 = vld [vmem:[#allocation6 + $0xe0] sm:$0xff]
    %v290 = vld [vmem:[#allocation6 + $0xe8] sm:$0xff]
    %v291 = vld [vmem:[#allocation6 + $0xf0] sm:$0xff]
    %v292 = vld [vmem:[#allocation6 + $0xf8] sm:$0xff]
    %v293 = vld [vmem:[#allocation6 + $0x100] sm:$0xff]
    %v294 = vld [vmem:[#allocation6 + $0x108] sm:$0xff]
    %v295 = vld [vmem:[#allocation6 + $0x110] sm:$0xff]
    %v296 = vld [vmem:[#allocation6 + $0x118] sm:$0xff]
    %v297 = vld [vmem:[#allocation6 + $0x120] sm:$0xff]
    %v298 = vld [vmem:[#allocation6 + $0x128] sm:$0xff]
    %v299 = vld [vmem:[#allocation6 + $0x130] sm:$0xff]
    %v300 = vld [vmem:[#allocation6 + $0x138] sm:$0xff]
    %v301 = vld [vmem:[#allocation6 + $0x140] sm:$0xff]
    %v302 = vld [vmem:[#allocation6 + $0x148] sm:$0xff]
    %v303 = vld [vmem:[#allocation6 + $0x150] sm:$0xff]
    %v304 = vld [vmem:[#allocation6 + $0x158] sm:$0xff]
    %v305 = vld [vmem:[#allocation6 + $0x160] sm:$0xff]
    %v306 = vld [vmem:[#allocation6 + $0x168] sm:$0xff]
    %v307 = vld [vmem:[#allocation6 + $0x170] sm:$0xff]
    %v308 = vld [vmem:[#allocation6 + $0x178] sm:$0xff]
    %v309 = vld [vmem:[#allocation6 + $0x180] sm:$0xff]
    %v310 = vld [vmem:[#allocation6 + $0x188] sm:$0xff]
    %v311 = vld [vmem:[#allocation6 + $0x190] sm:$0xff]
    %v312 = vld [vmem:[#allocation6 + $0x198] sm:$0xff]
    %v313 = vld [vmem:[#allocation6 + $0x1a0] sm:$0xff]
    %v314 = vld [vmem:[#allocation6 + $0x1a8] sm:$0xff]
    %v315 = vld [vmem:[#allocation6 + $0x1b0] sm:$0xff]
    %v316 = vld [vmem:[#allocation6 + $0x1b8] sm:$0xff]
    %v317 = vld [vmem:[#allocation6 + $0x1c0] sm:$0xff]
    %v318 = vld [vmem:[#allocation6 + $0x1c8] sm:$0xff]
    %v319 = vld [vmem:[#allocation6 + $0x1d0] sm:$0xff]
    %v320 = vld [vmem:[#allocation6 + $0x1d8] sm:$0xff]
    %v321 = vld [vmem:[#allocation6 + $0x1e0] sm:$0xff]
    %v322 = vld [vmem:[#allocation6 + $0x1e8] sm:$0xff]
    %v323 = vld [vmem:[#allocation6 + $0x1f0] sm:$0xff]
    %v324 = vld [vmem:[#allocation6 + $0x1f8] sm:$0xff]
    %v325 = vld [vmem:[#allocation6 + $0x200] sm:$0xff]
    %v326 = vld [vmem:[#allocation6 + $0x208] sm:$0xff]
    %v327 = vld [vmem:[#allocation6 + $0x210] sm:$0xff]
    %v328 = vld [vmem:[#allocation6 + $0x218] sm:$0xff]
    %v329 = vld [vmem:[#allocation6 + $0x220] sm:$0xff]
    %v330 = vld [vmem:[#allocation6 + $0x228] sm:$0x1]
    %v331 = vld [vmem:[#allocation6 + $0x230] sm:$0x1]
    %v332 = vld [vmem:[#allocation6 + $0x238] sm:$0x1]
    %v333 = vld [vmem:[#allocation8] sm:$0x7]
    %v335 = vlaneseq
    %v336 = vshrl.u32 %v335, 7
    %v337 = vsub.s32 0, %v336
    %v338 = vrot.slane %v333, %v337
    %v339 = vlaneseq
    %v340 = vshrl.u32 %v339, 7
    %v341 = vsub.s32 1, %v340
    %v342 = vrot.slane %v333, %v341
    %v343 = vlaneseq
    %v344 = vshrl.u32 %v343, 7
    %v345 = vsub.s32 2, %v344
    %v346 = vrot.slane %v333, %v345
    %vm350 = vcmask 465920
    %v352 = vsel %vm350, %v258, 0
    %v355 = vsel %vm350, %v260, 0
    %vm357 = vcmask 1040384
    %v359 = vsel %vm357, %v330, 0
    %v362 = vsel %vm357, %v331, 0
    %v365 = vsel %vm357, %v332, 0
    %367 = vmatprep.subr.mxu0 %v307
    %368 = vmatpush1.msra.mxu0 %v306
    %369 = vmatprep.subr.mxu0 %v304
    %370 = vmatpush1.msra.mxu0 %v303
    %371 = vmatprep.subr.mxu0 %v301
    %372 = vmatpush1.msra.mxu0 %v300
    %373 = vmatprep.subr.mxu0 %v298
    %374 = vmatpush1.msra.mxu0 %v297
    %375 = vmatprep.subr.mxu0 %v295
    %376 = vmatpush1.msra.mxu0 %v294
    %377 = vmatprep.subr.mxu0 %v292
    %378 = vmatpush1.msra.mxu0 %v291
    %379 = vmatprep.subr.mxu0 %v289
    %380 = vmatpush1.msra.mxu0 %v288
    %381 = vmatprep.subr.mxu0 %v286
    %382 = vmatpush1.msra.mxu0 %v285
    %383 = vmatprep.subr.mxu0 %v283
    %384 = vmatpush1.msra.mxu0 %v282
    %385 = vmatprep.subr.mxu0 %v280
    %386 = vmatpush1.msra.mxu0 %v279
    %387 = vmatprep.subr.mxu0 %v277
    %388 = vmatpush1.msra.mxu0 %v276
    %389 = vmatprep.subr.mxu0 %v274
    %390 = vmatpush1.msra.mxu0 %v273
    %391 = vmatprep.subr.mxu0 %v271
    %392 = vmatpush1.msra.mxu0 %v270
    %393 = vmatprep.subr.mxu0 %v268
    %394 = vmatpush1.msra.mxu0 %v267
    %395 = vmatprep.subr.mxu0 %v265
    %396 = vmatpush1.msra.mxu0 %v264
    %397 = vmatprep.subr.mxu0 %v262
    %398 = vmatpush1.msra.mxu0 %v261
    %399 = vmatprep.subr.mxu0 0.0
    %400 = vmatpush2.msra.mxu0 0.0
    %401 = vmatprep.subr.mxu0 0.0
    %402 = vmatpush2.msra.mxu0 0.0
    %403 = vmatprep.subr.mxu0 0.0
    %404 = vmatpush2.msra.mxu0 0.0
    %405 = vmatprep.subr.mxu0 0.0
    %406 = vmatpush2.msra.mxu0 0.0
    %407 = vmatprep.subr.mxu0 0.0
    %408 = vmatpush2.msra.mxu0 0.0
    %409 = vmatprep.subr.mxu0 0.0
    %410 = vmatpush2.msra.mxu0 0.0
    %411 = vmatprep.subr.mxu0 0.0
    %412 = vmatpush2.msra.mxu0 0.0
    %413 = vmatprep.subr.mxu0 0.0
    %414 = vmatpush2.msra.mxu0 0.0
    %415 = vmatprep.subr.mxu0 %v362
    %416 = vmatpush2.msra.mxu0 %v359
    %417 = vmatprep.subr.mxu0 %v328
    %418 = vmatpush2.msra.mxu0 %v327
    %419 = vmatprep.subr.mxu0 %v325
    %420 = vmatpush2.msra.mxu0 %v324
    %421 = vmatprep.subr.mxu0 %v322
    %422 = vmatpush2.msra.mxu0 %v321
    %423 = vmatprep.subr.mxu0 %v319
    %424 = vmatpush2.msra.mxu0 %v318
    %425 = vmatprep.subr.mxu0 %v316
    %426 = vmatpush2.msra.mxu0 %v315
    %427 = vmatprep.subr.mxu0 %v313
    %428 = vmatpush2.msra.mxu0 %v312
    %429 = vmatprep.subr.mxu0 %v310
    %430 = vmatpush2.msra.mxu0 %v309
    %431 = vmatprep.mubr.f32.mxu0 %v352
    %432 = vmatmul.mubr.f32.gmra.mxu0 %v257
    %v433 = vpop.f32.mrf.mxu0
    %v434 = vadd.f32 %v338, %v433
    %v435 = vpop.f32.mrf.mxu0
    %v436 = vadd.f32 %v342, %v435
    %437 = vmatprep.mubr.f32.mxu0 %v355
    %438 = vmatmul.mubr.f32.gmra.mxu0 %v259
    %v439 = vpop.f32.mrf.mxu0
    %v440 = vadd.f32 %v338, %v439
    %v441 = vpop.f32.mrf.mxu0
    %v442 = vadd.f32 %v342, %v441
    %443 = vdwg.mxu0
    %444 = vmatprep.subr.mxu0 0.0
    %445 = vmatpush1.msra.mxu0 %v308
    %446 = vmatprep.subr.mxu0 0.0
    %447 = vmatpush1.msra.mxu0 %v305
    %448 = vmatprep.subr.mxu0 0.0
    %449 = vmatpush1.msra.mxu0 %v302
    %450 = vmatprep.subr.mxu0 0.0
    %451 = vmatpush1.msra.mxu0 %v299
    %452 = vmatprep.subr.mxu0 0.0
    %453 = vmatpush1.msra.mxu0 %v296
    %454 = vmatprep.subr.mxu0 0.0
    %455 = vmatpush1.msra.mxu0 %v293
    %456 = vmatprep.subr.mxu0 0.0
    %457 = vmatpush1.msra.mxu0 %v290
    %458 = vmatprep.subr.mxu0 0.0
    %459 = vmatpush1.msra.mxu0 %v287
    %460 = vmatprep.subr.mxu0 0.0
    %461 = vmatpush1.msra.mxu0 %v284
    %462 = vmatprep.subr.mxu0 0.0
    %463 = vmatpush1.msra.mxu0 %v281
    %464 = vmatprep.subr.mxu0 0.0
    %465 = vmatpush1.msra.mxu0 %v278
    %466 = vmatprep.subr.mxu0 0.0
    %467 = vmatpush1.msra.mxu0 %v275
    %468 = vmatprep.subr.mxu0 0.0
    %469 = vmatpush1.msra.mxu0 %v272
    %470 = vmatprep.subr.mxu0 0.0
    %471 = vmatpush1.msra.mxu0 %v269
    %472 = vmatprep.subr.mxu0 0.0
    %473 = vmatpush1.msra.mxu0 %v266
    %474 = vmatprep.subr.mxu0 0.0
    %475 = vmatpush1.msra.mxu0 %v263
    %476 = vmatprep.subr.mxu0 0.0
    %477 = vmatpush2.msra.mxu0 0.0
    %478 = vmatprep.subr.mxu0 0.0
    %479 = vmatpush2.msra.mxu0 0.0
    %480 = vmatprep.subr.mxu0 0.0
    %481 = vmatpush2.msra.mxu0 0.0
    %482 = vmatprep.subr.mxu0 0.0
    %483 = vmatpush2.msra.mxu0 0.0
    %484 = vmatprep.subr.mxu0 0.0
    %485 = vmatpush2.msra.mxu0 0.0
    %486 = vmatprep.subr.mxu0 0.0
    %487 = vmatpush2.msra.mxu0 0.0
    %488 = vmatprep.subr.mxu0 0.0
    %489 = vmatpush2.msra.mxu0 0.0
    %490 = vmatprep.subr.mxu0 0.0
    %491 = vmatpush2.msra.mxu0 0.0
    %492 = vmatprep.subr.mxu0 0.0
    %493 = vmatpush2.msra.mxu0 %v365
    %494 = vmatprep.subr.mxu0 0.0
    %495 = vmatpush2.msra.mxu0 %v329
    %496 = vmatprep.subr.mxu0 0.0
    %497 = vmatpush2.msra.mxu0 %v326
    %498 = vmatprep.subr.mxu0 0.0
    %499 = vmatpush2.msra.mxu0 %v323
    %500 = vmatprep.subr.mxu0 0.0
    %501 = vmatpush2.msra.mxu0 %v320
    %502 = vmatprep.subr.mxu0 0.0
    %503 = vmatpush2.msra.mxu0 %v317
    %504 = vmatprep.subr.mxu0 0.0
    %505 = vmatpush2.msra.mxu0 %v314
    %506 = vmatprep.subr.mxu0 0.0
    %507 = vmatpush2.msra.mxu0 %v311
    %508 = vmatprep.mubr.f32.mxu0 %v352
    %509 = vmatmul.mubr.f32.gmra.mxu0 %v257
    %v510 = vpop.f32.mrf.mxu0
    %v511 = vadd.f32 %v346, %v510
    %v512 = vpop.f32.mrf.mxu0
    %513 = vmatprep.mubr.f32.mxu0 %v355
    %514 = vmatmul.mubr.f32.gmra.mxu0 %v259
    %v515 = vpop.f32.mrf.mxu0
    %v516 = vadd.f32 %v346, %v515
    %v517 = vpop.f32.mrf.mxu0
    %518 = vdwg.mxu0
    %v519 = vmul.f32 %v434, 0.01
    %v520 = vmul.f32 %v436, 0.01
    %v521 = vmul.f32 %v511, 0.01
    %v522 = vmul.f32 %v440, 0.01
    %v523 = vmul.f32 %v442, 0.01
    %v524 = vmul.f32 %v516, 0.01
    %v525 = vmax.f32 %v434, %v519
    %v526 = vmax.f32 %v436, %v520
    %v527 = vmax.f32 %v511, %v521
    %v528 = vmax.f32 %v440, %v522
    %v529 = vmax.f32 %v442, %v523
    %v530 = vmax.f32 %v516, %v524
    %v531 = vld [vmem:[#allocation9] sm:$0xff]
    %v532 = vld [vmem:[#allocation9 + $0x8] sm:$0xff]
    %v533 = vld [vmem:[#allocation9 + $0x10] sm:$0xff]
    %v534 = vld [vmem:[#allocation9 + $0x18] sm:$0xff]
    %v535 = vld [vmem:[#allocation9 + $0x20] sm:$0xff]
    %v536 = vld [vmem:[#allocation9 + $0x28] sm:$0xff]
    %v537 = vld [vmem:[#allocation9 + $0x30] sm:$0xff]
    %v538 = vld [vmem:[#allocation9 + $0x38] sm:$0xff]
    %v539 = vld [vmem:[#allocation9 + $0x40] sm:$0xff]
    %v540 = vld [vmem:[#allocation9 + $0x48] sm:$0xff]
    %v541 = vld [vmem:[#allocation9 + $0x50] sm:$0xff]
    %v542 = vld [vmem:[#allocation9 + $0x58] sm:$0xff]
    %v543 = vld [vmem:[#allocation9 + $0x60] sm:$0xff]
    %v544 = vld [vmem:[#allocation9 + $0x68] sm:$0xff]
    %v545 = vld [vmem:[#allocation9 + $0x70] sm:$0xff]
    %v546 = vld [vmem:[#allocation9 + $0x78] sm:$0xff]
    %v547 = vld [vmem:[#allocation9 + $0x80] sm:$0xff]
    %v548 = vld [vmem:[#allocation9 + $0x88] sm:$0xff]
    %v549 = vld [vmem:[#allocation9 + $0x90] sm:$0xff]
    %v550 = vld [vmem:[#allocation9 + $0x98] sm:$0xff]
    %v551 = vld [vmem:[#allocation9 + $0xa0] sm:$0xff]
    %v552 = vld [vmem:[#allocation9 + $0xa8] sm:$0xff]
    %v553 = vld [vmem:[#allocation11] sm:$0x1]
    %v555 = vlaneseq
    %v556 = vshrl.u32 %v555, 7
    %v557 = vsub.s32 0, %v556
    %v558 = vrot.slane %v553, %v557
    %vm560 = vcmask 392192
    %v562 = vsel %vm560, %v527, 0
    %v565 = vsel %vm560, %v530, 0
    %567 = vmatprep.subr.mxu0 0.0
    %568 = vmatpush1.msra.mxu0 %v546
    %569 = vmatprep.subr.mxu0 0.0
    %570 = vmatpush1.msra.mxu0 %v545
    %571 = vmatprep.subr.mxu0 0.0
    %572 = vmatpush1.msra.mxu0 %v544
    %573 = vmatprep.subr.mxu0 0.0
    %574 = vmatpush1.msra.mxu0 %v543
    %575 = vmatprep.subr.mxu0 0.0
    %576 = vmatpush1.msra.mxu0 %v542
    %577 = vmatprep.subr.mxu0 0.0
    %578 = vmatpush1.msra.mxu0 %v541
    %579 = vmatprep.subr.mxu0 0.0
    %580 = vmatpush1.msra.mxu0 %v540
    %581 = vmatprep.subr.mxu0 0.0
    %582 = vmatpush1.msra.mxu0 %v539
    %583 = vmatprep.subr.mxu0 0.0
    %584 = vmatpush1.msra.mxu0 %v538
    %585 = vmatprep.subr.mxu0 0.0
    %586 = vmatpush1.msra.mxu0 %v537
    %587 = vmatprep.subr.mxu0 0.0
    %588 = vmatpush1.msra.mxu0 %v536
    %589 = vmatprep.subr.mxu0 0.0
    %590 = vmatpush1.msra.mxu0 %v535
    %591 = vmatprep.subr.mxu0 0.0
    %592 = vmatpush1.msra.mxu0 %v534
    %593 = vmatprep.subr.mxu0 0.0
    %594 = vmatpush1.msra.mxu0 %v533
    %595 = vmatprep.subr.mxu0 0.0
    %596 = vmatpush1.msra.mxu0 %v532
    %597 = vmatprep.subr.mxu0 0.0
    %598 = vmatpush1.msra.mxu0 %v531
    %599 = vmatprep.subr.mxu0 0.0
    %600 = vmatpush2.msra.mxu0 0.0
    %601 = vmatprep.subr.mxu0 0.0
    %602 = vmatpush2.msra.mxu0 0.0
    %603 = vmatprep.subr.mxu0 0.0
    %604 = vmatpush2.msra.mxu0 0.0
    %605 = vmatprep.subr.mxu0 0.0
    %606 = vmatpush2.msra.mxu0 0.0
    %607 = vmatprep.subr.mxu0 0.0
    %608 = vmatpush2.msra.mxu0 0.0
    %609 = vmatprep.subr.mxu0 0.0
    %610 = vmatpush2.msra.mxu0 0.0
    %611 = vmatprep.subr.mxu0 0.0
    %612 = vmatpush2.msra.mxu0 0.0
    %613 = vmatprep.subr.mxu0 0.0
    %614 = vmatpush2.msra.mxu0 0.0
    %615 = vmatprep.subr.mxu0 0.0
    %616 = vmatpush2.msra.mxu0 0.0
    %617 = vmatprep.subr.mxu0 0.0
    %618 = vmatpush2.msra.mxu0 0.0
    %619 = vmatprep.subr.mxu0 0.0
    %620 = vmatpush2.msra.mxu0 %v552
    %621 = vmatprep.subr.mxu0 0.0
    %622 = vmatpush2.msra.mxu0 %v551
    %623 = vmatprep.subr.mxu0 0.0
    %624 = vmatpush2.msra.mxu0 %v550
    %625 = vmatprep.subr.mxu0 0.0
    %626 = vmatpush2.msra.mxu0 %v549
    %627 = vmatprep.subr.mxu0 0.0
    %628 = vmatpush2.msra.mxu0 %v548
    %629 = vmatprep.subr.mxu0 0.0
    %630 = vmatpush2.msra.mxu0 %v547
    %631 = vmatprep.mubr.f32.mxu0 %v562
    %632 = vmatmul.mubr.f32.gmra.mxu0 %v526
    %v633 = vpop.f32.mrf.mxu0
    %v634 = vadd.f32 %v558, %v633
    %v635 = vpop.f32.mrf.mxu0
    %636 = vmatprep.mubr.f32.mxu0 %v565
    %637 = vmatmul.mubr.f32.gmra.mxu0 %v529
    %v638 = vpop.f32.mrf.mxu0
    %v639 = vadd.f32 %v558, %v638
    %v640 = vpop.f32.mrf.mxu0
    %641 = vdwg.mxu0
    %v642 = vmul.f32 %v634, 0.01
    %v643 = vmul.f32 %v639, 0.01
    %v644 = vmax.f32 %v634, %v642
    %v645 = vmax.f32 %v639, %v643
    %v646 = vld [vmem:[#allocation12] sm:$0xff]
    %v647 = vld [vmem:[#allocation12 + $0x8] sm:$0xff]
    %v648 = vld [vmem:[#allocation12 + $0x10] sm:$0xff]
    %v649 = vld [vmem:[#allocation12 + $0x18] sm:$0xff]
    %v650 = vld [vmem:[#allocation12 + $0x20] sm:$0xff]
    %v651 = vld [vmem:[#allocation12 + $0x28] sm:$0xff]
    %v652 = vld [vmem:[#allocation12 + $0x30] sm:$0xff]
    %v653 = vld [vmem:[#allocation12 + $0x38] sm:$0xff]
    %v654 = vld [vmem:[#allocation12 + $0x40] sm:$0xff]
    %v655 = vld [vmem:[#allocation12 + $0x48] sm:$0xff]
    %v656 = vld [vmem:[#allocation14] sm:$0x1]
    %v658 = vlaneseq
    %v659 = vshrl.u32 %v658, 7
    %v660 = vsub.s32 0, %v659
    %v661 = vrot.slane %v656, %v660
    %vm663 = vcmask 654336
    %v665 = vsel %vm663, %v644, 0
    %v668 = vsel %vm663, %v645, 0
    %670 = vmatprep.subr.mxu0 0.0
    %671 = vmatpush1.msra.mxu0 0.0
    %672 = vmatprep.subr.mxu0 0.0
    %673 = vmatpush1.msra.mxu0 0.0
    %674 = vmatprep.subr.mxu0 0.0
    %675 = vmatpush1.msra.mxu0 0.0
    %676 = vmatprep.subr.mxu0 0.0
    %677 = vmatpush1.msra.mxu0 0.0
    %678 = vmatprep.subr.mxu0 0.0
    %679 = vmatpush1.msra.mxu0 0.0
    %680 = vmatprep.subr.mxu0 0.0
    %681 = vmatpush1.msra.mxu0 0.0
    %682 = vmatprep.subr.mxu0 0.0
    %683 = vmatpush1.msra.mxu0 %v655
    %684 = vmatprep.subr.mxu0 0.0
    %685 = vmatpush1.msra.mxu0 %v654
    %686 = vmatprep.subr.mxu0 0.0
    %687 = vmatpush1.msra.mxu0 %v653
    %688 = vmatprep.subr.mxu0 0.0
    %689 = vmatpush1.msra.mxu0 %v652
    %690 = vmatprep.subr.mxu0 0.0
    %691 = vmatpush1.msra.mxu0 %v651
    %692 = vmatprep.subr.mxu0 0.0
    %693 = vmatpush1.msra.mxu0 %v650
    %694 = vmatprep.subr.mxu0 0.0
    %695 = vmatpush1.msra.mxu0 %v649
    %696 = vmatprep.subr.mxu0 0.0
    %697 = vmatpush1.msra.mxu0 %v648
    %698 = vmatprep.subr.mxu0 0.0
    %699 = vmatpush1.msra.mxu0 %v647
    %700 = vmatprep.subr.mxu0 0.0
    %701 = vmatpush1.msra.mxu0 %v646
    %702 = vmatprep.subr.mxu0 0.0
    %703 = vmatpush2.msra.mxu0 0.0
    %704 = vmatprep.subr.mxu0 0.0
    %705 = vmatpush2.msra.mxu0 0.0
    %706 = vmatprep.subr.mxu0 0.0
    %707 = vmatpush2.msra.mxu0 0.0
    %708 = vmatprep.subr.mxu0 0.0
    %709 = vmatpush2.msra.mxu0 0.0
    %710 = vmatprep.subr.mxu0 0.0
    %711 = vmatpush2.msra.mxu0 0.0
    %712 = vmatprep.subr.mxu0 0.0
    %713 = vmatpush2.msra.mxu0 0.0
    %714 = vmatprep.subr.mxu0 0.0
    %715 = vmatpush2.msra.mxu0 0.0
    %716 = vmatprep.subr.mxu0 0.0
    %717 = vmatpush2.msra.mxu0 0.0
    %718 = vmatprep.subr.mxu0 0.0
    %719 = vmatpush2.msra.mxu0 0.0
    %720 = vmatprep.subr.mxu0 0.0
    %721 = vmatpush2.msra.mxu0 0.0
    %722 = vmatprep.subr.mxu0 0.0
    %723 = vmatpush2.msra.mxu0 0.0
    %724 = vmatprep.subr.mxu0 0.0
    %725 = vmatpush2.msra.mxu0 0.0
    %726 = vmatprep.subr.mxu0 0.0
    %727 = vmatpush2.msra.mxu0 0.0
    %728 = vmatprep.subr.mxu0 0.0
    %729 = vmatpush2.msra.mxu0 0.0
    %730 = vmatprep.subr.mxu0 0.0
    %731 = vmatpush2.msra.mxu0 0.0
    %732 = vmatprep.subr.mxu0 0.0
    %733 = vmatpush2.msra.mxu0 0.0
    %734 = vmatprep.mubr.f32.mxu0 0.0
    %735 = vmatmul.mubr.f32.gmra.mxu0 %v665
    %v736 = vpop.f32.mrf.mxu0
    %v737 = vadd.f32 %v661, %v736
    %v738 = vpop.f32.mrf.mxu0
    %739 = vmatprep.mubr.f32.mxu0 0.0
    %740 = vmatmul.mubr.f32.gmra.mxu0 %v668
    %v741 = vpop.f32.mrf.mxu0
    %v742 = vadd.f32 %v661, %v741
    %v743 = vpop.f32.mrf.mxu0
    %744 = vdwg.mxu0
    %v745 = vmul.f32 %v737, 0.01
    %v746 = vmul.f32 %v742, 0.01
    %v747 = vmax.f32 %v737, %v745
    %v748 = vmax.f32 %v742, %v746
    %v749 = vld [vmem:[#allocation15] sm:$0xff]
    %v750 = vld [vmem:[#allocation15 + $0x8] sm:$0xff]
    %v751 = vld [vmem:[#allocation15 + $0x10] sm:$0xff]
    %v752 = vld [vmem:[#allocation15 + $0x18] sm:$0xff]
    %v753 = vld [vmem:[#allocation15 + $0x20] sm:$0xff]
    %v754 = vld [vmem:[#allocation15 + $0x28] sm:$0xff]
    %v755 = vld [vmem:[#allocation15 + $0x30] sm:$0xff]
    %v756 = vld [vmem:[#allocation15 + $0x38] sm:$0xff]
    %v757 = vld [vmem:[#allocation15 + $0x40] sm:$0xff]
    %v758 = vld [vmem:[#allocation15 + $0x48] sm:$0xff]
    %v759 = vld [vmem:[#allocation15 + $0x50] sm:$0xff]
    %v760 = vld [vmem:[#allocation15 + $0x58] sm:$0xff]
    %v761 = vld [vmem:[#allocation15 + $0x60] sm:$0xf]
    %v762 = vld [vmem:[#allocation15 + $0x68] sm:$0xf]
    %v763 = vld [vmem:[#allocation15 + $0x70] sm:$0xf]
    %vm764 = vcmask 162816
    %v766 = vsel %vm764, %v525, 0
    %v769 = vsel %vm764, %v528, 0
    %vm771 = vcmask 1043456
    %v773 = vsel %vm771, %v761, 0
    %v776 = vsel %vm771, %v762, 0
    %v779 = vsel %vm771, %v763, 0
    %781 = vmatprep.subr.mxu0 0.0
    %782 = vmatpush1.msra.mxu0 0.0
    %783 = vmatprep.subr.mxu0 0.0
    %784 = vmatpush1.msra.mxu0 0.0
    %785 = vmatprep.subr.mxu0 0.0
    %786 = vmatpush1.msra.mxu0 0.0
    %787 = vmatprep.subr.mxu0 0.0
    %788 = vmatpush1.msra.mxu0 0.0
    %789 = vmatprep.subr.mxu0 0.0
    %790 = vmatpush1.msra.mxu0 0.0
    %791 = vmatprep.subr.mxu0 0.0
    %792 = vmatpush1.msra.mxu0 0.0
    %793 = vmatprep.subr.mxu0 0.0
    %794 = vmatpush1.msra.mxu0 0.0
    %795 = vmatprep.subr.mxu0 0.0
    %796 = vmatpush1.msra.mxu0 0.0
    %797 = vmatprep.subr.mxu0 0.0
    %798 = vmatpush1.msra.mxu0 0.0
    %799 = vmatprep.subr.mxu0 0.0
    %800 = vmatpush1.msra.mxu0 0.0
    %801 = vmatprep.subr.mxu0 0.0
    %802 = vmatpush1.msra.mxu0 0.0
    %803 = vmatprep.subr.mxu0 0.0
    %804 = vmatpush1.msra.mxu0 0.0
    %805 = vmatprep.subr.mxu0 0.0
    %806 = vmatpush1.msra.mxu0 0.0
    %807 = vmatprep.subr.mxu0 %v776
    %808 = vmatpush1.msra.mxu0 %v773
    %809 = vmatprep.subr.mxu0 %v759
    %810 = vmatpush1.msra.mxu0 %v758
    %811 = vmatprep.subr.mxu0 %v756
    %812 = vmatpush1.msra.mxu0 %v755
    %813 = vmatprep.subr.mxu0 0.0
    %814 = vmatpush2.msra.mxu0 0.0
    %815 = vmatprep.subr.mxu0 0.0
    %816 = vmatpush2.msra.mxu0 0.0
    %817 = vmatprep.subr.mxu0 0.0
    %818 = vmatpush2.msra.mxu0 0.0
    %819 = vmatprep.subr.mxu0 0.0
    %820 = vmatpush2.msra.mxu0 0.0
    %821 = vmatprep.subr.mxu0 0.0
    %822 = vmatpush2.msra.mxu0 0.0
    %823 = vmatprep.subr.mxu0 0.0
    %824 = vmatpush2.msra.mxu0 0.0
    %825 = vmatprep.subr.mxu0 0.0
    %826 = vmatpush2.msra.mxu0 0.0
    %827 = vmatprep.subr.mxu0 0.0
    %828 = vmatpush2.msra.mxu0 0.0
    %829 = vmatprep.subr.mxu0 0.0
    %830 = vmatpush2.msra.mxu0 0.0
    %831 = vmatprep.subr.mxu0 0.0
    %832 = vmatpush2.msra.mxu0 0.0
    %833 = vmatprep.subr.mxu0 0.0
    %834 = vmatpush2.msra.mxu0 0.0
    %835 = vmatprep.subr.mxu0 0.0
    %836 = vmatpush2.msra.mxu0 0.0
    %837 = vmatprep.subr.mxu0 0.0
    %838 = vmatpush2.msra.mxu0 0.0
    %839 = vmatprep.subr.mxu0 0.0
    %840 = vmatpush2.msra.mxu0 0.0
    %841 = vmatprep.subr.mxu0 0.0
    %842 = vmatpush2.msra.mxu0 0.0
    %843 = vmatprep.subr.mxu0 0.0
    %844 = vmatpush2.msra.mxu0 0.0
    %845 = vmatprep.mubr.f32.mxu0 0.0
    %846 = vmatmul.mubr.f32.gmra.mxu0 %v766
    %v847 = vpop.f32.mrf.mxu0
    %v848 = vadd.f32 0.0, %v847
    %v849 = vpop.f32.mrf.mxu0
    %v850 = vadd.f32 0.0, %v849
    %851 = vmatprep.mubr.f32.mxu0 0.0
    %852 = vmatmul.mubr.f32.gmra.mxu0 %v769
    %v853 = vpop.f32.mrf.mxu0
    %v854 = vadd.f32 0.0, %v853
    %v855 = vpop.f32.mrf.mxu0
    %v856 = vadd.f32 0.0, %v855
    %857 = vdwg.mxu0
    %858 = vmatprep.subr.mxu0 0.0
    %859 = vmatpush1.msra.mxu0 0.0
    %860 = vmatprep.subr.mxu0 0.0
    %861 = vmatpush1.msra.mxu0 0.0
    %862 = vmatprep.subr.mxu0 0.0
    %863 = vmatpush1.msra.mxu0 0.0
    %864 = vmatprep.subr.mxu0 0.0
    %865 = vmatpush1.msra.mxu0 0.0
    %866 = vmatprep.subr.mxu0 0.0
    %867 = vmatpush1.msra.mxu0 0.0
    %868 = vmatprep.subr.mxu0 0.0
    %869 = vmatpush1.msra.mxu0 0.0
    %870 = vmatprep.subr.mxu0 0.0
    %871 = vmatpush1.msra.mxu0 0.0
    %872 = vmatprep.subr.mxu0 0.0
    %873 = vmatpush1.msra.mxu0 0.0
    %874 = vmatprep.subr.mxu0 0.0
    %875 = vmatpush1.msra.mxu0 0.0
    %876 = vmatprep.subr.mxu0 0.0
    %877 = vmatpush1.msra.mxu0 0.0
    %878 = vmatprep.subr.mxu0 0.0
    %879 = vmatpush1.msra.mxu0 0.0
    %880 = vmatprep.subr.mxu0 0.0
    %881 = vmatpush1.msra.mxu0 0.0
    %882 = vmatprep.subr.mxu0 0.0
    %883 = vmatpush1.msra.mxu0 0.0
    %884 = vmatprep.subr.mxu0 0.0
    %885 = vmatpush1.msra.mxu0 %v779
    %886 = vmatprep.subr.mxu0 0.0
    %887 = vmatpush1.msra.mxu0 %v760
    %888 = vmatprep.subr.mxu0 0.0
    %889 = vmatpush1.msra.mxu0 %v757
    %890 = vmatprep.subr.mxu0 0.0
    %891 = vmatpush2.msra.mxu0 0.0
    %892 = vmatprep.subr.mxu0 0.0
    %893 = vmatpush2.msra.mxu0 0.0
    %894 = vmatprep.subr.mxu0 0.0
    %895 = vmatpush2.msra.mxu0 0.0
    %896 = vmatprep.subr.mxu0 0.0
    %897 = vmatpush2.msra.mxu0 0.0
    %898 = vmatprep.subr.mxu0 0.0
    %899 = vmatpush2.msra.mxu0 0.0
    %900 = vmatprep.subr.mxu0 0.0
    %901 = vmatpush2.msra.mxu0 0.0
    %902 = vmatprep.subr.mxu0 0.0
    %903 = vmatpush2.msra.mxu0 0.0
    %904 = vmatprep.subr.mxu0 0.0
    %905 = vmatpush2.msra.mxu0 0.0
    %906 = vmatprep.subr.mxu0 0.0
    %907 = vmatpush2.msra.mxu0 0.0
    %908 = vmatprep.subr.mxu0 0.0
    %909 = vmatpush2.msra.mxu0 0.0
    %910 = vmatprep.subr.mxu0 0.0
    %911 = vmatpush2.msra.mxu0 0.0
    %912 = vmatprep.subr.mxu0 0.0
    %913 = vmatpush2.msra.mxu0 0.0
    %914 = vmatprep.subr.mxu0 0.0
    %915 = vmatpush2.msra.mxu0 0.0
    %916 = vmatprep.subr.mxu0 0.0
    %917 = vmatpush2.msra.mxu0 0.0
    %918 = vmatprep.subr.mxu0 0.0
    %919 = vmatpush2.msra.mxu0 0.0
    %920 = vmatprep.subr.mxu0 0.0
    %921 = vmatpush2.msra.mxu0 0.0
    %922 = vmatprep.mubr.f32.mxu0 0.0
    %923 = vmatmul.mubr.f32.gmra.mxu0 %v766
    %v924 = vpop.f32.mrf.mxu0
    %v925 = vadd.f32 0.0, %v924
    %v926 = vpop.f32.mrf.mxu0
    %927 = vmatprep.mubr.f32.mxu0 0.0
    %928 = vmatmul.mubr.f32.gmra.mxu0 %v769
    %v929 = vpop.f32.mrf.mxu0
    %v930 = vadd.f32 0.0, %v929
    %v931 = vpop.f32.mrf.mxu0
    %932 = vdwg.mxu0
    %vm933 = vcmask 130048
    %v935 = vsel %vm933, %v747, 0
    %v938 = vsel %vm933, %v748, 0
    %940 = vmatprep.subr.mxu0 0.0
    %941 = vmatpush1.msra.mxu0 0.0
    %942 = vmatprep.subr.mxu0 0.0
    %943 = vmatpush1.msra.mxu0 0.0
    %944 = vmatprep.subr.mxu0 0.0
    %945 = vmatpush1.msra.mxu0 0.0
    %946 = vmatprep.subr.mxu0 0.0
    %947 = vmatpush1.msra.mxu0 0.0
    %948 = vmatprep.subr.mxu0 0.0
    %949 = vmatpush1.msra.mxu0 0.0
    %950 = vmatprep.subr.mxu0 0.0
    %951 = vmatpush1.msra.mxu0 0.0
    %952 = vmatprep.subr.mxu0 0.0
    %953 = vmatpush1.msra.mxu0 0.0
    %954 = vmatprep.subr.mxu0 0.0
    %955 = vmatpush1.msra.mxu0 0.0
    %956 = vmatprep.subr.mxu0 0.0
    %957 = vmatpush1.msra.mxu0 0.0
    %958 = vmatprep.subr.mxu0 0.0
    %959 = vmatpush1.msra.mxu0 0.0
    %960 = vmatprep.subr.mxu0 0.0
    %961 = vmatpush1.msra.mxu0 0.0
    %962 = vmatprep.subr.mxu0 0.0
    %963 = vmatpush1.msra.mxu0 0.0
    %964 = vmatprep.subr.mxu0 0.0
    %965 = vmatpush1.msra.mxu0 0.0
    %966 = vmatprep.subr.mxu0 0.0
    %967 = vmatpush1.msra.mxu0 0.0
    %968 = vmatprep.subr.mxu0 %v753
    %969 = vmatpush1.msra.mxu0 %v752
    %970 = vmatprep.subr.mxu0 %v750
    %971 = vmatpush1.msra.mxu0 %v749
    %972 = vmatprep.subr.mxu0 0.0
    %973 = vmatpush2.msra.mxu0 0.0
    %974 = vmatprep.subr.mxu0 0.0
    %975 = vmatpush2.msra.mxu0 0.0
    %976 = vmatprep.subr.mxu0 0.0
    %977 = vmatpush2.msra.mxu0 0.0
    %978 = vmatprep.subr.mxu0 0.0
    %979 = vmatpush2.msra.mxu0 0.0
    %980 = vmatprep.subr.mxu0 0.0
    %981 = vmatpush2.msra.mxu0 0.0
    %982 = vmatprep.subr.mxu0 0.0
    %983 = vmatpush2.msra.mxu0 0.0
    %984 = vmatprep.subr.mxu0 0.0
    %985 = vmatpush2.msra.mxu0 0.0
    %986 = vmatprep.subr.mxu0 0.0
    %987 = vmatpush2.msra.mxu0 0.0
    %988 = vmatprep.subr.mxu0 0.0
    %989 = vmatpush2.msra.mxu0 0.0
    %990 = vmatprep.subr.mxu0 0.0
    %991 = vmatpush2.msra.mxu0 0.0
    %992 = vmatprep.subr.mxu0 0.0
    %993 = vmatpush2.msra.mxu0 0.0
    %994 = vmatprep.subr.mxu0 0.0
    %995 = vmatpush2.msra.mxu0 0.0
    %996 = vmatprep.subr.mxu0 0.0
    %997 = vmatpush2.msra.mxu0 0.0
    %998 = vmatprep.subr.mxu0 0.0
    %999 = vmatpush2.msra.mxu0 0.0
    %1000 = vmatprep.subr.mxu0 0.0
    %1001 = vmatpush2.msra.mxu0 0.0
    %1002 = vmatprep.subr.mxu0 0.0
    %1003 = vmatpush2.msra.mxu0 0.0
    %1004 = vmatprep.mubr.f32.mxu0 0.0
    %1005 = vmatmul.mubr.f32.gmra.mxu0 %v935
    %v1006 = vpop.f32.mrf.mxu0
    %v1007 = vadd.f32 %v848, %v1006
    %v1008 = vpop.f32.mrf.mxu0
    %v1009 = vadd.f32 %v850, %v1008
    %1010 = vmatprep.mubr.f32.mxu0 0.0
    %1011 = vmatmul.mubr.f32.gmra.mxu0 %v938
    %v1012 = vpop.f32.mrf.mxu0
    %v1013 = vadd.f32 %v854, %v1012
    %v1014 = vpop.f32.mrf.mxu0
    %v1015 = vadd.f32 %v856, %v1014
    %1016 = vdwg.mxu0
    %1017 = vmatprep.subr.mxu0 0.0
    %1018 = vmatpush1.msra.mxu0 0.0
    %1019 = vmatprep.subr.mxu0 0.0
    %1020 = vmatpush1.msra.mxu0 0.0
    %1021 = vmatprep.subr.mxu0 0.0
    %1022 = vmatpush1.msra.mxu0 0.0
    %1023 = vmatprep.subr.mxu0 0.0
    %1024 = vmatpush1.msra.mxu0 0.0
    %1025 = vmatprep.subr.mxu0 0.0
    %1026 = vmatpush1.msra.mxu0 0.0
    %1027 = vmatprep.subr.mxu0 0.0
    %1028 = vmatpush1.msra.mxu0 0.0
    %1029 = vmatprep.subr.mxu0 0.0
    %1030 = vmatpush1.msra.mxu0 0.0
    %1031 = vmatprep.subr.mxu0 0.0
    %1032 = vmatpush1.msra.mxu0 0.0
    %1033 = vmatprep.subr.mxu0 0.0
    %1034 = vmatpush1.msra.mxu0 0.0
    %1035 = vmatprep.subr.mxu0 0.0
    %1036 = vmatpush1.msra.mxu0 0.0
    %1037 = vmatprep.subr.mxu0 0.0
    %1038 = vmatpush1.msra.mxu0 0.0
    %1039 = vmatprep.subr.mxu0 0.0
    %1040 = vmatpush1.msra.mxu0 0.0
    %1041 = vmatprep.subr.mxu0 0.0
    %1042 = vmatpush1.msra.mxu0 0.0
    %1043 = vmatprep.subr.mxu0 0.0
    %1044 = vmatpush1.msra.mxu0 0.0
    %1045 = vmatprep.subr.mxu0 0.0
    %1046 = vmatpush1.msra.mxu0 %v754
    %1047 = vmatprep.subr.mxu0 0.0
    %1048 = vmatpush1.msra.mxu0 %v751
    %1049 = vmatprep.subr.mxu0 0.0
    %1050 = vmatpush2.msra.mxu0 0.0
    %1051 = vmatprep.subr.mxu0 0.0
    %1052 = vmatpush2.msra.mxu0 0.0
    %1053 = vmatprep.subr.mxu0 0.0
    %1054 = vmatpush2.msra.mxu0 0.0
    %1055 = vmatprep.subr.mxu0 0.0
    %1056 = vmatpush2.msra.mxu0 0.0
    %1057 = vmatprep.subr.mxu0 0.0
    %1058 = vmatpush2.msra.mxu0 0.0
    %1059 = vmatprep.subr.mxu0 0.0
    %1060 = vmatpush2.msra.mxu0 0.0
    %1061 = vmatprep.subr.mxu0 0.0
    %1062 = vmatpush2.msra.mxu0 0.0
    %1063 = vmatprep.subr.mxu0 0.0
    %1064 = vmatpush2.msra.mxu0 0.0
    %1065 = vmatprep.subr.mxu0 0.0
    %1066 = vmatpush2.msra.mxu0 0.0
    %1067 = vmatprep.subr.mxu0 0.0
    %1068 = vmatpush2.msra.mxu0 0.0
    %1069 = vmatprep.subr.mxu0 0.0
    %1070 = vmatpush2.msra.mxu0 0.0
    %1071 = vmatprep.subr.mxu0 0.0
    %1072 = vmatpush2.msra.mxu0 0.0
    %1073 = vmatprep.subr.mxu0 0.0
    %1074 = vmatpush2.msra.mxu0 0.0
    %1075 = vmatprep.subr.mxu0 0.0
    %1076 = vmatpush2.msra.mxu0 0.0
    %1077 = vmatprep.subr.mxu0 0.0
    %1078 = vmatpush2.msra.mxu0 0.0
    %1079 = vmatprep.subr.mxu0 0.0
    %1080 = vmatpush2.msra.mxu0 0.0
    %1081 = vmatprep.mubr.f32.mxu0 0.0
    %1082 = vmatmul.mubr.f32.gmra.mxu0 %v935
    %v1083 = vpop.f32.mrf.mxu0
    %v1084 = vadd.f32 %v925, %v1083
    %v1085 = vpop.f32.mrf.mxu0
    %1086 = vmatprep.mubr.f32.mxu0 0.0
    %1087 = vmatmul.mubr.f32.gmra.mxu0 %v938
    %v1088 = vpop.f32.mrf.mxu0
    %v1089 = vadd.f32 %v930, %v1088
    %v1090 = vpop.f32.mrf.mxu0
    %1091 = vdwg.mxu0
    %v1092 = vld [vmem:[#allocation17] sm:$0x7]
    %v1094 = vlaneseq
    %v1095 = vshrl.u32 %v1094, 7
    %v1096 = vsub.s32 0, %v1095
    %v1097 = vrot.slane %v1092, %v1096
    %v1098 = vlaneseq
    %v1099 = vshrl.u32 %v1098, 7
    %v1100 = vsub.s32 1, %v1099
    %v1101 = vrot.slane %v1092, %v1100
    %v1102 = vlaneseq
    %v1103 = vshrl.u32 %v1102, 7
    %v1104 = vsub.s32 2, %v1103
    %v1105 = vrot.slane %v1092, %v1104
    %v1109 = vadd.f32 %v1007, %v1097
    %v1110 = vadd.f32 %v1009, %v1101
    %v1111 = vadd.f32 %v1084, %v1105
    %v1112 = vadd.f32 %v1013, %v1097
    %v1113 = vadd.f32 %v1015, %v1101
    %v1114 = vadd.f32 %v1089, %v1105
    %v1115 = vld [vmem:[%s10] sm:$0xff]
    %v1116 = vld [vmem:[%s10 + $0x8] sm:$0xff]
    %v1117 = vld [vmem:[%s10 + $0x10] sm:$0xff]
    %v1118 = vld [vmem:[%s10 + $0x18] sm:$0xff]
    %v1119 = vld [vmem:[%s10 + $0x20] sm:$0xff]
    %v1120 = vld [vmem:[%s10 + $0x28] sm:$0xff]
    %v1121 = vld [vmem:[%s10 + $0x30] sm:$0xff]
    %v1122 = vld [vmem:[%s10 + $0x38] sm:$0xff]
    %v1123 = vld [vmem:[%s10 + $0x40] sm:$0xff]
    %v1124 = vld [vmem:[%s10 + $0x48] sm:$0xff]
    %v1125 = vld [vmem:[%s10 + $0x50] sm:$0xff]
    %v1126 = vld [vmem:[%s10 + $0x58] sm:$0xff]
    %v1127 = vld [vmem:[%s10 + $0x60] sm:$0xf]
    %v1128 = vld [vmem:[%s10 + $0x68] sm:$0xf]
    %v1129 = vld [vmem:[%s10 + $0x70] sm:$0xf]
    %v1130 = vld [vmem:[%s11] sm:$0x7]
    %v1132 = vlaneseq
    %v1133 = vshrl.u32 %v1132, 7
    %v1134 = vsub.s32 0, %v1133
    %v1135 = vrot.slane %v1130, %v1134
    %v1136 = vlaneseq
    %v1137 = vshrl.u32 %v1136, 7
    %v1138 = vsub.s32 1, %v1137
    %v1139 = vrot.slane %v1130, %v1138
    %v1140 = vlaneseq
    %v1141 = vshrl.u32 %v1140, 7
    %v1142 = vsub.s32 2, %v1141
    %v1143 = vrot.slane %v1130, %v1142
    %vm1147 = vcmask 293888
    %v1149 = vsel %vm1147, 0.0, 0
    %v1152 = vsel %vm771, %v1127, 0
    %v1155 = vsel %vm771, %v1128, 0
    %v1158 = vsel %vm771, %v1129, 0
    %1160 = vmatprep.subr.mxu0 0.0
    %1161 = vmatpush1.msra.mxu0 0.0
    %1162 = vmatprep.subr.mxu0 0.0
    %1163 = vmatpush1.msra.mxu0 0.0
    %1164 = vmatprep.subr.mxu0 0.0
    %1165 = vmatpush1.msra.mxu0 0.0
    %1166 = vmatprep.subr.mxu0 0.0
    %1167 = vmatpush1.msra.mxu0 0.0
    %1168 = vmatprep.subr.mxu0 0.0
    %1169 = vmatpush1.msra.mxu0 0.0
    %1170 = vmatprep.subr.mxu0 0.0
    %1171 = vmatpush1.msra.mxu0 0.0
    %1172 = vmatprep.subr.mxu0 0.0
    %1173 = vmatpush1.msra.mxu0 0.0
    %1174 = vmatprep.subr.mxu0 0.0
    %1175 = vmatpush1.msra.mxu0 0.0
    %1176 = vmatprep.subr.mxu0 0.0
    %1177 = vmatpush1.msra.mxu0 0.0
    %1178 = vmatprep.subr.mxu0 0.0
    %1179 = vmatpush1.msra.mxu0 0.0
    %1180 = vmatprep.subr.mxu0 0.0
    %1181 = vmatpush1.msra.mxu0 0.0
    %1182 = vmatprep.subr.mxu0 %v1155
    %1183 = vmatpush1.msra.mxu0 %v1152
    %1184 = vmatprep.subr.mxu0 %v1125
    %1185 = vmatpush1.msra.mxu0 %v1124
    %1186 = vmatprep.subr.mxu0 %v1122
    %1187 = vmatpush1.msra.mxu0 %v1121
    %1188 = vmatprep.subr.mxu0 %v1119
    %1189 = vmatpush1.msra.mxu0 %v1118
    %1190 = vmatprep.subr.mxu0 %v1116
    %1191 = vmatpush1.msra.mxu0 %v1115
    %1192 = vmatprep.subr.mxu0 0.0
    %1193 = vmatpush2.msra.mxu0 0.0
    %1194 = vmatprep.subr.mxu0 0.0
    %1195 = vmatpush2.msra.mxu0 0.0
    %1196 = vmatprep.subr.mxu0 0.0
    %1197 = vmatpush2.msra.mxu0 0.0
    %1198 = vmatprep.subr.mxu0 0.0
    %1199 = vmatpush2.msra.mxu0 0.0
    %1200 = vmatprep.subr.mxu0 0.0
    %1201 = vmatpush2.msra.mxu0 0.0
    %1202 = vmatprep.subr.mxu0 0.0
    %1203 = vmatpush2.msra.mxu0 0.0
    %1204 = vmatprep.subr.mxu0 0.0
    %1205 = vmatpush2.msra.mxu0 0.0
    %1206 = vmatprep.subr.mxu0 0.0
    %1207 = vmatpush2.msra.mxu0 0.0
    %1208 = vmatprep.subr.mxu0 0.0
    %1209 = vmatpush2.msra.mxu0 0.0
    %1210 = vmatprep.subr.mxu0 0.0
    %1211 = vmatpush2.msra.mxu0 0.0
    %1212 = vmatprep.subr.mxu0 0.0
    %1213 = vmatpush2.msra.mxu0 0.0
    %1214 = vmatprep.subr.mxu0 0.0
    %1215 = vmatpush2.msra.mxu0 0.0
    %1216 = vmatprep.subr.mxu0 0.0
    %1217 = vmatpush2.msra.mxu0 0.0
    %1218 = vmatprep.subr.mxu0 0.0
    %1219 = vmatpush2.msra.mxu0 0.0
    %1220 = vmatprep.subr.mxu0 0.0
    %1221 = vmatpush2.msra.mxu0 0.0
    %1222 = vmatprep.subr.mxu0 0.0
    %1223 = vmatpush2.msra.mxu0 0.0
    %1224 = vmatprep.mubr.f32.mxu0 0.0
    %1225 = vmatmul.mubr.f32.gmra.mxu0 %v1149
    %v1226 = vpop.f32.mrf.mxu0
    %v1227 = vadd.f32 %v1135, %v1226
    %v1228 = vpop.f32.mrf.mxu0
    %v1229 = vadd.f32 %v1139, %v1228
    %1230 = vdwg.mxu0
    %1231 = vmatprep.subr.mxu0 0.0
    %1232 = vmatpush1.msra.mxu0 0.0
    %1233 = vmatprep.subr.mxu0 0.0
    %1234 = vmatpush1.msra.mxu0 0.0
    %1235 = vmatprep.subr.mxu0 0.0
    %1236 = vmatpush1.msra.mxu0 0.0
    %1237 = vmatprep.subr.mxu0 0.0
    %1238 = vmatpush1.msra.mxu0 0.0
    %1239 = vmatprep.subr.mxu0 0.0
    %1240 = vmatpush1.msra.mxu0 0.0
    %1241 = vmatprep.subr.mxu0 0.0
    %1242 = vmatpush1.msra.mxu0 0.0
    %1243 = vmatprep.subr.mxu0 0.0
    %1244 = vmatpush1.msra.mxu0 0.0
    %1245 = vmatprep.subr.mxu0 0.0
    %1246 = vmatpush1.msra.mxu0 0.0
    %1247 = vmatprep.subr.mxu0 0.0
    %1248 = vmatpush1.msra.mxu0 0.0
    %1249 = vmatprep.subr.mxu0 0.0
    %1250 = vmatpush1.msra.mxu0 0.0
    %1251 = vmatprep.subr.mxu0 0.0
    %1252 = vmatpush1.msra.mxu0 0.0
    %1253 = vmatprep.subr.mxu0 0.0
    %1254 = vmatpush1.msra.mxu0 %v1158
    %1255 = vmatprep.subr.mxu0 0.0
    %1256 = vmatpush1.msra.mxu0 %v1126
    %1257 = vmatprep.subr.mxu0 0.0
    %1258 = vmatpush1.msra.mxu0 %v1123
    %1259 = vmatprep.subr.mxu0 0.0
    %1260 = vmatpush1.msra.mxu0 %v1120
    %1261 = vmatprep.subr.mxu0 0.0
    %1262 = vmatpush1.msra.mxu0 %v1117
    %1263 = vmatprep.subr.mxu0 0.0
    %1264 = vmatpush2.msra.mxu0 0.0
    %1265 = vmatprep.subr.mxu0 0.0
    %1266 = vmatpush2.msra.mxu0 0.0
    %1267 = vmatprep.subr.mxu0 0.0
    %1268 = vmatpush2.msra.mxu0 0.0
    %1269 = vmatprep.subr.mxu0 0.0
    %1270 = vmatpush2.msra.mxu0 0.0
    %1271 = vmatprep.subr.mxu0 0.0
    %1272 = vmatpush2.msra.mxu0 0.0
    %1273 = vmatprep.subr.mxu0 0.0
    %1274 = vmatpush2.msra.mxu0 0.0
    %1275 = vmatprep.subr.mxu0 0.0
    %1276 = vmatpush2.msra.mxu0 0.0
    %1277 = vmatprep.subr.mxu0 0.0
    %1278 = vmatpush2.msra.mxu0 0.0
    %1279 = vmatprep.subr.mxu0 0.0
    %1280 = vmatpush2.msra.mxu0 0.0
    %1281 = vmatprep.subr.mxu0 0.0
    %1282 = vmatpush2.msra.mxu0 0.0
    %1283 = vmatprep.subr.mxu0 0.0
    %1284 = vmatpush2.msra.mxu0 0.0
    %1285 = vmatprep.subr.mxu0 0.0
    %1286 = vmatpush2.msra.mxu0 0.0
    %1287 = vmatprep.subr.mxu0 0.0
    %1288 = vmatpush2.msra.mxu0 0.0
    %1289 = vmatprep.subr.mxu0 0.0
    %1290 = vmatpush2.msra.mxu0 0.0
    %1291 = vmatprep.subr.mxu0 0.0
    %1292 = vmatpush2.msra.mxu0 0.0
    %1293 = vmatprep.subr.mxu0 0.0
    %1294 = vmatpush2.msra.mxu0 0.0
    %1295 = vmatprep.mubr.f32.mxu0 0.0
    %1296 = vmatmul.mubr.f32.gmra.mxu0 %v1149
    %v1297 = vpop.f32.mrf.mxu0
    %v1298 = vadd.f32 %v1143, %v1297
    %v1299 = vpop.f32.mrf.mxu0
    %1300 = vdwg.mxu0
    %v1301 = vadd.f32 %v1109, %v1227
    %v1302 = vxor.u32 %v1301, 2147483648
    %v1303 = vmul.f32 %v1302, 1.442695
    %v1304 = vpow.pop %v1303
    %v1305 = vadd.f32 %v1304, 1.0
    %v1306 = vrcp.pop %v1305
    %v1307 = vmul.f32 1.0, %v1306
    %v1308 = vadd.f32 %v1110, %v1229
    %v1309 = vxor.u32 %v1308, 2147483648
    %v1310 = vmul.f32 %v1309, 1.442695
    %v1311 = vpow.pop %v1310
    %v1312 = vadd.f32 %v1311, 1.0
    %v1313 = vrcp.pop %v1312
    %v1314 = vmul.f32 1.0, %v1313
    %v1315 = vmul.f32 %v1307, %v1298
    %v1316 = vadd.f32 %v1111, %v1315
    %v1317 = vtanh.pop %v1316
    %v1318 = vsub.f32 1.0, %v1314
    %v1319 = vmul.f32 %v1318, %v1317
    %v1320 = vmul.f32 %v1314, 0.0
    %v1321 = vadd.f32 %v1319, %v1320
    %v1323 = vsel %vm1147, %v1321, 0
    %1325 = vmatprep.subr.mxu0 0.0
    %1326 = vmatpush1.msra.mxu0 0.0
    %1327 = vmatprep.subr.mxu0 0.0
    %1328 = vmatpush1.msra.mxu0 0.0
    %1329 = vmatprep.subr.mxu0 0.0
    %1330 = vmatpush1.msra.mxu0 0.0
    %1331 = vmatprep.subr.mxu0 0.0
    %1332 = vmatpush1.msra.mxu0 0.0
    %1333 = vmatprep.subr.mxu0 0.0
    %1334 = vmatpush1.msra.mxu0 0.0
    %1335 = vmatprep.subr.mxu0 0.0
    %1336 = vmatpush1.msra.mxu0 0.0
    %1337 = vmatprep.subr.mxu0 0.0
    %1338 = vmatpush1.msra.mxu0 0.0
    %1339 = vmatprep.subr.mxu0 0.0
    %1340 = vmatpush1.msra.mxu0 0.0
    %1341 = vmatprep.subr.mxu0 0.0
    %1342 = vmatpush1.msra.mxu0 0.0
    %1343 = vmatprep.subr.mxu0 0.0
    %1344 = vmatpush1.msra.mxu0 0.0
    %1345 = vmatprep.subr.mxu0 0.0
    %1346 = vmatpush1.msra.mxu0 0.0
    %1347 = vmatprep.subr.mxu0 %v1155
    %1348 = vmatpush1.msra.mxu0 %v1152
    %1349 = vmatprep.subr.mxu0 %v1125
    %1350 = vmatpush1.msra.mxu0 %v1124
    %1351 = vmatprep.subr.mxu0 %v1122
    %1352 = vmatpush1.msra.mxu0 %v1121
    %1353 = vmatprep.subr.mxu0 %v1119
    %1354 = vmatpush1.msra.mxu0 %v1118
    %1355 = vmatprep.subr.mxu0 %v1116
    %1356 = vmatpush1.msra.mxu0 %v1115
    %1357 = vmatprep.subr.mxu0 0.0
    %1358 = vmatpush2.msra.mxu0 0.0
    %1359 = vmatprep.subr.mxu0 0.0
    %1360 = vmatpush2.msra.mxu0 0.0
    %1361 = vmatprep.subr.mxu0 0.0
    %1362 = vmatpush2.msra.mxu0 0.0
    %1363 = vmatprep.subr.mxu0 0.0
    %1364 = vmatpush2.msra.mxu0 0.0
    %1365 = vmatprep.subr.mxu0 0.0
    %1366 = vmatpush2.msra.mxu0 0.0
    %1367 = vmatprep.subr.mxu0 0.0
    %1368 = vmatpush2.msra.mxu0 0.0
    %1369 = vmatprep.subr.mxu0 0.0
    %1370 = vmatpush2.msra.mxu0 0.0
    %1371 = vmatprep.subr.mxu0 0.0
    %1372 = vmatpush2.msra.mxu0 0.0
    %1373 = vmatprep.subr.mxu0 0.0
    %1374 = vmatpush2.msra.mxu0 0.0
    %1375 = vmatprep.subr.mxu0 0.0
    %1376 = vmatpush2.msra.mxu0 0.0
    %1377 = vmatprep.subr.mxu0 0.0
    %1378 = vmatpush2.msra.mxu0 0.0
    %1379 = vmatprep.subr.mxu0 0.0
    %1380 = vmatpush2.msra.mxu0 0.0
    %1381 = vmatprep.subr.mxu0 0.0
    %1382 = vmatpush2.msra.mxu0 0.0
    %1383 = vmatprep.subr.mxu0 0.0
    %1384 = vmatpush2.msra.mxu0 0.0
    %1385 = vmatprep.subr.mxu0 0.0
    %1386 = vmatpush2.msra.mxu0 0.0
    %1387 = vmatprep.subr.mxu0 0.0
    %1388 = vmatpush2.msra.mxu0 0.0
    %1389 = vmatprep.mubr.f32.mxu0 0.0
    %1390 = vmatmul.mubr.f32.gmra.mxu0 %v1323
    %v1391 = vpop.f32.mrf.mxu0
    %v1392 = vadd.f32 %v1135, %v1391
    %v1393 = vpop.f32.mrf.mxu0
    %v1394 = vadd.f32 %v1139, %v1393
    %1395 = vdwg.mxu0
    %1396 = vmatprep.subr.mxu0 0.0
    %1397 = vmatpush1.msra.mxu0 0.0
    %1398 = vmatprep.subr.mxu0 0.0
    %1399 = vmatpush1.msra.mxu0 0.0
    %1400 = vmatprep.subr.mxu0 0.0
    %1401 = vmatpush1.msra.mxu0 0.0
    %1402 = vmatprep.subr.mxu0 0.0
    %1403 = vmatpush1.msra.mxu0 0.0
    %1404 = vmatprep.subr.mxu0 0.0
    %1405 = vmatpush1.msra.mxu0 0.0
    %1406 = vmatprep.subr.mxu0 0.0
    %1407 = vmatpush1.msra.mxu0 0.0
    %1408 = vmatprep.subr.mxu0 0.0
    %1409 = vmatpush1.msra.mxu0 0.0
    %1410 = vmatprep.subr.mxu0 0.0
    %1411 = vmatpush1.msra.mxu0 0.0
    %1412 = vmatprep.subr.mxu0 0.0
    %1413 = vmatpush1.msra.mxu0 0.0
    %1414 = vmatprep.subr.mxu0 0.0
    %1415 = vmatpush1.msra.mxu0 0.0
    %1416 = vmatprep.subr.mxu0 0.0
    %1417 = vmatpush1.msra.mxu0 0.0
    %1418 = vmatprep.subr.mxu0 0.0
    %1419 = vmatpush1.msra.mxu0 %v1158
    %1420 = vmatprep.subr.mxu0 0.0
    %1421 = vmatpush1.msra.mxu0 %v1126
    %1422 = vmatprep.subr.mxu0 0.0
    %1423 = vmatpush1.msra.mxu0 %v1123
    %1424 = vmatprep.subr.mxu0 0.0
    %1425 = vmatpush1.msra.mxu0 %v1120
    %1426 = vmatprep.subr.mxu0 0.0
    %1427 = vmatpush1.msra.mxu0 %v1117
    %1428 = vmatprep.subr.mxu0 0.0
    %1429 = vmatpush2.msra.mxu0 0.0
    %1430 = vmatprep.subr.mxu0 0.0
    %1431 = vmatpush2.msra.mxu0 0.0
    %1432 = vmatprep.subr.mxu0 0.0
    %1433 = vmatpush2.msra.mxu0 0.0
    %1434 = vmatprep.subr.mxu0 0.0
    %1435 = vmatpush2.msra.mxu0 0.0
    %1436 = vmatprep.subr.mxu0 0.0
    %1437 = vmatpush2.msra.mxu0 0.0
    %1438 = vmatprep.subr.mxu0 0.0
    %1439 = vmatpush2.msra.mxu0 0.0
    %1440 = vmatprep.subr.mxu0 0.0
    %1441 = vmatpush2.msra.mxu0 0.0
    %1442 = vmatprep.subr.mxu0 0.0
    %1443 = vmatpush2.msra.mxu0 0.0
    %1444 = vmatprep.subr.mxu0 0.0
    %1445 = vmatpush2.msra.mxu0 0.0
    %1446 = vmatprep.subr.mxu0 0.0
    %1447 = vmatpush2.msra.mxu0 0.0
    %1448 = vmatprep.subr.mxu0 0.0
    %1449 = vmatpush2.msra.mxu0 0.0
    %1450 = vmatprep.subr.mxu0 0.0
    %1451 = vmatpush2.msra.mxu0 0.0
    %1452 = vmatprep.subr.mxu0 0.0
    %1453 = vmatpush2.msra.mxu0 0.0
    %1454 = vmatprep.subr.mxu0 0.0
    %1455 = vmatpush2.msra.mxu0 0.0
    %1456 = vmatprep.subr.mxu0 0.0
    %1457 = vmatpush2.msra.mxu0 0.0
    %1458 = vmatprep.subr.mxu0 0.0
    %1459 = vmatpush2.msra.mxu0 0.0
    %1460 = vmatprep.mubr.f32.mxu0 0.0
    %1461 = vmatmul.mubr.f32.gmra.mxu0 %v1323
    %v1462 = vpop.f32.mrf.mxu0
    %v1463 = vadd.f32 %v1143, %v1462
    %v1464 = vpop.f32.mrf.mxu0
    %1465 = vdwg.mxu0
    %v1467 = vrot.slane %v1392, 6
    %v1469 = vadd.f32 %v1109, %v1467
    %v1470 = vxor.u32 %v1469, 2147483648
    %v1471 = vmul.f32 %v1470, 1.442695
    %v1472 = vpow.pop %v1471
    %v1473 = vadd.f32 %v1472, 1.0
    %v1474 = vrcp.pop %v1473
    %v1475 = vmul.f32 1.0, %v1474
    %v1477 = vrot.slane %v1394, 6
    %v1479 = vadd.f32 %v1110, %v1477
    %v1480 = vxor.u32 %v1479, 2147483648
    %v1481 = vmul.f32 %v1480, 1.442695
    %v1482 = vpow.pop %v1481
    %v1483 = vadd.f32 %v1482, 1.0
    %v1484 = vrcp.pop %v1483
    %v1485 = vmul.f32 1.0, %v1484
    %v1487 = vrot.slane %v1463, 6
    %v1489 = vmul.f32 %v1475, %v1487
    %v1490 = vadd.f32 %v1111, %v1489
    %v1491 = vtanh.pop %v1490
    %v1492 = vsub.f32 1.0, %v1485
    %v1493 = vmul.f32 %v1492, %v1491
    %v1494 = vrot.slane %v1321, 6
    %v1496 = vmul.f32 %v1485, %v1494
    %v1497 = vadd.f32 %v1493, %v1496
    %v1499 = vrot.slane %v1497, 2
    %v1500 = vsel %vm1147, %v1499, 0
    %1502 = vmatprep.subr.mxu0 0.0
    %1503 = vmatpush1.msra.mxu0 0.0
    %1504 = vmatprep.subr.mxu0 0.0
    %1505 = vmatpush1.msra.mxu0 0.0
    %1506 = vmatprep.subr.mxu0 0.0
    %1507 = vmatpush1.msra.mxu0 0.0
    %1508 = vmatprep.subr.mxu0 0.0
    %1509 = vmatpush1.msra.mxu0 0.0
    %1510 = vmatprep.subr.mxu0 0.0
    %1511 = vmatpush1.msra.mxu0 0.0
    %1512 = vmatprep.subr.mxu0 0.0
    %1513 = vmatpush1.msra.mxu0 0.0
    %1514 = vmatprep.subr.mxu0 0.0
    %1515 = vmatpush1.msra.mxu0 0.0
    %1516 = vmatprep.subr.mxu0 0.0
    %1517 = vmatpush1.msra.mxu0 0.0
    %1518 = vmatprep.subr.mxu0 0.0
    %1519 = vmatpush1.msra.mxu0 0.0
    %1520 = vmatprep.subr.mxu0 0.0
    %1521 = vmatpush1.msra.mxu0 0.0
    %1522 = vmatprep.subr.mxu0 0.0
    %1523 = vmatpush1.msra.mxu0 0.0
    %1524 = vmatprep.subr.mxu0 %v1155
    %1525 = vmatpush1.msra.mxu0 %v1152
    %1526 = vmatprep.subr.mxu0 %v1125
    %1527 = vmatpush1.msra.mxu0 %v1124
    %1528 = vmatprep.subr.mxu0 %v1122
    %1529 = vmatpush1.msra.mxu0 %v1121
    %1530 = vmatprep.subr.mxu0 %v1119
    %1531 = vmatpush1.msra.mxu0 %v1118
    %1532 = vmatprep.subr.mxu0 %v1116
    %1533 = vmatpush1.msra.mxu0 %v1115
    %1534 = vmatprep.subr.mxu0 0.0
    %1535 = vmatpush2.msra.mxu0 0.0
    %1536 = vmatprep.subr.mxu0 0.0
    %1537 = vmatpush2.msra.mxu0 0.0
    %1538 = vmatprep.subr.mxu0 0.0
    %1539 = vmatpush2.msra.mxu0 0.0
    %1540 = vmatprep.subr.mxu0 0.0
    %1541 = vmatpush2.msra.mxu0 0.0
    %1542 = vmatprep.subr.mxu0 0.0
    %1543 = vmatpush2.msra.mxu0 0.0
    %1544 = vmatprep.subr.mxu0 0.0
    %1545 = vmatpush2.msra.mxu0 0.0
    %1546 = vmatprep.subr.mxu0 0.0
    %1547 = vmatpush2.msra.mxu0 0.0
    %1548 = vmatprep.subr.mxu0 0.0
    %1549 = vmatpush2.msra.mxu0 0.0
    %1550 = vmatprep.subr.mxu0 0.0
    %1551 = vmatpush2.msra.mxu0 0.0
    %1552 = vmatprep.subr.mxu0 0.0
    %1553 = vmatpush2.msra.mxu0 0.0
    %1554 = vmatprep.subr.mxu0 0.0
    %1555 = vmatpush2.msra.mxu0 0.0
    %1556 = vmatprep.subr.mxu0 0.0
    %1557 = vmatpush2.msra.mxu0 0.0
    %1558 = vmatprep.subr.mxu0 0.0
    %1559 = vmatpush2.msra.mxu0 0.0
    %1560 = vmatprep.subr.mxu0 0.0
    %1561 = vmatpush2.msra.mxu0 0.0
    %1562 = vmatprep.subr.mxu0 0.0
    %1563 = vmatpush2.msra.mxu0 0.0
    %1564 = vmatprep.subr.mxu0 0.0
    %1565 = vmatpush2.msra.mxu0 0.0
    %1566 = vmatprep.mubr.f32.mxu0 0.0
    %1567 = vmatmul.mubr.f32.gmra.mxu0 %v1500
    %v1568 = vpop.f32.mrf.mxu0
    %v1569 = vadd.f32 %v1135, %v1568
    %v1570 = vpop.f32.mrf.mxu0
    %v1571 = vadd.f32 %v1139, %v1570
    %1572 = vdwg.mxu0
    %1573 = vmatprep.subr.mxu0 0.0
    %1574 = vmatpush1.msra.mxu0 0.0
    %1575 = vmatprep.subr.mxu0 0.0
    %1576 = vmatpush1.msra.mxu0 0.0
    %1577 = vmatprep.subr.mxu0 0.0
    %1578 = vmatpush1.msra.mxu0 0.0
    %1579 = vmatprep.subr.mxu0 0.0
    %1580 = vmatpush1.msra.mxu0 0.0
    %1581 = vmatprep.subr.mxu0 0.0
    %1582 = vmatpush1.msra.mxu0 0.0
    %1583 = vmatprep.subr.mxu0 0.0
    %1584 = vmatpush1.msra.mxu0 0.0
    %1585 = vmatprep.subr.mxu0 0.0
    %1586 = vmatpush1.msra.mxu0 0.0
    %1587 = vmatprep.subr.mxu0 0.0
    %1588 = vmatpush1.msra.mxu0 0.0
    %1589 = vmatprep.subr.mxu0 0.0
    %1590 = vmatpush1.msra.mxu0 0.0
    %1591 = vmatprep.subr.mxu0 0.0
    %1592 = vmatpush1.msra.mxu0 0.0
    %1593 = vmatprep.subr.mxu0 0.0
    %1594 = vmatpush1.msra.mxu0 0.0
    %1595 = vmatprep.subr.mxu0 0.0
    %1596 = vmatpush1.msra.mxu0 %v1158
    %1597 = vmatprep.subr.mxu0 0.0
    %1598 = vmatpush1.msra.mxu0 %v1126
    %1599 = vmatprep.subr.mxu0 0.0
    %1600 = vmatpush1.msra.mxu0 %v1123
    %1601 = vmatprep.subr.mxu0 0.0
    %1602 = vmatpush1.msra.mxu0 %v1120
    %1603 = vmatprep.subr.mxu0 0.0
    %1604 = vmatpush1.msra.mxu0 %v1117
    %1605 = vmatprep.subr.mxu0 0.0
    %1606 = vmatpush2.msra.mxu0 0.0
    %1607 = vmatprep.subr.mxu0 0.0
    %1608 = vmatpush2.msra.mxu0 0.0
    %1609 = vmatprep.subr.mxu0 0.0
    %1610 = vmatpush2.msra.mxu0 0.0
    %1611 = vmatprep.subr.mxu0 0.0
    %1612 = vmatpush2.msra.mxu0 0.0
    %1613 = vmatprep.subr.mxu0 0.0
    %1614 = vmatpush2.msra.mxu0 0.0
    %1615 = vmatprep.subr.mxu0 0.0
    %1616 = vmatpush2.msra.mxu0 0.0
    %1617 = vmatprep.subr.mxu0 0.0
    %1618 = vmatpush2.msra.mxu0 0.0
    %1619 = vmatprep.subr.mxu0 0.0
    %1620 = vmatpush2.msra.mxu0 0.0
    %1621 = vmatprep.subr.mxu0 0.0
    %1622 = vmatpush2.msra.mxu0 0.0
    %1623 = vmatprep.subr.mxu0 0.0
    %1624 = vmatpush2.msra.mxu0 0.0
    %1625 = vmatprep.subr.mxu0 0.0
    %1626 = vmatpush2.msra.mxu0 0.0
    %1627 = vmatprep.subr.mxu0 0.0
    %1628 = vmatpush2.msra.mxu0 0.0
    %1629 = vmatprep.subr.mxu0 0.0
    %1630 = vmatpush2.msra.mxu0 0.0
    %1631 = vmatprep.subr.mxu0 0.0
    %1632 = vmatpush2.msra.mxu0 0.0
    %1633 = vmatprep.subr.mxu0 0.0
    %1634 = vmatpush2.msra.mxu0 0.0
    %1635 = vmatprep.subr.mxu0 0.0
    %1636 = vmatpush2.msra.mxu0 0.0
    %1637 = vmatprep.mubr.f32.mxu0 0.0
    %1638 = vmatmul.mubr.f32.gmra.mxu0 %v1500
    %v1639 = vpop.f32.mrf.mxu0
    %v1640 = vadd.f32 %v1143, %v1639
    %v1641 = vpop.f32.mrf.mxu0
    %1642 = vdwg.mxu0
    %v1644 = vrot.slane %v1569, 4
    %v1646 = vadd.f32 %v1109, %v1644
    %v1647 = vxor.u32 %v1646, 2147483648
    %v1648 = vmul.f32 %v1647, 1.442695
    %v1649 = vpow.pop %v1648
    %v1650 = vadd.f32 %v1649, 1.0
    %v1651 = vrcp.pop %v1650
    %v1652 = vmul.f32 1.0, %v1651
    %v1654 = vrot.slane %v1571, 4
    %v1656 = vadd.f32 %v1110, %v1654
    %v1657 = vxor.u32 %v1656, 2147483648
    %v1658 = vmul.f32 %v1657, 1.442695
    %v1659 = vpow.pop %v1658
    %v1660 = vadd.f32 %v1659, 1.0
    %v1661 = vrcp.pop %v1660
    %v1662 = vmul.f32 1.0, %v1661
    %v1664 = vrot.slane %v1640, 4
    %v1666 = vmul.f32 %v1652, %v1664
    %v1667 = vadd.f32 %v1111, %v1666
    %v1668 = vtanh.pop %v1667
    %v1669 = vsub.f32 1.0, %v1662
    %v1670 = vmul.f32 %v1669, %v1668
    %v1671 = vrot.slane %v1497, 6
    %v1673 = vmul.f32 %v1662, %v1671
    %v1674 = vadd.f32 %v1670, %v1673
    %v1676 = vrot.slane %v1674, 4
    %v1677 = vsel %vm1147, %v1676, 0
    %1679 = vmatprep.subr.mxu0 0.0
    %1680 = vmatpush1.msra.mxu0 0.0
    %1681 = vmatprep.subr.mxu0 0.0
    %1682 = vmatpush1.msra.mxu0 0.0
    %1683 = vmatprep.subr.mxu0 0.0
    %1684 = vmatpush1.msra.mxu0 0.0
    %1685 = vmatprep.subr.mxu0 0.0
    %1686 = vmatpush1.msra.mxu0 0.0
    %1687 = vmatprep.subr.mxu0 0.0
    %1688 = vmatpush1.msra.mxu0 0.0
    %1689 = vmatprep.subr.mxu0 0.0
    %1690 = vmatpush1.msra.mxu0 0.0
    %1691 = vmatprep.subr.mxu0 0.0
    %1692 = vmatpush1.msra.mxu0 0.0
    %1693 = vmatprep.subr.mxu0 0.0
    %1694 = vmatpush1.msra.mxu0 0.0
    %1695 = vmatprep.subr.mxu0 0.0
    %1696 = vmatpush1.msra.mxu0 0.0
    %1697 = vmatprep.subr.mxu0 0.0
    %1698 = vmatpush1.msra.mxu0 0.0
    %1699 = vmatprep.subr.mxu0 0.0
    %1700 = vmatpush1.msra.mxu0 0.0
    %1701 = vmatprep.subr.mxu0 %v1155
    %1702 = vmatpush1.msra.mxu0 %v1152
    %1703 = vmatprep.subr.mxu0 %v1125
    %1704 = vmatpush1.msra.mxu0 %v1124
    %1705 = vmatprep.subr.mxu0 %v1122
    %1706 = vmatpush1.msra.mxu0 %v1121
    %1707 = vmatprep.subr.mxu0 %v1119
    %1708 = vmatpush1.msra.mxu0 %v1118
    %1709 = vmatprep.subr.mxu0 %v1116
    %1710 = vmatpush1.msra.mxu0 %v1115
    %1711 = vmatprep.subr.mxu0 0.0
    %1712 = vmatpush2.msra.mxu0 0.0
    %1713 = vmatprep.subr.mxu0 0.0
    %1714 = vmatpush2.msra.mxu0 0.0
    %1715 = vmatprep.subr.mxu0 0.0
    %1716 = vmatpush2.msra.mxu0 0.0
    %1717 = vmatprep.subr.mxu0 0.0
    %1718 = vmatpush2.msra.mxu0 0.0
    %1719 = vmatprep.subr.mxu0 0.0
    %1720 = vmatpush2.msra.mxu0 0.0
    %1721 = vmatprep.subr.mxu0 0.0
    %1722 = vmatpush2.msra.mxu0 0.0
    %1723 = vmatprep.subr.mxu0 0.0
    %1724 = vmatpush2.msra.mxu0 0.0
    %1725 = vmatprep.subr.mxu0 0.0
    %1726 = vmatpush2.msra.mxu0 0.0
    %1727 = vmatprep.subr.mxu0 0.0
    %1728 = vmatpush2.msra.mxu0 0.0
    %1729 = vmatprep.subr.mxu0 0.0
    %1730 = vmatpush2.msra.mxu0 0.0
    %1731 = vmatprep.subr.mxu0 0.0
    %1732 = vmatpush2.msra.mxu0 0.0
    %1733 = vmatprep.subr.mxu0 0.0
    %1734 = vmatpush2.msra.mxu0 0.0
    %1735 = vmatprep.subr.mxu0 0.0
    %1736 = vmatpush2.msra.mxu0 0.0
    %1737 = vmatprep.subr.mxu0 0.0
    %1738 = vmatpush2.msra.mxu0 0.0
    %1739 = vmatprep.subr.mxu0 0.0
    %1740 = vmatpush2.msra.mxu0 0.0
    %1741 = vmatprep.subr.mxu0 0.0
    %1742 = vmatpush2.msra.mxu0 0.0
    %1743 = vmatprep.mubr.f32.mxu0 0.0
    %1744 = vmatmul.mubr.f32.gmra.mxu0 %v1677
    %v1745 = vpop.f32.mrf.mxu0
    %v1746 = vadd.f32 %v1135, %v1745
    %v1747 = vpop.f32.mrf.mxu0
    %v1748 = vadd.f32 %v1139, %v1747
    %1749 = vdwg.mxu0
    %1750 = vmatprep.subr.mxu0 0.0
    %1751 = vmatpush1.msra.mxu0 0.0
    %1752 = vmatprep.subr.mxu0 0.0
    %1753 = vmatpush1.msra.mxu0 0.0
    %1754 = vmatprep.subr.mxu0 0.0
    %1755 = vmatpush1.msra.mxu0 0.0
    %1756 = vmatprep.subr.mxu0 0.0
    %1757 = vmatpush1.msra.mxu0 0.0
    %1758 = vmatprep.subr.mxu0 0.0
    %1759 = vmatpush1.msra.mxu0 0.0
    %1760 = vmatprep.subr.mxu0 0.0
    %1761 = vmatpush1.msra.mxu0 0.0
    %1762 = vmatprep.subr.mxu0 0.0
    %1763 = vmatpush1.msra.mxu0 0.0
    %1764 = vmatprep.subr.mxu0 0.0
    %1765 = vmatpush1.msra.mxu0 0.0
    %1766 = vmatprep.subr.mxu0 0.0
    %1767 = vmatpush1.msra.mxu0 0.0
    %1768 = vmatprep.subr.mxu0 0.0
    %1769 = vmatpush1.msra.mxu0 0.0
    %1770 = vmatprep.subr.mxu0 0.0
    %1771 = vmatpush1.msra.mxu0 0.0
    %1772 = vmatprep.subr.mxu0 0.0
    %1773 = vmatpush1.msra.mxu0 %v1158
    %1774 = vmatprep.subr.mxu0 0.0
    %1775 = vmatpush1.msra.mxu0 %v1126
    %1776 = vmatprep.subr.mxu0 0.0
    %1777 = vmatpush1.msra.mxu0 %v1123
    %1778 = vmatprep.subr.mxu0 0.0
    %1779 = vmatpush1.msra.mxu0 %v1120
    %1780 = vmatprep.subr.mxu0 0.0
    %1781 = vmatpush1.msra.mxu0 %v1117
    %1782 = vmatprep.subr.mxu0 0.0
    %1783 = vmatpush2.msra.mxu0 0.0
    %1784 = vmatprep.subr.mxu0 0.0
    %1785 = vmatpush2.msra.mxu0 0.0
    %1786 = vmatprep.subr.mxu0 0.0
    %1787 = vmatpush2.msra.mxu0 0.0
    %1788 = vmatprep.subr.mxu0 0.0
    %1789 = vmatpush2.msra.mxu0 0.0
    %1790 = vmatprep.subr.mxu0 0.0
    %1791 = vmatpush2.msra.mxu0 0.0
    %1792 = vmatprep.subr.mxu0 0.0
    %1793 = vmatpush2.msra.mxu0 0.0
    %1794 = vmatprep.subr.mxu0 0.0
    %1795 = vmatpush2.msra.mxu0 0.0
    %1796 = vmatprep.subr.mxu0 0.0
    %1797 = vmatpush2.msra.mxu0 0.0
    %1798 = vmatprep.subr.mxu0 0.0
    %1799 = vmatpush2.msra.mxu0 0.0
    %1800 = vmatprep.subr.mxu0 0.0
    %1801 = vmatpush2.msra.mxu0 0.0
    %1802 = vmatprep.subr.mxu0 0.0
    %1803 = vmatpush2.msra.mxu0 0.0
    %1804 = vmatprep.subr.mxu0 0.0
    %1805 = vmatpush2.msra.mxu0 0.0
    %1806 = vmatprep.subr.mxu0 0.0
    %1807 = vmatpush2.msra.mxu0 0.0
    %1808 = vmatprep.subr.mxu0 0.0
    %1809 = vmatpush2.msra.mxu0 0.0
    %1810 = vmatprep.subr.mxu0 0.0
    %1811 = vmatpush2.msra.mxu0 0.0
    %1812 = vmatprep.subr.mxu0 0.0
    %1813 = vmatpush2.msra.mxu0 0.0
    %1814 = vmatprep.mubr.f32.mxu0 0.0
    %1815 = vmatmul.mubr.f32.gmra.mxu0 %v1677
    %v1816 = vpop.f32.mrf.mxu0
    %v1817 = vadd.f32 %v1143, %v1816
    %v1818 = vpop.f32.mrf.mxu0
    %1819 = vdwg.mxu0
    %v1821 = vrot.slane %v1746, 2
    %v1823 = vadd.f32 %v1109, %v1821
    %v1824 = vxor.u32 %v1823, 2147483648
    %v1825 = vmul.f32 %v1824, 1.442695
    %v1826 = vpow.pop %v1825
    %v1827 = vadd.f32 %v1826, 1.0
    %v1828 = vrcp.pop %v1827
    %v1829 = vmul.f32 1.0, %v1828
    %v1831 = vrot.slane %v1748, 2
    %v1833 = vadd.f32 %v1110, %v1831
    %v1834 = vxor.u32 %v1833, 2147483648
    %v1835 = vmul.f32 %v1834, 1.442695
    %v1836 = vpow.pop %v1835
    %v1837 = vadd.f32 %v1836, 1.0
    %v1838 = vrcp.pop %v1837
    %v1839 = vmul.f32 1.0, %v1838
    %v1841 = vrot.slane %v1817, 2
    %v1843 = vmul.f32 %v1829, %v1841
    %v1844 = vadd.f32 %v1111, %v1843
    %v1845 = vtanh.pop %v1844
    %v1846 = vsub.f32 1.0, %v1839
    %v1847 = vmul.f32 %v1846, %v1845
    %v1848 = vrot.slane %v1674, 6
    %v1850 = vmul.f32 %v1839, %v1848
    %v1851 = vadd.f32 %v1847, %v1850
    %v1853 = vrot.slane %v1851, 6
    %v1854 = vsel %vm1147, %v1853, 0
    %1856 = vmatprep.subr.mxu0 0.0
    %1857 = vmatpush1.msra.mxu0 0.0
    %1858 = vmatprep.subr.mxu0 0.0
    %1859 = vmatpush1.msra.mxu0 0.0
    %1860 = vmatprep.subr.mxu0 0.0
    %1861 = vmatpush1.msra.mxu0 0.0
    %1862 = vmatprep.subr.mxu0 0.0
    %1863 = vmatpush1.msra.mxu0 0.0
    %1864 = vmatprep.subr.mxu0 0.0
    %1865 = vmatpush1.msra.mxu0 0.0
    %1866 = vmatprep.subr.mxu0 0.0
    %1867 = vmatpush1.msra.mxu0 0.0
    %1868 = vmatprep.subr.mxu0 0.0
    %1869 = vmatpush1.msra.mxu0 0.0
    %1870 = vmatprep.subr.mxu0 0.0
    %1871 = vmatpush1.msra.mxu0 0.0
    %1872 = vmatprep.subr.mxu0 0.0
    %1873 = vmatpush1.msra.mxu0 0.0
    %1874 = vmatprep.subr.mxu0 0.0
    %1875 = vmatpush1.msra.mxu0 0.0
    %1876 = vmatprep.subr.mxu0 0.0
    %1877 = vmatpush1.msra.mxu0 0.0
    %1878 = vmatprep.subr.mxu0 %v1155
    %1879 = vmatpush1.msra.mxu0 %v1152
    %1880 = vmatprep.subr.mxu0 %v1125
    %1881 = vmatpush1.msra.mxu0 %v1124
    %1882 = vmatprep.subr.mxu0 %v1122
    %1883 = vmatpush1.msra.mxu0 %v1121
    %1884 = vmatprep.subr.mxu0 %v1119
    %1885 = vmatpush1.msra.mxu0 %v1118
    %1886 = vmatprep.subr.mxu0 %v1116
    %1887 = vmatpush1.msra.mxu0 %v1115
    %1888 = vmatprep.subr.mxu0 0.0
    %1889 = vmatpush2.msra.mxu0 0.0
    %1890 = vmatprep.subr.mxu0 0.0
    %1891 = vmatpush2.msra.mxu0 0.0
    %1892 = vmatprep.subr.mxu0 0.0
    %1893 = vmatpush2.msra.mxu0 0.0
    %1894 = vmatprep.subr.mxu0 0.0
    %1895 = vmatpush2.msra.mxu0 0.0
    %1896 = vmatprep.subr.mxu0 0.0
    %1897 = vmatpush2.msra.mxu0 0.0
    %1898 = vmatprep.subr.mxu0 0.0
    %1899 = vmatpush2.msra.mxu0 0.0
    %1900 = vmatprep.subr.mxu0 0.0
    %1901 = vmatpush2.msra.mxu0 0.0
    %1902 = vmatprep.subr.mxu0 0.0
    %1903 = vmatpush2.msra.mxu0 0.0
    %1904 = vmatprep.subr.mxu0 0.0
    %1905 = vmatpush2.msra.mxu0 0.0
    %1906 = vmatprep.subr.mxu0 0.0
    %1907 = vmatpush2.msra.mxu0 0.0
    %1908 = vmatprep.subr.mxu0 0.0
    %1909 = vmatpush2.msra.mxu0 0.0
    %1910 = vmatprep.subr.mxu0 0.0
    %1911 = vmatpush2.msra.mxu0 0.0
    %1912 = vmatprep.subr.mxu0 0.0
    %1913 = vmatpush2.msra.mxu0 0.0
    %1914 = vmatprep.subr.mxu0 0.0
    %1915 = vmatpush2.msra.mxu0 0.0
    %1916 = vmatprep.subr.mxu0 0.0
    %1917 = vmatpush2.msra.mxu0 0.0
    %1918 = vmatprep.subr.mxu0 0.0
    %1919 = vmatpush2.msra.mxu0 0.0
    %1920 = vmatprep.mubr.f32.mxu0 0.0
    %1921 = vmatmul.mubr.f32.gmra.mxu0 %v1854
    %v1922 = vpop.f32.mrf.mxu0
    %v1923 = vadd.f32 %v1135, %v1922
    %v1924 = vpop.f32.mrf.mxu0
    %v1925 = vadd.f32 %v1139, %v1924
    %1926 = vdwg.mxu0
    %1927 = vmatprep.subr.mxu0 0.0
    %1928 = vmatpush1.msra.mxu0 0.0
    %1929 = vmatprep.subr.mxu0 0.0
    %1930 = vmatpush1.msra.mxu0 0.0
    %1931 = vmatprep.subr.mxu0 0.0
    %1932 = vmatpush1.msra.mxu0 0.0
    %1933 = vmatprep.subr.mxu0 0.0
    %1934 = vmatpush1.msra.mxu0 0.0
    %1935 = vmatprep.subr.mxu0 0.0
    %1936 = vmatpush1.msra.mxu0 0.0
    %1937 = vmatprep.subr.mxu0 0.0
    %1938 = vmatpush1.msra.mxu0 0.0
    %1939 = vmatprep.subr.mxu0 0.0
    %1940 = vmatpush1.msra.mxu0 0.0
    %1941 = vmatprep.subr.mxu0 0.0
    %1942 = vmatpush1.msra.mxu0 0.0
    %1943 = vmatprep.subr.mxu0 0.0
    %1944 = vmatpush1.msra.mxu0 0.0
    %1945 = vmatprep.subr.mxu0 0.0
    %1946 = vmatpush1.msra.mxu0 0.0
    %1947 = vmatprep.subr.mxu0 0.0
    %1948 = vmatpush1.msra.mxu0 0.0
    %1949 = vmatprep.subr.mxu0 0.0
    %1950 = vmatpush1.msra.mxu0 %v1158
    %1951 = vmatprep.subr.mxu0 0.0
    %1952 = vmatpush1.msra.mxu0 %v1126
    %1953 = vmatprep.subr.mxu0 0.0
    %1954 = vmatpush1.msra.mxu0 %v1123
    %1955 = vmatprep.subr.mxu0 0.0
    %1956 = vmatpush1.msra.mxu0 %v1120
    %1957 = vmatprep.subr.mxu0 0.0
    %1958 = vmatpush1.msra.mxu0 %v1117
    %1959 = vmatprep.subr.mxu0 0.0
    %1960 = vmatpush2.msra.mxu0 0.0
    %1961 = vmatprep.subr.mxu0 0.0
    %1962 = vmatpush2.msra.mxu0 0.0
    %1963 = vmatprep.subr.mxu0 0.0
    %1964 = vmatpush2.msra.mxu0 0.0
    %1965 = vmatprep.subr.mxu0 0.0
    %1966 = vmatpush2.msra.mxu0 0.0
    %1967 = vmatprep.subr.mxu0 0.0
    %1968 = vmatpush2.msra.mxu0 0.0
    %1969 = vmatprep.subr.mxu0 0.0
    %1970 = vmatpush2.msra.mxu0 0.0
    %1971 = vmatprep.subr.mxu0 0.0
    %1972 = vmatpush2.msra.mxu0 0.0
    %1973 = vmatprep.subr.mxu0 0.0
    %1974 = vmatpush2.msra.mxu0 0.0
    %1975 = vmatprep.subr.mxu0 0.0
    %1976 = vmatpush2.msra.mxu0 0.0
    %1977 = vmatprep.subr.mxu0 0.0
    %1978 = vmatpush2.msra.mxu0 0.0
    %1979 = vmatprep.subr.mxu0 0.0
    %1980 = vmatpush2.msra.mxu0 0.0
    %1981 = vmatprep.subr.mxu0 0.0
    %1982 = vmatpush2.msra.mxu0 0.0
    %1983 = vmatprep.subr.mxu0 0.0
    %1984 = vmatpush2.msra.mxu0 0.0
    %1985 = vmatprep.subr.mxu0 0.0
    %1986 = vmatpush2.msra.mxu0 0.0
    %1987 = vmatprep.subr.mxu0 0.0
    %1988 = vmatpush2.msra.mxu0 0.0
    %1989 = vmatprep.subr.mxu0 0.0
    %1990 = vmatpush2.msra.mxu0 0.0
    %1991 = vmatprep.mubr.f32.mxu0 0.0
    %1992 = vmatmul.mubr.f32.gmra.mxu0 %v1854
    %v1993 = vpop.f32.mrf.mxu0
    %v1994 = vadd.f32 %v1143, %v1993
    %v1995 = vpop.f32.mrf.mxu0
    %1996 = vdwg.mxu0
    %v1997 = vadd.f32 %v1112, %v1923
    %v1998 = vxor.u32 %v1997, 2147483648
    %v1999 = vmul.f32 %v1998, 1.442695
    %v2000 = vpow.pop %v1999
    %v2001 = vadd.f32 %v2000, 1.0
    %v2002 = vrcp.pop %v2001
    %v2003 = vmul.f32 1.0, %v2002
    %v2004 = vadd.f32 %v1113, %v1925
    %v2005 = vxor.u32 %v2004, 2147483648
    %v2006 = vmul.f32 %v2005, 1.442695
    %v2007 = vpow.pop %v2006
    %v2008 = vadd.f32 %v2007, 1.0
    %v2009 = vrcp.pop %v2008
    %v2010 = vmul.f32 1.0, %v2009
    %v2011 = vmul.f32 %v2003, %v1994
    %v2012 = vadd.f32 %v1114, %v2011
    %v2013 = vtanh.pop %v2012
    %v2014 = vsub.f32 1.0, %v2010
    %v2015 = vmul.f32 %v2014, %v2013
    %v2017 = vmul.f32 %v2010, %v1853
    %v2018 = vadd.f32 %v2015, %v2017
    %v2020 = vsel %vm1147, %v2018, 0
    %2022 = vmatprep.subr.mxu0 0.0
    %2023 = vmatpush1.msra.mxu0 0.0
    %2024 = vmatprep.subr.mxu0 0.0
    %2025 = vmatpush1.msra.mxu0 0.0
    %2026 = vmatprep.subr.mxu0 0.0
    %2027 = vmatpush1.msra.mxu0 0.0
    %2028 = vmatprep.subr.mxu0 0.0
    %2029 = vmatpush1.msra.mxu0 0.0
    %2030 = vmatprep.subr.mxu0 0.0
    %2031 = vmatpush1.msra.mxu0 0.0
    %2032 = vmatprep.subr.mxu0 0.0
    %2033 = vmatpush1.msra.mxu0 0.0
    %2034 = vmatprep.subr.mxu0 0.0
    %2035 = vmatpush1.msra.mxu0 0.0
    %2036 = vmatprep.subr.mxu0 0.0
    %2037 = vmatpush1.msra.mxu0 0.0
    %2038 = vmatprep.subr.mxu0 0.0
    %2039 = vmatpush1.msra.mxu0 0.0
    %2040 = vmatprep.subr.mxu0 0.0
    %2041 = vmatpush1.msra.mxu0 0.0
    %2042 = vmatprep.subr.mxu0 0.0
    %2043 = vmatpush1.msra.mxu0 0.0
    %2044 = vmatprep.subr.mxu0 %v1155
    %2045 = vmatpush1.msra.mxu0 %v1152
    %2046 = vmatprep.subr.mxu0 %v1125
    %2047 = vmatpush1.msra.mxu0 %v1124
    %2048 = vmatprep.subr.mxu0 %v1122
    %2049 = vmatpush1.msra.mxu0 %v1121
    %2050 = vmatprep.subr.mxu0 %v1119
    %2051 = vmatpush1.msra.mxu0 %v1118
    %2052 = vmatprep.subr.mxu0 %v1116
    %2053 = vmatpush1.msra.mxu0 %v1115
    %2054 = vmatprep.subr.mxu0 0.0
    %2055 = vmatpush2.msra.mxu0 0.0
    %2056 = vmatprep.subr.mxu0 0.0
    %2057 = vmatpush2.msra.mxu0 0.0
    %2058 = vmatprep.subr.mxu0 0.0
    %2059 = vmatpush2.msra.mxu0 0.0
    %2060 = vmatprep.subr.mxu0 0.0
    %2061 = vmatpush2.msra.mxu0 0.0
    %2062 = vmatprep.subr.mxu0 0.0
    %2063 = vmatpush2.msra.mxu0 0.0
    %2064 = vmatprep.subr.mxu0 0.0
    %2065 = vmatpush2.msra.mxu0 0.0
    %2066 = vmatprep.subr.mxu0 0.0
    %2067 = vmatpush2.msra.mxu0 0.0
    %2068 = vmatprep.subr.mxu0 0.0
    %2069 = vmatpush2.msra.mxu0 0.0
    %2070 = vmatprep.subr.mxu0 0.0
    %2071 = vmatpush2.msra.mxu0 0.0
    %2072 = vmatprep.subr.mxu0 0.0
    %2073 = vmatpush2.msra.mxu0 0.0
    %2074 = vmatprep.subr.mxu0 0.0
    %2075 = vmatpush2.msra.mxu0 0.0
    %2076 = vmatprep.subr.mxu0 0.0
    %2077 = vmatpush2.msra.mxu0 0.0
    %2078 = vmatprep.subr.mxu0 0.0
    %2079 = vmatpush2.msra.mxu0 0.0
    %2080 = vmatprep.subr.mxu0 0.0
    %2081 = vmatpush2.msra.mxu0 0.0
    %2082 = vmatprep.subr.mxu0 0.0
    %2083 = vmatpush2.msra.mxu0 0.0
    %2084 = vmatprep.subr.mxu0 0.0
    %2085 = vmatpush2.msra.mxu0 0.0
    %2086 = vmatprep.mubr.f32.mxu0 0.0
    %2087 = vmatmul.mubr.f32.gmra.mxu0 %v2020
    %v2088 = vpop.f32.mrf.mxu0
    %v2089 = vadd.f32 %v1135, %v2088
    %v2090 = vpop.f32.mrf.mxu0
    %v2091 = vadd.f32 %v1139, %v2090
    %2092 = vdwg.mxu0
    %2093 = vmatprep.subr.mxu0 0.0
    %2094 = vmatpush1.msra.mxu0 0.0
    %2095 = vmatprep.subr.mxu0 0.0
    %2096 = vmatpush1.msra.mxu0 0.0
    %2097 = vmatprep.subr.mxu0 0.0
    %2098 = vmatpush1.msra.mxu0 0.0
    %2099 = vmatprep.subr.mxu0 0.0
    %2100 = vmatpush1.msra.mxu0 0.0
    %2101 = vmatprep.subr.mxu0 0.0
    %2102 = vmatpush1.msra.mxu0 0.0
    %2103 = vmatprep.subr.mxu0 0.0
    %2104 = vmatpush1.msra.mxu0 0.0
    %2105 = vmatprep.subr.mxu0 0.0
    %2106 = vmatpush1.msra.mxu0 0.0
    %2107 = vmatprep.subr.mxu0 0.0
    %2108 = vmatpush1.msra.mxu0 0.0
    %2109 = vmatprep.subr.mxu0 0.0
    %2110 = vmatpush1.msra.mxu0 0.0
    %2111 = vmatprep.subr.mxu0 0.0
    %2112 = vmatpush1.msra.mxu0 0.0
    %2113 = vmatprep.subr.mxu0 0.0
    %2114 = vmatpush1.msra.mxu0 0.0
    %2115 = vmatprep.subr.mxu0 0.0
    %2116 = vmatpush1.msra.mxu0 %v1158
    %2117 = vmatprep.subr.mxu0 0.0
    %2118 = vmatpush1.msra.mxu0 %v1126
    %2119 = vmatprep.subr.mxu0 0.0
    %2120 = vmatpush1.msra.mxu0 %v1123
    %2121 = vmatprep.subr.mxu0 0.0
    %2122 = vmatpush1.msra.mxu0 %v1120
    %2123 = vmatprep.subr.mxu0 0.0
    %2124 = vmatpush1.msra.mxu0 %v1117
    %2125 = vmatprep.subr.mxu0 0.0
    %2126 = vmatpush2.msra.mxu0 0.0
    %2127 = vmatprep.subr.mxu0 0.0
    %2128 = vmatpush2.msra.mxu0 0.0
    %2129 = vmatprep.subr.mxu0 0.0
    %2130 = vmatpush2.msra.mxu0 0.0
    %2131 = vmatprep.subr.mxu0 0.0
    %2132 = vmatpush2.msra.mxu0 0.0
    %2133 = vmatprep.subr.mxu0 0.0
    %2134 = vmatpush2.msra.mxu0 0.0
    %2135 = vmatprep.subr.mxu0 0.0
    %2136 = vmatpush2.msra.mxu0 0.0
    %2137 = vmatprep.subr.mxu0 0.0
    %2138 = vmatpush2.msra.mxu0 0.0
    %2139 = vmatprep.subr.mxu0 0.0
    %2140 = vmatpush2.msra.mxu0 0.0
    %2141 = vmatprep.subr.mxu0 0.0
    %2142 = vmatpush2.msra.mxu0 0.0
    %2143 = vmatprep.subr.mxu0 0.0
    %2144 = vmatpush2.msra.mxu0 0.0
    %2145 = vmatprep.subr.mxu0 0.0
    %2146 = vmatpush2.msra.mxu0 0.0
    %2147 = vmatprep.subr.mxu0 0.0
    %2148 = vmatpush2.msra.mxu0 0.0
    %2149 = vmatprep.subr.mxu0 0.0
    %2150 = vmatpush2.msra.mxu0 0.0
    %2151 = vmatprep.subr.mxu0 0.0
    %2152 = vmatpush2.msra.mxu0 0.0
    %2153 = vmatprep.subr.mxu0 0.0
    %2154 = vmatpush2.msra.mxu0 0.0
    %2155 = vmatprep.subr.mxu0 0.0
    %2156 = vmatpush2.msra.mxu0 0.0
    %2157 = vmatprep.mubr.f32.mxu0 0.0
    %2158 = vmatmul.mubr.f32.gmra.mxu0 %v2020
    %v2159 = vpop.f32.mrf.mxu0
    %v2160 = vadd.f32 %v1143, %v2159
    %v2161 = vpop.f32.mrf.mxu0
    %2162 = vdwg.mxu0
    %v2164 = vrot.slane %v2089, 6
    %v2166 = vadd.f32 %v1112, %v2164
    %v2167 = vxor.u32 %v2166, 2147483648
    %v2168 = vmul.f32 %v2167, 1.442695
    %v2169 = vpow.pop %v2168
    %v2170 = vadd.f32 %v2169, 1.0
    %v2171 = vrcp.pop %v2170
    %v2172 = vmul.f32 1.0, %v2171
    %v2174 = vrot.slane %v2091, 6
    %v2176 = vadd.f32 %v1113, %v2174
    %v2177 = vxor.u32 %v2176, 2147483648
    %v2178 = vmul.f32 %v2177, 1.442695
    %v2179 = vpow.pop %v2178
    %v2180 = vadd.f32 %v2179, 1.0
    %v2181 = vrcp.pop %v2180
    %v2182 = vmul.f32 1.0, %v2181
    %v2184 = vrot.slane %v2160, 6
    %v2186 = vmul.f32 %v2172, %v2184
    %v2187 = vadd.f32 %v1114, %v2186
    %v2188 = vtanh.pop %v2187
    %v2189 = vsub.f32 1.0, %v2182
    %v2190 = vmul.f32 %v2189, %v2188
    %v2191 = vrot.slane %v2018, 6
    %v2193 = vmul.f32 %v2182, %v2191
    %v2194 = vadd.f32 %v2190, %v2193
    %v2196 = vrot.slane %v2194, 2
    %v2197 = vsel %vm1147, %v2196, 0
    %2199 = vmatprep.subr.mxu0 0.0
    %2200 = vmatpush1.msra.mxu0 0.0
    %2201 = vmatprep.subr.mxu0 0.0
    %2202 = vmatpush1.msra.mxu0 0.0
    %2203 = vmatprep.subr.mxu0 0.0
    %2204 = vmatpush1.msra.mxu0 0.0
    %2205 = vmatprep.subr.mxu0 0.0
    %2206 = vmatpush1.msra.mxu0 0.0
    %2207 = vmatprep.subr.mxu0 0.0
    %2208 = vmatpush1.msra.mxu0 0.0
    %2209 = vmatprep.subr.mxu0 0.0
    %2210 = vmatpush1.msra.mxu0 0.0
    %2211 = vmatprep.subr.mxu0 0.0
    %2212 = vmatpush1.msra.mxu0 0.0
    %2213 = vmatprep.subr.mxu0 0.0
    %2214 = vmatpush1.msra.mxu0 0.0
    %2215 = vmatprep.subr.mxu0 0.0
    %2216 = vmatpush1.msra.mxu0 0.0
    %2217 = vmatprep.subr.mxu0 0.0
    %2218 = vmatpush1.msra.mxu0 0.0
    %2219 = vmatprep.subr.mxu0 0.0
    %2220 = vmatpush1.msra.mxu0 0.0
    %2221 = vmatprep.subr.mxu0 %v1155
    %2222 = vmatpush1.msra.mxu0 %v1152
    %2223 = vmatprep.subr.mxu0 %v1125
    %2224 = vmatpush1.msra.mxu0 %v1124
    %2225 = vmatprep.subr.mxu0 %v1122
    %2226 = vmatpush1.msra.mxu0 %v1121
    %2227 = vmatprep.subr.mxu0 %v1119
    %2228 = vmatpush1.msra.mxu0 %v1118
    %2229 = vmatprep.subr.mxu0 %v1116
    %2230 = vmatpush1.msra.mxu0 %v1115
    %2231 = vmatprep.subr.mxu0 0.0
    %2232 = vmatpush2.msra.mxu0 0.0
    %2233 = vmatprep.subr.mxu0 0.0
    %2234 = vmatpush2.msra.mxu0 0.0
    %2235 = vmatprep.subr.mxu0 0.0
    %2236 = vmatpush2.msra.mxu0 0.0
    %2237 = vmatprep.subr.mxu0 0.0
    %2238 = vmatpush2.msra.mxu0 0.0
    %2239 = vmatprep.subr.mxu0 0.0
    %2240 = vmatpush2.msra.mxu0 0.0
    %2241 = vmatprep.subr.mxu0 0.0
    %2242 = vmatpush2.msra.mxu0 0.0
    %2243 = vmatprep.subr.mxu0 0.0
    %2244 = vmatpush2.msra.mxu0 0.0
    %2245 = vmatprep.subr.mxu0 0.0
    %2246 = vmatpush2.msra.mxu0 0.0
    %2247 = vmatprep.subr.mxu0 0.0
    %2248 = vmatpush2.msra.mxu0 0.0
    %2249 = vmatprep.subr.mxu0 0.0
    %2250 = vmatpush2.msra.mxu0 0.0
    %2251 = vmatprep.subr.mxu0 0.0
    %2252 = vmatpush2.msra.mxu0 0.0
    %2253 = vmatprep.subr.mxu0 0.0
    %2254 = vmatpush2.msra.mxu0 0.0
    %2255 = vmatprep.subr.mxu0 0.0
    %2256 = vmatpush2.msra.mxu0 0.0
    %2257 = vmatprep.subr.mxu0 0.0
    %2258 = vmatpush2.msra.mxu0 0.0
    %2259 = vmatprep.subr.mxu0 0.0
    %2260 = vmatpush2.msra.mxu0 0.0
    %2261 = vmatprep.subr.mxu0 0.0
    %2262 = vmatpush2.msra.mxu0 0.0
    %2263 = vmatprep.mubr.f32.mxu0 0.0
    %2264 = vmatmul.mubr.f32.gmra.mxu0 %v2197
    %v2265 = vpop.f32.mrf.mxu0
    %v2266 = vadd.f32 %v1135, %v2265
    %v2267 = vpop.f32.mrf.mxu0
    %v2268 = vadd.f32 %v1139, %v2267
    %2269 = vdwg.mxu0
    %2270 = vmatprep.subr.mxu0 0.0
    %2271 = vmatpush1.msra.mxu0 0.0
    %2272 = vmatprep.subr.mxu0 0.0
    %2273 = vmatpush1.msra.mxu0 0.0
    %2274 = vmatprep.subr.mxu0 0.0
    %2275 = vmatpush1.msra.mxu0 0.0
    %2276 = vmatprep.subr.mxu0 0.0
    %2277 = vmatpush1.msra.mxu0 0.0
    %2278 = vmatprep.subr.mxu0 0.0
    %2279 = vmatpush1.msra.mxu0 0.0
    %2280 = vmatprep.subr.mxu0 0.0
    %2281 = vmatpush1.msra.mxu0 0.0
    %2282 = vmatprep.subr.mxu0 0.0
    %2283 = vmatpush1.msra.mxu0 0.0
    %2284 = vmatprep.subr.mxu0 0.0
    %2285 = vmatpush1.msra.mxu0 0.0
    %2286 = vmatprep.subr.mxu0 0.0
    %2287 = vmatpush1.msra.mxu0 0.0
    %2288 = vmatprep.subr.mxu0 0.0
    %2289 = vmatpush1.msra.mxu0 0.0
    %2290 = vmatprep.subr.mxu0 0.0
    %2291 = vmatpush1.msra.mxu0 0.0
    %2292 = vmatprep.subr.mxu0 0.0
    %2293 = vmatpush1.msra.mxu0 %v1158
    %2294 = vmatprep.subr.mxu0 0.0
    %2295 = vmatpush1.msra.mxu0 %v1126
    %2296 = vmatprep.subr.mxu0 0.0
    %2297 = vmatpush1.msra.mxu0 %v1123
    %2298 = vmatprep.subr.mxu0 0.0
    %2299 = vmatpush1.msra.mxu0 %v1120
    %2300 = vmatprep.subr.mxu0 0.0
    %2301 = vmatpush1.msra.mxu0 %v1117
    %2302 = vmatprep.subr.mxu0 0.0
    %2303 = vmatpush2.msra.mxu0 0.0
    %2304 = vmatprep.subr.mxu0 0.0
    %2305 = vmatpush2.msra.mxu0 0.0
    %2306 = vmatprep.subr.mxu0 0.0
    %2307 = vmatpush2.msra.mxu0 0.0
    %2308 = vmatprep.subr.mxu0 0.0
    %2309 = vmatpush2.msra.mxu0 0.0
    %2310 = vmatprep.subr.mxu0 0.0
    %2311 = vmatpush2.msra.mxu0 0.0
    %2312 = vmatprep.subr.mxu0 0.0
    %2313 = vmatpush2.msra.mxu0 0.0
    %2314 = vmatprep.subr.mxu0 0.0
    %2315 = vmatpush2.msra.mxu0 0.0
    %2316 = vmatprep.subr.mxu0 0.0
    %2317 = vmatpush2.msra.mxu0 0.0
    %2318 = vmatprep.subr.mxu0 0.0
    %2319 = vmatpush2.msra.mxu0 0.0
    %2320 = vmatprep.subr.mxu0 0.0
    %2321 = vmatpush2.msra.mxu0 0.0
    %2322 = vmatprep.subr.mxu0 0.0
    %2323 = vmatpush2.msra.mxu0 0.0
    %2324 = vmatprep.subr.mxu0 0.0
    %2325 = vmatpush2.msra.mxu0 0.0
    %2326 = vmatprep.subr.mxu0 0.0
    %2327 = vmatpush2.msra.mxu0 0.0
    %2328 = vmatprep.subr.mxu0 0.0
    %2329 = vmatpush2.msra.mxu0 0.0
    %2330 = vmatprep.subr.mxu0 0.0
    %2331 = vmatpush2.msra.mxu0 0.0
    %2332 = vmatprep.subr.mxu0 0.0
    %2333 = vmatpush2.msra.mxu0 0.0
    %2334 = vmatprep.mubr.f32.mxu0 0.0
    %2335 = vmatmul.mubr.f32.gmra.mxu0 %v2197
    %v2336 = vpop.f32.mrf.mxu0
    %v2337 = vadd.f32 %v1143, %v2336
    %v2338 = vpop.f32.mrf.mxu0
    %2339 = vdwg.mxu0
    %v2341 = vrot.slane %v2266, 4
    %v2343 = vadd.f32 %v1112, %v2341
    %v2344 = vxor.u32 %v2343, 2147483648
    %v2345 = vmul.f32 %v2344, 1.442695
    %v2346 = vpow.pop %v2345
    %v2347 = vadd.f32 %v2346, 1.0
    %v2348 = vrcp.pop %v2347
    %v2349 = vmul.f32 1.0, %v2348
    %v2351 = vrot.slane %v2268, 4
    %v2353 = vadd.f32 %v1113, %v2351
    %v2354 = vxor.u32 %v2353, 2147483648
    %v2355 = vmul.f32 %v2354, 1.442695
    %v2356 = vpow.pop %v2355
    %v2357 = vadd.f32 %v2356, 1.0
    %v2358 = vrcp.pop %v2357
    %v2359 = vmul.f32 1.0, %v2358
    %v2361 = vrot.slane %v2337, 4
    %v2363 = vmul.f32 %v2349, %v2361
    %v2364 = vadd.f32 %v1114, %v2363
    %v2365 = vtanh.pop %v2364
    %v2366 = vsub.f32 1.0, %v2359
    %v2367 = vmul.f32 %v2366, %v2365
    %v2368 = vrot.slane %v2194, 6
    %v2370 = vmul.f32 %v2359, %v2368
    %v2371 = vadd.f32 %v2367, %v2370
    %v2373 = vrot.slane %v2371, 4
    %v2374 = vsel %vm1147, %v2373, 0
    %2376 = vmatprep.subr.mxu0 0.0
    %2377 = vmatpush1.msra.mxu0 0.0
    %2378 = vmatprep.subr.mxu0 0.0
    %2379 = vmatpush1.msra.mxu0 0.0
    %2380 = vmatprep.subr.mxu0 0.0
    %2381 = vmatpush1.msra.mxu0 0.0
    %2382 = vmatprep.subr.mxu0 0.0
    %2383 = vmatpush1.msra.mxu0 0.0
    %2384 = vmatprep.subr.mxu0 0.0
    %2385 = vmatpush1.msra.mxu0 0.0
    %2386 = vmatprep.subr.mxu0 0.0
    %2387 = vmatpush1.msra.mxu0 0.0
    %2388 = vmatprep.subr.mxu0 0.0
    %2389 = vmatpush1.msra.mxu0 0.0
    %2390 = vmatprep.subr.mxu0 0.0
    %2391 = vmatpush1.msra.mxu0 0.0
    %2392 = vmatprep.subr.mxu0 0.0
    %2393 = vmatpush1.msra.mxu0 0.0
    %2394 = vmatprep.subr.mxu0 0.0
    %2395 = vmatpush1.msra.mxu0 0.0
    %2396 = vmatprep.subr.mxu0 0.0
    %2397 = vmatpush1.msra.mxu0 0.0
    %2398 = vmatprep.subr.mxu0 %v1155
    %2399 = vmatpush1.msra.mxu0 %v1152
    %2400 = vmatprep.subr.mxu0 %v1125
    %2401 = vmatpush1.msra.mxu0 %v1124
    %2402 = vmatprep.subr.mxu0 %v1122
    %2403 = vmatpush1.msra.mxu0 %v1121
    %2404 = vmatprep.subr.mxu0 %v1119
    %2405 = vmatpush1.msra.mxu0 %v1118
    %2406 = vmatprep.subr.mxu0 %v1116
    %2407 = vmatpush1.msra.mxu0 %v1115
    %2408 = vmatprep.subr.mxu0 0.0
    %2409 = vmatpush2.msra.mxu0 0.0
    %2410 = vmatprep.subr.mxu0 0.0
    %2411 = vmatpush2.msra.mxu0 0.0
    %2412 = vmatprep.subr.mxu0 0.0
    %2413 = vmatpush2.msra.mxu0 0.0
    %2414 = vmatprep.subr.mxu0 0.0
    %2415 = vmatpush2.msra.mxu0 0.0
    %2416 = vmatprep.subr.mxu0 0.0
    %2417 = vmatpush2.msra.mxu0 0.0
    %2418 = vmatprep.subr.mxu0 0.0
    %2419 = vmatpush2.msra.mxu0 0.0
    %2420 = vmatprep.subr.mxu0 0.0
    %2421 = vmatpush2.msra.mxu0 0.0
    %2422 = vmatprep.subr.mxu0 0.0
    %2423 = vmatpush2.msra.mxu0 0.0
    %2424 = vmatprep.subr.mxu0 0.0
    %2425 = vmatpush2.msra.mxu0 0.0
    %2426 = vmatprep.subr.mxu0 0.0
    %2427 = vmatpush2.msra.mxu0 0.0
    %2428 = vmatprep.subr.mxu0 0.0
    %2429 = vmatpush2.msra.mxu0 0.0
    %2430 = vmatprep.subr.mxu0 0.0
    %2431 = vmatpush2.msra.mxu0 0.0
    %2432 = vmatprep.subr.mxu0 0.0
    %2433 = vmatpush2.msra.mxu0 0.0
    %2434 = vmatprep.subr.mxu0 0.0
    %2435 = vmatpush2.msra.mxu0 0.0
    %2436 = vmatprep.subr.mxu0 0.0
    %2437 = vmatpush2.msra.mxu0 0.0
    %2438 = vmatprep.subr.mxu0 0.0
    %2439 = vmatpush2.msra.mxu0 0.0
    %2440 = vmatprep.mubr.f32.mxu0 0.0
    %2441 = vmatmul.mubr.f32.gmra.mxu0 %v2374
    %v2442 = vpop.f32.mrf.mxu0
    %v2443 = vadd.f32 %v1135, %v2442
    %v2444 = vpop.f32.mrf.mxu0
    %v2445 = vadd.f32 %v1139, %v2444
    %2446 = vdwg.mxu0
    %2447 = vmatprep.subr.mxu0 0.0
    %2448 = vmatpush1.msra.mxu0 0.0
    %2449 = vmatprep.subr.mxu0 0.0
    %2450 = vmatpush1.msra.mxu0 0.0
    %2451 = vmatprep.subr.mxu0 0.0
    %2452 = vmatpush1.msra.mxu0 0.0
    %2453 = vmatprep.subr.mxu0 0.0
    %2454 = vmatpush1.msra.mxu0 0.0
    %2455 = vmatprep.subr.mxu0 0.0
    %2456 = vmatpush1.msra.mxu0 0.0
    %2457 = vmatprep.subr.mxu0 0.0
    %2458 = vmatpush1.msra.mxu0 0.0
    %2459 = vmatprep.subr.mxu0 0.0
    %2460 = vmatpush1.msra.mxu0 0.0
    %2461 = vmatprep.subr.mxu0 0.0
    %2462 = vmatpush1.msra.mxu0 0.0
    %2463 = vmatprep.subr.mxu0 0.0
    %2464 = vmatpush1.msra.mxu0 0.0
    %2465 = vmatprep.subr.mxu0 0.0
    %2466 = vmatpush1.msra.mxu0 0.0
    %2467 = vmatprep.subr.mxu0 0.0
    %2468 = vmatpush1.msra.mxu0 0.0
    %2469 = vmatprep.subr.mxu0 0.0
    %2470 = vmatpush1.msra.mxu0 %v1158
    %2471 = vmatprep.subr.mxu0 0.0
    %2472 = vmatpush1.msra.mxu0 %v1126
    %2473 = vmatprep.subr.mxu0 0.0
    %2474 = vmatpush1.msra.mxu0 %v1123
    %2475 = vmatprep.subr.mxu0 0.0
    %2476 = vmatpush1.msra.mxu0 %v1120
    %2477 = vmatprep.subr.mxu0 0.0
    %2478 = vmatpush1.msra.mxu0 %v1117
    %2479 = vmatprep.subr.mxu0 0.0
    %2480 = vmatpush2.msra.mxu0 0.0
    %2481 = vmatprep.subr.mxu0 0.0
    %2482 = vmatpush2.msra.mxu0 0.0
    %2483 = vmatprep.subr.mxu0 0.0
    %2484 = vmatpush2.msra.mxu0 0.0
    %2485 = vmatprep.subr.mxu0 0.0
    %2486 = vmatpush2.msra.mxu0 0.0
    %2487 = vmatprep.subr.mxu0 0.0
    %2488 = vmatpush2.msra.mxu0 0.0
    %2489 = vmatprep.subr.mxu0 0.0
    %2490 = vmatpush2.msra.mxu0 0.0
    %2491 = vmatprep.subr.mxu0 0.0
    %2492 = vmatpush2.msra.mxu0 0.0
    %2493 = vmatprep.subr.mxu0 0.0
    %2494 = vmatpush2.msra.mxu0 0.0
    %2495 = vmatprep.subr.mxu0 0.0
    %2496 = vmatpush2.msra.mxu0 0.0
    %2497 = vmatprep.subr.mxu0 0.0
    %2498 = vmatpush2.msra.mxu0 0.0
    %2499 = vmatprep.subr.mxu0 0.0
    %2500 = vmatpush2.msra.mxu0 0.0
    %2501 = vmatprep.subr.mxu0 0.0
    %2502 = vmatpush2.msra.mxu0 0.0
    %2503 = vmatprep.subr.mxu0 0.0
    %2504 = vmatpush2.msra.mxu0 0.0
    %2505 = vmatprep.subr.mxu0 0.0
    %2506 = vmatpush2.msra.mxu0 0.0
    %2507 = vmatprep.subr.mxu0 0.0
    %2508 = vmatpush2.msra.mxu0 0.0
    %2509 = vmatprep.subr.mxu0 0.0
    %2510 = vmatpush2.msra.mxu0 0.0
    %2511 = vmatprep.mubr.f32.mxu0 0.0
    %2512 = vmatmul.mubr.f32.gmra.mxu0 %v2374
    %v2513 = vpop.f32.mrf.mxu0
    %v2514 = vadd.f32 %v1143, %v2513
    %v2515 = vpop.f32.mrf.mxu0
    %2516 = vdwg.mxu0
    %v2518 = vrot.slane %v2443, 2
    %v2520 = vadd.f32 %v1112, %v2518
    %v2521 = vxor.u32 %v2520, 2147483648
    %v2522 = vmul.f32 %v2521, 1.442695
    %v2523 = vpow.pop %v2522
    %v2524 = vadd.f32 %v2523, 1.0
    %v2525 = vrcp.pop %v2524
    %v2526 = vmul.f32 1.0, %v2525
    %v2528 = vrot.slane %v2445, 2
    %v2530 = vadd.f32 %v1113, %v2528
    %v2531 = vxor.u32 %v2530, 2147483648
    %v2532 = vmul.f32 %v2531, 1.442695
    %v2533 = vpow.pop %v2532
    %v2534 = vadd.f32 %v2533, 1.0
    %v2535 = vrcp.pop %v2534
    %v2536 = vmul.f32 1.0, %v2535
    %v2538 = vrot.slane %v2514, 2
    %v2540 = vmul.f32 %v2526, %v2538
    %v2541 = vadd.f32 %v1114, %v2540
    %v2542 = vtanh.pop %v2541
    %v2543 = vsub.f32 1.0, %v2536
    %v2544 = vmul.f32 %v2543, %v2542
    %v2545 = vrot.slane %v2371, 6
    %v2547 = vmul.f32 %v2536, %v2545
    %v2548 = vadd.f32 %v2544, %v2547
    %v2549 = vld [vmem:[#allocation4] sm:$0x3]
    %v2550 = vld [vmem:[#allocation18] sm:$0xff]
    %v2551 = vld [vmem:[#allocation18 + $0x8] sm:$0xff]
    %v2552 = vld [vmem:[#allocation18 + $0x10] sm:$0xff]
    %v2553 = vld [vmem:[#allocation18 + $0x18] sm:$0xff]
    %v2554 = vld [vmem:[#allocation18 + $0x20] sm:$0xff]
    %v2555 = vld [vmem:[#allocation18 + $0x28] sm:$0xff]
    %v2556 = vld [vmem:[#allocation18 + $0x30] sm:$0xff]
    %v2557 = vld [vmem:[#allocation18 + $0x38] sm:$0xff]
    %v2558 = vld [vmem:[#allocation18 + $0x40] sm:$0xff]
    %v2559 = vld [vmem:[#allocation18 + $0x48] sm:$0xff]
    %v2560 = vld [vmem:[#allocation18 + $0x50] sm:$0xff]
    %v2561 = vld [vmem:[#allocation18 + $0x58] sm:$0xff]
    %v2562 = vld [vmem:[#allocation18 + $0x60] sm:$0xff]
    %v2563 = vld [vmem:[#allocation18 + $0x68] sm:$0xff]
    %v2564 = vld [vmem:[#allocation18 + $0x70] sm:$0xff]
    %v2565 = vld [vmem:[#allocation18 + $0x78] sm:$0xff]
    %v2566 = vld [vmem:[#allocation18 + $0x80] sm:$0xff]
    %v2567 = vld [vmem:[#allocation18 + $0x88] sm:$0xff]
    %v2568 = vld [vmem:[#allocation18 + $0x90] sm:$0xff]
    %v2569 = vld [vmem:[#allocation18 + $0x98] sm:$0xff]
    %v2570 = vld [vmem:[#allocation18 + $0xa0] sm:$0xff]
    %v2571 = vld [vmem:[#allocation18 + $0xa8] sm:$0xff]
    %v2572 = vld [vmem:[#allocation18 + $0xb0] sm:$0xff]
    %v2573 = vld [vmem:[#allocation18 + $0xb8] sm:$0xff]
    %v2574 = vld [vmem:[#allocation18 + $0xc0] sm:$0xff]
    %v2575 = vld [vmem:[#allocation18 + $0xc8] sm:$0xff]
    %v2576 = vld [vmem:[#allocation18 + $0xd0] sm:$0xff]
    %v2577 = vld [vmem:[#allocation18 + $0xd8] sm:$0xff]
    %v2578 = vld [vmem:[#allocation18 + $0xe0] sm:$0xff]
    %v2579 = vld [vmem:[#allocation18 + $0xe8] sm:$0xff]
    %v2580 = vld [vmem:[#allocation18 + $0xf0] sm:$0xff]
    %v2581 = vld [vmem:[#allocation18 + $0xf8] sm:$0xff]
    %v2582 = vld [vmem:[#allocation18 + $0x100] sm:$0xf]
    %v2583 = vld [vmem:[#allocation18 + $0x108] sm:$0xf]
    %v2584 = vld [vmem:[#allocation18 + $0x110] sm:$0xf]
    %v2585 = vld [vmem:[#allocation18 + $0x118] sm:$0xf]
    %v2586 = vld [vmem:[#allocation18 + $0x120] sm:$0xf]
    %v2587 = vld [vmem:[#allocation18 + $0x128] sm:$0xf]
    %v2588 = vld [vmem:[#allocation18 + $0x130] sm:$0xf]
    %v2589 = vld [vmem:[#allocation18 + $0x138] sm:$0xf]
    %v2590 = vld [vmem:[%s13] sm:$0xff]
    %v2592 = vlaneseq
    %v2593 = vshrl.u32 %v2592, 7
    %v2594 = vsub.s32 0, %v2593
    %v2595 = vrot.slane %v2590, %v2594
    %v2596 = vlaneseq
    %v2597 = vshrl.u32 %v2596, 7
    %v2598 = vsub.s32 1, %v2597
    %v2599 = vrot.slane %v2590, %v2598
    %v2600 = vlaneseq
    %v2601 = vshrl.u32 %v2600, 7
    %v2602 = vsub.s32 2, %v2601
    %v2603 = vrot.slane %v2590, %v2602
    %v2604 = vlaneseq
    %v2605 = vshrl.u32 %v2604, 7
    %v2606 = vsub.s32 3, %v2605
    %v2607 = vrot.slane %v2590, %v2606
    %v2608 = vlaneseq
    %v2609 = vshrl.u32 %v2608, 7
    %v2610 = vsub.s32 4, %v2609
    %v2611 = vrot.slane %v2590, %v2610
    %v2612 = vlaneseq
    %v2613 = vshrl.u32 %v2612, 7
    %v2614 = vsub.s32 5, %v2613
    %v2615 = vrot.slane %v2590, %v2614
    %v2616 = vlaneseq
    %v2617 = vshrl.u32 %v2616, 7
    %v2618 = vsub.s32 6, %v2617
    %v2619 = vrot.slane %v2590, %v2618
    %v2620 = vlaneseq
    %v2621 = vshrl.u32 %v2620, 7
    %v2622 = vsub.s32 7, %v2621
    %v2623 = vrot.slane %v2590, %v2622
    %v2633 = vrot.slane %v2548, 6
    %v2634 = vsel %vm1147, %v2633, 0
    %v2637 = vsel %vm771, %v2582, 0
    %v2640 = vsel %vm771, %v2583, 0
    %v2643 = vsel %vm771, %v2584, 0
    %v2646 = vsel %vm771, %v2585, 0
    %v2649 = vsel %vm771, %v2586, 0
    %v2652 = vsel %vm771, %v2587, 0
    %v2655 = vsel %vm771, %v2588, 0
    %v2658 = vsel %vm771, %v2589, 0
    %2660 = vmatprep.subr.mxu0 0.0
    %2661 = vmatpush1.msra.mxu0 0.0
    %2662 = vmatprep.subr.mxu0 0.0
    %2663 = vmatpush1.msra.mxu0 0.0
    %2664 = vmatprep.subr.mxu0 0.0
    %2665 = vmatpush1.msra.mxu0 0.0
    %2666 = vmatprep.subr.mxu0 0.0
    %2667 = vmatpush1.msra.mxu0 0.0
    %2668 = vmatprep.subr.mxu0 0.0
    %2669 = vmatpush1.msra.mxu0 0.0
    %2670 = vmatprep.subr.mxu0 0.0
    %2671 = vmatpush1.msra.mxu0 0.0
    %2672 = vmatprep.subr.mxu0 0.0
    %2673 = vmatpush1.msra.mxu0 0.0
    %2674 = vmatprep.subr.mxu0 0.0
    %2675 = vmatpush1.msra.mxu0 0.0
    %2676 = vmatprep.subr.mxu0 0.0
    %2677 = vmatpush1.msra.mxu0 0.0
    %2678 = vmatprep.subr.mxu0 0.0
    %2679 = vmatpush1.msra.mxu0 0.0
    %2680 = vmatprep.subr.mxu0 0.0
    %2681 = vmatpush1.msra.mxu0 0.0
    %2682 = vmatprep.subr.mxu0 %v2640
    %2683 = vmatpush1.msra.mxu0 %v2637
    %2684 = vmatprep.subr.mxu0 %v2575
    %2685 = vmatpush1.msra.mxu0 %v2574
    %2686 = vmatprep.subr.mxu0 %v2567
    %2687 = vmatpush1.msra.mxu0 %v2566
    %2688 = vmatprep.subr.mxu0 %v2559
    %2689 = vmatpush1.msra.mxu0 %v2558
    %2690 = vmatprep.subr.mxu0 %v2551
    %2691 = vmatpush1.msra.mxu0 %v2550
    %2692 = vmatprep.subr.mxu0 0.0
    %2693 = vmatpush2.msra.mxu0 0.0
    %2694 = vmatprep.subr.mxu0 0.0
    %2695 = vmatpush2.msra.mxu0 0.0
    %2696 = vmatprep.subr.mxu0 0.0
    %2697 = vmatpush2.msra.mxu0 0.0
    %2698 = vmatprep.subr.mxu0 0.0
    %2699 = vmatpush2.msra.mxu0 0.0
    %2700 = vmatprep.subr.mxu0 0.0
    %2701 = vmatpush2.msra.mxu0 0.0
    %2702 = vmatprep.subr.mxu0 0.0
    %2703 = vmatpush2.msra.mxu0 0.0
    %2704 = vmatprep.subr.mxu0 0.0
    %2705 = vmatpush2.msra.mxu0 0.0
    %2706 = vmatprep.subr.mxu0 0.0
    %2707 = vmatpush2.msra.mxu0 0.0
    %2708 = vmatprep.subr.mxu0 0.0
    %2709 = vmatpush2.msra.mxu0 0.0
    %2710 = vmatprep.subr.mxu0 0.0
    %2711 = vmatpush2.msra.mxu0 0.0
    %2712 = vmatprep.subr.mxu0 0.0
    %2713 = vmatpush2.msra.mxu0 0.0
    %2714 = vmatprep.subr.mxu0 0.0
    %2715 = vmatpush2.msra.mxu0 0.0
    %2716 = vmatprep.subr.mxu0 0.0
    %2717 = vmatpush2.msra.mxu0 0.0
    %2718 = vmatprep.subr.mxu0 0.0
    %2719 = vmatpush2.msra.mxu0 0.0
    %2720 = vmatprep.subr.mxu0 0.0
    %2721 = vmatpush2.msra.mxu0 0.0
    %2722 = vmatprep.subr.mxu0 0.0
    %2723 = vmatpush2.msra.mxu0 0.0
    %2724 = vmatprep.mubr.f32.mxu0 0.0
    %2725 = vmatmul.mubr.f32.gmra.mxu0 %v2634
    %v2726 = vpop.f32.mrf.mxu0
    %v2727 = vadd.f32 %v2595, %v2726
    %v2728 = vpop.f32.mrf.mxu0
    %v2729 = vadd.f32 %v2599, %v2728
    %2730 = vdwg.mxu0
    %2731 = vmatprep.subr.mxu0 0.0
    %2732 = vmatpush1.msra.mxu0 0.0
    %2733 = vmatprep.subr.mxu0 0.0
    %2734 = vmatpush1.msra.mxu0 0.0
    %2735 = vmatprep.subr.mxu0 0.0
    %2736 = vmatpush1.msra.mxu0 0.0
    %2737 = vmatprep.subr.mxu0 0.0
    %2738 = vmatpush1.msra.mxu0 0.0
    %2739 = vmatprep.subr.mxu0 0.0
    %2740 = vmatpush1.msra.mxu0 0.0
    %2741 = vmatprep.subr.mxu0 0.0
    %2742 = vmatpush1.msra.mxu0 0.0
    %2743 = vmatprep.subr.mxu0 0.0
    %2744 = vmatpush1.msra.mxu0 0.0
    %2745 = vmatprep.subr.mxu0 0.0
    %2746 = vmatpush1.msra.mxu0 0.0
    %2747 = vmatprep.subr.mxu0 0.0
    %2748 = vmatpush1.msra.mxu0 0.0
    %2749 = vmatprep.subr.mxu0 0.0
    %2750 = vmatpush1.msra.mxu0 0.0
    %2751 = vmatprep.subr.mxu0 0.0
    %2752 = vmatpush1.msra.mxu0 0.0
    %2753 = vmatprep.subr.mxu0 %v2646
    %2754 = vmatpush1.msra.mxu0 %v2643
    %2755 = vmatprep.subr.mxu0 %v2577
    %2756 = vmatpush1.msra.mxu0 %v2576
    %2757 = vmatprep.subr.mxu0 %v2569
    %2758 = vmatpush1.msra.mxu0 %v2568
    %2759 = vmatprep.subr.mxu0 %v2561
    %2760 = vmatpush1.msra.mxu0 %v2560
    %2761 = vmatprep.subr.mxu0 %v2553
    %2762 = vmatpush1.msra.mxu0 %v2552
    %2763 = vmatprep.subr.mxu0 0.0
    %2764 = vmatpush2.msra.mxu0 0.0
    %2765 = vmatprep.subr.mxu0 0.0
    %2766 = vmatpush2.msra.mxu0 0.0
    %2767 = vmatprep.subr.mxu0 0.0
    %2768 = vmatpush2.msra.mxu0 0.0
    %2769 = vmatprep.subr.mxu0 0.0
    %2770 = vmatpush2.msra.mxu0 0.0
    %2771 = vmatprep.subr.mxu0 0.0
    %2772 = vmatpush2.msra.mxu0 0.0
    %2773 = vmatprep.subr.mxu0 0.0
    %2774 = vmatpush2.msra.mxu0 0.0
    %2775 = vmatprep.subr.mxu0 0.0
    %2776 = vmatpush2.msra.mxu0 0.0
    %2777 = vmatprep.subr.mxu0 0.0
    %2778 = vmatpush2.msra.mxu0 0.0
    %2779 = vmatprep.subr.mxu0 0.0
    %2780 = vmatpush2.msra.mxu0 0.0
    %2781 = vmatprep.subr.mxu0 0.0
    %2782 = vmatpush2.msra.mxu0 0.0
    %2783 = vmatprep.subr.mxu0 0.0
    %2784 = vmatpush2.msra.mxu0 0.0
    %2785 = vmatprep.subr.mxu0 0.0
    %2786 = vmatpush2.msra.mxu0 0.0
    %2787 = vmatprep.subr.mxu0 0.0
    %2788 = vmatpush2.msra.mxu0 0.0
    %2789 = vmatprep.subr.mxu0 0.0
    %2790 = vmatpush2.msra.mxu0 0.0
    %2791 = vmatprep.subr.mxu0 0.0
    %2792 = vmatpush2.msra.mxu0 0.0
    %2793 = vmatprep.subr.mxu0 0.0
    %2794 = vmatpush2.msra.mxu0 0.0
    %2795 = vmatprep.mubr.f32.mxu0 0.0
    %2796 = vmatmul.mubr.f32.gmra.mxu0 %v2634
    %v2797 = vpop.f32.mrf.mxu0
    %v2798 = vadd.f32 %v2603, %v2797
    %v2799 = vpop.f32.mrf.mxu0
    %v2800 = vadd.f32 %v2607, %v2799
    %2801 = vdwg.mxu0
    %2802 = vmatprep.subr.mxu0 0.0
    %2803 = vmatpush1.msra.mxu0 0.0
    %2804 = vmatprep.subr.mxu0 0.0
    %2805 = vmatpush1.msra.mxu0 0.0
    %2806 = vmatprep.subr.mxu0 0.0
    %2807 = vmatpush1.msra.mxu0 0.0
    %2808 = vmatprep.subr.mxu0 0.0
    %2809 = vmatpush1.msra.mxu0 0.0
    %2810 = vmatprep.subr.mxu0 0.0
    %2811 = vmatpush1.msra.mxu0 0.0
    %2812 = vmatprep.subr.mxu0 0.0
    %2813 = vmatpush1.msra.mxu0 0.0
    %2814 = vmatprep.subr.mxu0 0.0
    %2815 = vmatpush1.msra.mxu0 0.0
    %2816 = vmatprep.subr.mxu0 0.0
    %2817 = vmatpush1.msra.mxu0 0.0
    %2818 = vmatprep.subr.mxu0 0.0
    %2819 = vmatpush1.msra.mxu0 0.0
    %2820 = vmatprep.subr.mxu0 0.0
    %2821 = vmatpush1.msra.mxu0 0.0
    %2822 = vmatprep.subr.mxu0 0.0
    %2823 = vmatpush1.msra.mxu0 0.0
    %2824 = vmatprep.subr.mxu0 %v2652
    %2825 = vmatpush1.msra.mxu0 %v2649
    %2826 = vmatprep.subr.mxu0 %v2579
    %2827 = vmatpush1.msra.mxu0 %v2578
    %2828 = vmatprep.subr.mxu0 %v2571
    %2829 = vmatpush1.msra.mxu0 %v2570
    %2830 = vmatprep.subr.mxu0 %v2563
    %2831 = vmatpush1.msra.mxu0 %v2562
    %2832 = vmatprep.subr.mxu0 %v2555
    %2833 = vmatpush1.msra.mxu0 %v2554
    %2834 = vmatprep.subr.mxu0 0.0
    %2835 = vmatpush2.msra.mxu0 0.0
    %2836 = vmatprep.subr.mxu0 0.0
    %2837 = vmatpush2.msra.mxu0 0.0
    %2838 = vmatprep.subr.mxu0 0.0
    %2839 = vmatpush2.msra.mxu0 0.0
    %2840 = vmatprep.subr.mxu0 0.0
    %2841 = vmatpush2.msra.mxu0 0.0
    %2842 = vmatprep.subr.mxu0 0.0
    %2843 = vmatpush2.msra.mxu0 0.0
    %2844 = vmatprep.subr.mxu0 0.0
    %2845 = vmatpush2.msra.mxu0 0.0
    %2846 = vmatprep.subr.mxu0 0.0
    %2847 = vmatpush2.msra.mxu0 0.0
    %2848 = vmatprep.subr.mxu0 0.0
    %2849 = vmatpush2.msra.mxu0 0.0
    %2850 = vmatprep.subr.mxu0 0.0
    %2851 = vmatpush2.msra.mxu0 0.0
    %2852 = vmatprep.subr.mxu0 0.0
    %2853 = vmatpush2.msra.mxu0 0.0
    %2854 = vmatprep.subr.mxu0 0.0
    %2855 = vmatpush2.msra.mxu0 0.0
    %2856 = vmatprep.subr.mxu0 0.0
    %2857 = vmatpush2.msra.mxu0 0.0
    %2858 = vmatprep.subr.mxu0 0.0
    %2859 = vmatpush2.msra.mxu0 0.0
    %2860 = vmatprep.subr.mxu0 0.0
    %2861 = vmatpush2.msra.mxu0 0.0
    %2862 = vmatprep.subr.mxu0 0.0
    %2863 = vmatpush2.msra.mxu0 0.0
    %2864 = vmatprep.subr.mxu0 0.0
    %2865 = vmatpush2.msra.mxu0 0.0
    %2866 = vmatprep.mubr.f32.mxu0 0.0
    %2867 = vmatmul.mubr.f32.gmra.mxu0 %v2634
    %v2868 = vpop.f32.mrf.mxu0
    %v2869 = vadd.f32 %v2611, %v2868
    %v2870 = vpop.f32.mrf.mxu0
    %v2871 = vadd.f32 %v2615, %v2870
    %2872 = vdwg.mxu0
    %2873 = vmatprep.subr.mxu0 0.0
    %2874 = vmatpush1.msra.mxu0 0.0
    %2875 = vmatprep.subr.mxu0 0.0
    %2876 = vmatpush1.msra.mxu0 0.0
    %2877 = vmatprep.subr.mxu0 0.0
    %2878 = vmatpush1.msra.mxu0 0.0
    %2879 = vmatprep.subr.mxu0 0.0
    %2880 = vmatpush1.msra.mxu0 0.0
    %2881 = vmatprep.subr.mxu0 0.0
    %2882 = vmatpush1.msra.mxu0 0.0
    %2883 = vmatprep.subr.mxu0 0.0
    %2884 = vmatpush1.msra.mxu0 0.0
    %2885 = vmatprep.subr.mxu0 0.0
    %2886 = vmatpush1.msra.mxu0 0.0
    %2887 = vmatprep.subr.mxu0 0.0
    %2888 = vmatpush1.msra.mxu0 0.0
    %2889 = vmatprep.subr.mxu0 0.0
    %2890 = vmatpush1.msra.mxu0 0.0
    %2891 = vmatprep.subr.mxu0 0.0
    %2892 = vmatpush1.msra.mxu0 0.0
    %2893 = vmatprep.subr.mxu0 0.0
    %2894 = vmatpush1.msra.mxu0 0.0
    %2895 = vmatprep.subr.mxu0 %v2658
    %2896 = vmatpush1.msra.mxu0 %v2655
    %2897 = vmatprep.subr.mxu0 %v2581
    %2898 = vmatpush1.msra.mxu0 %v2580
    %2899 = vmatprep.subr.mxu0 %v2573
    %2900 = vmatpush1.msra.mxu0 %v2572
    %2901 = vmatprep.subr.mxu0 %v2565
    %2902 = vmatpush1.msra.mxu0 %v2564
    %2903 = vmatprep.subr.mxu0 %v2557
    %2904 = vmatpush1.msra.mxu0 %v2556
    %2905 = vmatprep.subr.mxu0 0.0
    %2906 = vmatpush2.msra.mxu0 0.0
    %2907 = vmatprep.subr.mxu0 0.0
    %2908 = vmatpush2.msra.mxu0 0.0
    %2909 = vmatprep.subr.mxu0 0.0
    %2910 = vmatpush2.msra.mxu0 0.0
    %2911 = vmatprep.subr.mxu0 0.0
    %2912 = vmatpush2.msra.mxu0 0.0
    %2913 = vmatprep.subr.mxu0 0.0
    %2914 = vmatpush2.msra.mxu0 0.0
    %2915 = vmatprep.subr.mxu0 0.0
    %2916 = vmatpush2.msra.mxu0 0.0
    %2917 = vmatprep.subr.mxu0 0.0
    %2918 = vmatpush2.msra.mxu0 0.0
    %2919 = vmatprep.subr.mxu0 0.0
    %2920 = vmatpush2.msra.mxu0 0.0
    %2921 = vmatprep.subr.mxu0 0.0
    %2922 = vmatpush2.msra.mxu0 0.0
    %2923 = vmatprep.subr.mxu0 0.0
    %2924 = vmatpush2.msra.mxu0 0.0
    %2925 = vmatprep.subr.mxu0 0.0
    %2926 = vmatpush2.msra.mxu0 0.0
    %2927 = vmatprep.subr.mxu0 0.0
    %2928 = vmatpush2.msra.mxu0 0.0
    %2929 = vmatprep.subr.mxu0 0.0
    %2930 = vmatpush2.msra.mxu0 0.0
    %2931 = vmatprep.subr.mxu0 0.0
    %2932 = vmatpush2.msra.mxu0 0.0
    %2933 = vmatprep.subr.mxu0 0.0
    %2934 = vmatpush2.msra.mxu0 0.0
    %2935 = vmatprep.subr.mxu0 0.0
    %2936 = vmatpush2.msra.mxu0 0.0
    %2937 = vmatprep.mubr.f32.mxu0 0.0
    %2938 = vmatmul.mubr.f32.gmra.mxu0 %v2634
    %v2939 = vpop.f32.mrf.mxu0
    %v2940 = vadd.f32 %v2619, %v2939
    %v2941 = vpop.f32.mrf.mxu0
    %v2942 = vadd.f32 %v2623, %v2941
    %2943 = vdwg.mxu0
    %v2944 = vmul.f32 %v2727, 0.01
    %v2945 = vmul.f32 %v2729, 0.01
    %v2946 = vmul.f32 %v2798, 0.01
    %v2947 = vmul.f32 %v2800, 0.01
    %v2948 = vmul.f32 %v2869, 0.01
    %v2949 = vmul.f32 %v2871, 0.01
    %v2950 = vmul.f32 %v2940, 0.01
    %v2951 = vmul.f32 %v2942, 0.01
    %v2952 = vmax.f32 %v2727, %v2944
    %v2953 = vmax.f32 %v2729, %v2945
    %v2954 = vmax.f32 %v2798, %v2946
    %v2955 = vmax.f32 %v2800, %v2947
    %v2956 = vmax.f32 %v2869, %v2948
    %v2957 = vmax.f32 %v2871, %v2949
    %v2958 = vmax.f32 %v2940, %v2950
    %v2959 = vmax.f32 %v2942, %v2951
    %v2960 = vld [vmem:[%s16] sm:$0xff]
    %v2961 = vld [vmem:[%s16 + $0x8] sm:$0xf]
    %v2962 = vld [vmem:[%s17] sm:$0x3f]
    %v2964 = vlaneseq
    %v2965 = vshrl.u32 %v2964, 7
    %v2966 = vsub.s32 0, %v2965
    %v2967 = vrot.slane %v2962, %v2966
    %v2968 = vlaneseq
    %v2969 = vshrl.u32 %v2968, 7
    %v2970 = vsub.s32 1, %v2969
    %v2971 = vrot.slane %v2962, %v2970
    %v2972 = vlaneseq
    %v2973 = vshrl.u32 %v2972, 7
    %v2974 = vsub.s32 2, %v2973
    %v2975 = vrot.slane %v2962, %v2974
    %v2976 = vlaneseq
    %v2977 = vshrl.u32 %v2976, 7
    %v2978 = vsub.s32 3, %v2977
    %v2979 = vrot.slane %v2962, %v2978
    %v2980 = vlaneseq
    %v2981 = vshrl.u32 %v2980, 7
    %v2982 = vsub.s32 4, %v2981
    %v2983 = vrot.slane %v2962, %v2982
    %v2984 = vlaneseq
    %v2985 = vshrl.u32 %v2984, 7
    %v2986 = vsub.s32 5, %v2985
    %v2987 = vrot.slane %v2962, %v2986
    %v2996 = vcombine.high %v2960, %v2960
    %v2998 = vunpack.c.l.s4 1983009808
    %v2999 = vunpack.c.0.s8 %v2998
    %v3000 = vlaneseq
    %v3001 = vshrl.u32 %v3000, 7
    %v3002 = vsub.s32 %v2999, %v3001
    %v3003 = vrot.slane %v2960, %v3002
    %v3005 = vunpack.c.l.s4 1983009808
    %v3006 = vunpack.c.0.s8 %v3005
    %v3007 = vlaneseq
    %v3008 = vshrl.u32 %v3007, 7
    %v3009 = vsub.s32 %v3006, %v3008
    %v3010 = vrot.slane %v2996, %v3009
    %v3011 = vcombine.high %v3003, %v3003
    %v3012 = vcombine.high %v3010, %v3010
    %v3014 = vunpack.c.l.s4 1983009808
    %v3015 = vunpack.c.0.s8 %v3014
    %v3016 = vlaneseq
    %v3017 = vshrl.u32 %v3016, 7
    %v3018 = vsub.s32 %v3015, %v3017
    %v3019 = vrot.slane %v2961, %v3018
    %v3020 = vcombine.high %v3019, %v3019
    %vm3021 = vcmask 15360
    %v3023 = vsel %vm3021, %v2549, 0
    %vm3025 = vcmask 1041408
    %v3026 = vsel %vm3025, %v3003, 0
    %v3028 = vsel %vm3025, %v3011, 0
    %v3030 = vsel %vm3025, %v3010, 0
    %v3032 = vsel %vm3025, %v3012, 0
    %v3034 = vsel %vm3025, %v3019, 0
    %v3036 = vsel %vm3025, %v3020, 0
    %3038 = vmatprep.subr.mxu0 0.0
    %3039 = vmatpush1.msra.mxu0 0.0
    %3040 = vmatprep.subr.mxu0 0.0
    %3041 = vmatpush1.msra.mxu0 0.0
    %3042 = vmatprep.subr.mxu0 0.0
    %3043 = vmatpush1.msra.mxu0 0.0
    %3044 = vmatprep.subr.mxu0 0.0
    %3045 = vmatpush1.msra.mxu0 0.0
    %3046 = vmatprep.subr.mxu0 0.0
    %3047 = vmatpush1.msra.mxu0 0.0
    %3048 = vmatprep.subr.mxu0 0.0
    %3049 = vmatpush1.msra.mxu0 0.0
    %3050 = vmatprep.subr.mxu0 0.0
    %3051 = vmatpush1.msra.mxu0 0.0
    %3052 = vmatprep.subr.mxu0 0.0
    %3053 = vmatpush1.msra.mxu0 0.0
    %3054 = vmatprep.subr.mxu0 0.0
    %3055 = vmatpush1.msra.mxu0 0.0
    %3056 = vmatprep.subr.mxu0 0.0
    %3057 = vmatpush1.msra.mxu0 0.0
    %3058 = vmatprep.subr.mxu0 0.0
    %3059 = vmatpush1.msra.mxu0 0.0
    %3060 = vmatprep.subr.mxu0 0.0
    %3061 = vmatpush1.msra.mxu0 0.0
    %3062 = vmatprep.subr.mxu0 0.0
    %3063 = vmatpush1.msra.mxu0 0.0
    %3064 = vmatprep.subr.mxu0 0.0
    %3065 = vmatpush1.msra.mxu0 0.0
    %3066 = vmatprep.subr.mxu0 0.0
    %3067 = vmatpush1.msra.mxu0 0.0
    %3068 = vmatprep.subr.mxu0 %v3028
    %3069 = vmatpush1.msra.mxu0 %v3026
    %3070 = vmatprep.subr.mxu0 0.0
    %3071 = vmatpush2.msra.mxu0 0.0
    %3072 = vmatprep.subr.mxu0 0.0
    %3073 = vmatpush2.msra.mxu0 0.0
    %3074 = vmatprep.subr.mxu0 0.0
    %3075 = vmatpush2.msra.mxu0 0.0
    %3076 = vmatprep.subr.mxu0 0.0
    %3077 = vmatpush2.msra.mxu0 0.0
    %3078 = vmatprep.subr.mxu0 0.0
    %3079 = vmatpush2.msra.mxu0 0.0
    %3080 = vmatprep.subr.mxu0 0.0
    %3081 = vmatpush2.msra.mxu0 0.0
    %3082 = vmatprep.subr.mxu0 0.0
    %3083 = vmatpush2.msra.mxu0 0.0
    %3084 = vmatprep.subr.mxu0 0.0
    %3085 = vmatpush2.msra.mxu0 0.0
    %3086 = vmatprep.subr.mxu0 0.0
    %3087 = vmatpush2.msra.mxu0 0.0
    %3088 = vmatprep.subr.mxu0 0.0
    %3089 = vmatpush2.msra.mxu0 0.0
    %3090 = vmatprep.subr.mxu0 0.0
    %3091 = vmatpush2.msra.mxu0 0.0
    %3092 = vmatprep.subr.mxu0 0.0
    %3093 = vmatpush2.msra.mxu0 0.0
    %3094 = vmatprep.subr.mxu0 0.0
    %3095 = vmatpush2.msra.mxu0 0.0
    %3096 = vmatprep.subr.mxu0 0.0
    %3097 = vmatpush2.msra.mxu0 0.0
    %3098 = vmatprep.subr.mxu0 0.0
    %3099 = vmatpush2.msra.mxu0 0.0
    %3100 = vmatprep.subr.mxu0 0.0
    %3101 = vmatpush2.msra.mxu0 0.0
    %3102 = vmatprep.mubr.f32.mxu0 0.0
    %3103 = vmatmul.mubr.f32.gmra.mxu0 %v3023
    %v3104 = vpop.f32.mrf.mxu0
    %v3105 = vadd.f32 %v2967, %v3104
    %v3106 = vpop.f32.mrf.mxu0
    %v3107 = vadd.f32 %v2971, %v3106
    %3108 = vdwg.mxu0
    %3109 = vmatprep.subr.mxu0 0.0
    %3110 = vmatpush1.msra.mxu0 0.0
    %3111 = vmatprep.subr.mxu0 0.0
    %3112 = vmatpush1.msra.mxu0 0.0
    %3113 = vmatprep.subr.mxu0 0.0
    %3114 = vmatpush1.msra.mxu0 0.0
    %3115 = vmatprep.subr.mxu0 0.0
    %3116 = vmatpush1.msra.mxu0 0.0
    %3117 = vmatprep.subr.mxu0 0.0
    %3118 = vmatpush1.msra.mxu0 0.0
    %3119 = vmatprep.subr.mxu0 0.0
    %3120 = vmatpush1.msra.mxu0 0.0
    %3121 = vmatprep.subr.mxu0 0.0
    %3122 = vmatpush1.msra.mxu0 0.0
    %3123 = vmatprep.subr.mxu0 0.0
    %3124 = vmatpush1.msra.mxu0 0.0
    %3125 = vmatprep.subr.mxu0 0.0
    %3126 = vmatpush1.msra.mxu0 0.0
    %3127 = vmatprep.subr.mxu0 0.0
    %3128 = vmatpush1.msra.mxu0 0.0
    %3129 = vmatprep.subr.mxu0 0.0
    %3130 = vmatpush1.msra.mxu0 0.0
    %3131 = vmatprep.subr.mxu0 0.0
    %3132 = vmatpush1.msra.mxu0 0.0
    %3133 = vmatprep.subr.mxu0 0.0
    %3134 = vmatpush1.msra.mxu0 0.0
    %3135 = vmatprep.subr.mxu0 0.0
    %3136 = vmatpush1.msra.mxu0 0.0
    %3137 = vmatprep.subr.mxu0 0.0
    %3138 = vmatpush1.msra.mxu0 0.0
    %3139 = vmatprep.subr.mxu0 %v3032
    %3140 = vmatpush1.msra.mxu0 %v3030
    %3141 = vmatprep.subr.mxu0 0.0
    %3142 = vmatpush2.msra.mxu0 0.0
    %3143 = vmatprep.subr.mxu0 0.0
    %3144 = vmatpush2.msra.mxu0 0.0
    %3145 = vmatprep.subr.mxu0 0.0
    %3146 = vmatpush2.msra.mxu0 0.0
    %3147 = vmatprep.subr.mxu0 0.0
    %3148 = vmatpush2.msra.mxu0 0.0
    %3149 = vmatprep.subr.mxu0 0.0
    %3150 = vmatpush2.msra.mxu0 0.0
    %3151 = vmatprep.subr.mxu0 0.0
    %3152 = vmatpush2.msra.mxu0 0.0
    %3153 = vmatprep.subr.mxu0 0.0
    %3154 = vmatpush2.msra.mxu0 0.0
    %3155 = vmatprep.subr.mxu0 0.0
    %3156 = vmatpush2.msra.mxu0 0.0
    %3157 = vmatprep.subr.mxu0 0.0
    %3158 = vmatpush2.msra.mxu0 0.0
    %3159 = vmatprep.subr.mxu0 0.0
    %3160 = vmatpush2.msra.mxu0 0.0
    %3161 = vmatprep.subr.mxu0 0.0
    %3162 = vmatpush2.msra.mxu0 0.0
    %3163 = vmatprep.subr.mxu0 0.0
    %3164 = vmatpush2.msra.mxu0 0.0
    %3165 = vmatprep.subr.mxu0 0.0
    %3166 = vmatpush2.msra.mxu0 0.0
    %3167 = vmatprep.subr.mxu0 0.0
    %3168 = vmatpush2.msra.mxu0 0.0
    %3169 = vmatprep.subr.mxu0 0.0
    %3170 = vmatpush2.msra.mxu0 0.0
    %3171 = vmatprep.subr.mxu0 0.0
    %3172 = vmatpush2.msra.mxu0 0.0
    %3173 = vmatprep.mubr.f32.mxu0 0.0
    %3174 = vmatmul.mubr.f32.gmra.mxu0 %v3023
    %v3175 = vpop.f32.mrf.mxu0
    %v3176 = vadd.f32 %v2975, %v3175
    %v3177 = vpop.f32.mrf.mxu0
    %v3178 = vadd.f32 %v2979, %v3177
    %3179 = vdwg.mxu0
    %3180 = vmatprep.subr.mxu0 0.0
    %3181 = vmatpush1.msra.mxu0 0.0
    %3182 = vmatprep.subr.mxu0 0.0
    %3183 = vmatpush1.msra.mxu0 0.0
    %3184 = vmatprep.subr.mxu0 0.0
    %3185 = vmatpush1.msra.mxu0 0.0
    %3186 = vmatprep.subr.mxu0 0.0
    %3187 = vmatpush1.msra.mxu0 0.0
    %3188 = vmatprep.subr.mxu0 0.0
    %3189 = vmatpush1.msra.mxu0 0.0
    %3190 = vmatprep.subr.mxu0 0.0
    %3191 = vmatpush1.msra.mxu0 0.0
    %3192 = vmatprep.subr.mxu0 0.0
    %3193 = vmatpush1.msra.mxu0 0.0
    %3194 = vmatprep.subr.mxu0 0.0
    %3195 = vmatpush1.msra.mxu0 0.0
    %3196 = vmatprep.subr.mxu0 0.0
    %3197 = vmatpush1.msra.mxu0 0.0
    %3198 = vmatprep.subr.mxu0 0.0
    %3199 = vmatpush1.msra.mxu0 0.0
    %3200 = vmatprep.subr.mxu0 0.0
    %3201 = vmatpush1.msra.mxu0 0.0
    %3202 = vmatprep.subr.mxu0 0.0
    %3203 = vmatpush1.msra.mxu0 0.0
    %3204 = vmatprep.subr.mxu0 0.0
    %3205 = vmatpush1.msra.mxu0 0.0
    %3206 = vmatprep.subr.mxu0 0.0
    %3207 = vmatpush1.msra.mxu0 0.0
    %3208 = vmatprep.subr.mxu0 0.0
    %3209 = vmatpush1.msra.mxu0 0.0
    %3210 = vmatprep.subr.mxu0 %v3036
    %3211 = vmatpush1.msra.mxu0 %v3034
    %3212 = vmatprep.subr.mxu0 0.0
    %3213 = vmatpush2.msra.mxu0 0.0
    %3214 = vmatprep.subr.mxu0 0.0
    %3215 = vmatpush2.msra.mxu0 0.0
    %3216 = vmatprep.subr.mxu0 0.0
    %3217 = vmatpush2.msra.mxu0 0.0
    %3218 = vmatprep.subr.mxu0 0.0
    %3219 = vmatpush2.msra.mxu0 0.0
    %3220 = vmatprep.subr.mxu0 0.0
    %3221 = vmatpush2.msra.mxu0 0.0
    %3222 = vmatprep.subr.mxu0 0.0
    %3223 = vmatpush2.msra.mxu0 0.0
    %3224 = vmatprep.subr.mxu0 0.0
    %3225 = vmatpush2.msra.mxu0 0.0
    %3226 = vmatprep.subr.mxu0 0.0
    %3227 = vmatpush2.msra.mxu0 0.0
    %3228 = vmatprep.subr.mxu0 0.0
    %3229 = vmatpush2.msra.mxu0 0.0
    %3230 = vmatprep.subr.mxu0 0.0
    %3231 = vmatpush2.msra.mxu0 0.0
    %3232 = vmatprep.subr.mxu0 0.0
    %3233 = vmatpush2.msra.mxu0 0.0
    %3234 = vmatprep.subr.mxu0 0.0
    %3235 = vmatpush2.msra.mxu0 0.0
    %3236 = vmatprep.subr.mxu0 0.0
    %3237 = vmatpush2.msra.mxu0 0.0
    %3238 = vmatprep.subr.mxu0 0.0
    %3239 = vmatpush2.msra.mxu0 0.0
    %3240 = vmatprep.subr.mxu0 0.0
    %3241 = vmatpush2.msra.mxu0 0.0
    %3242 = vmatprep.subr.mxu0 0.0
    %3243 = vmatpush2.msra.mxu0 0.0
    %3244 = vmatprep.mubr.f32.mxu0 0.0
    %3245 = vmatmul.mubr.f32.gmra.mxu0 %v3023
    %v3246 = vpop.f32.mrf.mxu0
    %v3247 = vadd.f32 %v2983, %v3246
    %v3248 = vpop.f32.mrf.mxu0
    %v3249 = vadd.f32 %v2987, %v3248
    %3250 = vdwg.mxu0
    %v3251 = vld [vmem:[#allocation20] sm:$0xff]
    %v3252 = vld [vmem:[#allocation20 + $0x8] sm:$0xff]
    %v3253 = vld [vmem:[#allocation20 + $0x10] sm:$0xff]
    %v3254 = vld [vmem:[#allocation20 + $0x18] sm:$0xff]
    %v3255 = vld [vmem:[#allocation20 + $0x20] sm:$0xff]
    %v3256 = vld [vmem:[#allocation20 + $0x28] sm:$0xff]
    %v3257 = vld [vmem:[#allocation20 + $0x30] sm:$0xff]
    %v3258 = vld [vmem:[#allocation20 + $0x38] sm:$0xff]
    %v3259 = vld [vmem:[#allocation20 + $0x40] sm:$0xff]
    %v3260 = vld [vmem:[#allocation20 + $0x48] sm:$0xff]
    %v3261 = vld [vmem:[#allocation20 + $0x50] sm:$0xff]
    %v3262 = vld [vmem:[#allocation20 + $0x58] sm:$0xff]
    %v3263 = vld [vmem:[#allocation20 + $0x60] sm:$0xff]
    %v3264 = vld [vmem:[#allocation20 + $0x68] sm:$0xff]
    %v3265 = vld [vmem:[#allocation20 + $0x70] sm:$0xff]
    %v3266 = vld [vmem:[#allocation20 + $0x78] sm:$0xff]
    %v3267 = vld [vmem:[#allocation20 + $0x80] sm:$0xff]
    %v3268 = vld [vmem:[#allocation20 + $0x88] sm:$0xff]
    %v3269 = vld [vmem:[#allocation20 + $0x90] sm:$0xff]
    %v3270 = vld [vmem:[#allocation20 + $0x98] sm:$0xff]
    %v3271 = vld [vmem:[#allocation20 + $0xa0] sm:$0xff]
    %v3272 = vld [vmem:[#allocation20 + $0xa8] sm:$0xff]
    %v3273 = vld [vmem:[#allocation20 + $0xb0] sm:$0xff]
    %v3274 = vld [vmem:[#allocation20 + $0xb8] sm:$0xff]
    %v3275 = vld [vmem:[#allocation20 + $0xc0] sm:$0xff]
    %v3276 = vld [vmem:[#allocation20 + $0xc8] sm:$0xff]
    %v3277 = vld [vmem:[#allocation20 + $0xd0] sm:$0xff]
    %v3278 = vld [vmem:[#allocation20 + $0xd8] sm:$0xff]
    %v3279 = vld [vmem:[#allocation20 + $0xe0] sm:$0xff]
    %v3280 = vld [vmem:[#allocation20 + $0xe8] sm:$0xff]
    %v3281 = vld [vmem:[#allocation20 + $0xf0] sm:$0xff]
    %v3282 = vld [vmem:[#allocation20 + $0xf8] sm:$0xff]
    %v3283 = vld [vmem:[#allocation20 + $0x100] sm:$0xff]
    %v3284 = vld [vmem:[#allocation20 + $0x108] sm:$0xff]
    %v3285 = vld [vmem:[#allocation20 + $0x110] sm:$0xff]
    %v3286 = vld [vmem:[#allocation20 + $0x118] sm:$0xff]
    %v3287 = vld [vmem:[#allocation20 + $0x120] sm:$0xff]
    %v3288 = vld [vmem:[#allocation20 + $0x128] sm:$0xff]
    %v3289 = vld [vmem:[#allocation20 + $0x130] sm:$0xff]
    %v3290 = vld [vmem:[#allocation20 + $0x138] sm:$0xff]
    %v3291 = vld [vmem:[#allocation20 + $0x140] sm:$0xff]
    %v3292 = vld [vmem:[#allocation20 + $0x148] sm:$0xff]
    %v3293 = vld [vmem:[#allocation20 + $0x150] sm:$0xff]
    %v3294 = vld [vmem:[#allocation20 + $0x158] sm:$0xff]
    %v3295 = vld [vmem:[#allocation20 + $0x160] sm:$0xff]
    %v3296 = vld [vmem:[#allocation20 + $0x168] sm:$0xff]
    %v3297 = vld [vmem:[#allocation20 + $0x170] sm:$0xff]
    %v3298 = vld [vmem:[#allocation20 + $0x178] sm:$0xff]
    %v3299 = vld [vmem:[#allocation20 + $0x180] sm:$0xff]
    %v3300 = vld [vmem:[#allocation20 + $0x188] sm:$0xff]
    %v3301 = vld [vmem:[#allocation20 + $0x190] sm:$0xff]
    %v3302 = vld [vmem:[#allocation20 + $0x198] sm:$0xff]
    %v3303 = vld [vmem:[#allocation20 + $0x1a0] sm:$0xff]
    %v3304 = vld [vmem:[#allocation20 + $0x1a8] sm:$0xff]
    %v3305 = vld [vmem:[#allocation20 + $0x1b0] sm:$0xff]
    %v3306 = vld [vmem:[#allocation20 + $0x1b8] sm:$0xff]
    %v3307 = vld [vmem:[#allocation20 + $0x1c0] sm:$0xff]
    %v3308 = vld [vmem:[#allocation20 + $0x1c8] sm:$0xff]
    %v3309 = vld [vmem:[#allocation20 + $0x1d0] sm:$0xff]
    %v3310 = vld [vmem:[#allocation20 + $0x1d8] sm:$0xff]
    %v3311 = vld [vmem:[#allocation20 + $0x1e0] sm:$0xff]
    %v3312 = vld [vmem:[#allocation20 + $0x1e8] sm:$0xff]
    %v3313 = vld [vmem:[#allocation20 + $0x1f0] sm:$0xff]
    %v3314 = vld [vmem:[#allocation20 + $0x1f8] sm:$0xff]
    %v3315 = vld [vmem:[#allocation20 + $0x200] sm:$0xff]
    %v3316 = vld [vmem:[#allocation20 + $0x208] sm:$0xff]
    %v3317 = vld [vmem:[#allocation20 + $0x210] sm:$0xff]
    %v3318 = vld [vmem:[#allocation20 + $0x218] sm:$0xff]
    %v3319 = vld [vmem:[#allocation20 + $0x220] sm:$0xff]
    %v3320 = vld [vmem:[#allocation20 + $0x228] sm:$0xff]
    %v3321 = vld [vmem:[#allocation20 + $0x230] sm:$0xff]
    %v3322 = vld [vmem:[#allocation20 + $0x238] sm:$0xff]
    %v3323 = vld [vmem:[#allocation20 + $0x240] sm:$0xff]
    %v3324 = vld [vmem:[#allocation20 + $0x248] sm:$0xff]
    %v3325 = vld [vmem:[#allocation20 + $0x250] sm:$0xff]
    %v3326 = vld [vmem:[#allocation20 + $0x258] sm:$0xff]
    %v3327 = vld [vmem:[#allocation20 + $0x260] sm:$0xff]
    %v3328 = vld [vmem:[#allocation20 + $0x268] sm:$0xff]
    %v3329 = vld [vmem:[#allocation20 + $0x270] sm:$0xff]
    %v3330 = vld [vmem:[#allocation20 + $0x278] sm:$0xff]
    %v3331 = vld [vmem:[#allocation20 + $0x280] sm:$0xff]
    %v3332 = vld [vmem:[#allocation20 + $0x288] sm:$0xff]
    %v3333 = vld [vmem:[#allocation20 + $0x290] sm:$0xff]
    %v3334 = vld [vmem:[#allocation20 + $0x298] sm:$0xff]
    %v3335 = vld [vmem:[#allocation20 + $0x2a0] sm:$0xff]
    %v3336 = vld [vmem:[#allocation20 + $0x2a8] sm:$0xff]
    %v3337 = vld [vmem:[#allocation20 + $0x2b0] sm:$0xff]
    %v3338 = vld [vmem:[#allocation20 + $0x2b8] sm:$0xff]
    %v3339 = vld [vmem:[#allocation20 + $0x2c0] sm:$0xff]
    %v3340 = vld [vmem:[#allocation20 + $0x2c8] sm:$0xff]
    %v3341 = vld [vmem:[#allocation20 + $0x2d0] sm:$0xff]
    %v3342 = vld [vmem:[#allocation20 + $0x2d8] sm:$0xff]
    %v3343 = vld [vmem:[#allocation20 + $0x2e0] sm:$0xff]
    %v3344 = vld [vmem:[#allocation20 + $0x2e8] sm:$0xff]
    %v3345 = vld [vmem:[#allocation20 + $0x2f0] sm:$0xff]
    %v3346 = vld [vmem:[#allocation20 + $0x2f8] sm:$0xff]
    %v3347 = vld [vmem:[#allocation20 + $0x300] sm:$0xff]
    %v3348 = vld [vmem:[#allocation20 + $0x308] sm:$0xff]
    %v3349 = vld [vmem:[#allocation20 + $0x310] sm:$0xff]
    %v3350 = vld [vmem:[#allocation20 + $0x318] sm:$0xff]
    %v3351 = vld [vmem:[#allocation20 + $0x320] sm:$0xff]
    %v3352 = vld [vmem:[#allocation20 + $0x328] sm:$0xff]
    %v3353 = vld [vmem:[#allocation20 + $0x330] sm:$0xff]
    %v3354 = vld [vmem:[#allocation20 + $0x338] sm:$0xff]
    %v3355 = vld [vmem:[#allocation20 + $0x340] sm:$0xff]
    %v3356 = vld [vmem:[#allocation20 + $0x348] sm:$0xff]
    %v3357 = vld [vmem:[#allocation20 + $0x350] sm:$0xff]
    %v3358 = vld [vmem:[#allocation20 + $0x358] sm:$0xff]
    %v3359 = vld [vmem:[#allocation20 + $0x360] sm:$0xff]
    %v3360 = vld [vmem:[#allocation20 + $0x368] sm:$0xff]
    %v3361 = vld [vmem:[#allocation20 + $0x370] sm:$0xff]
    %v3362 = vld [vmem:[#allocation20 + $0x378] sm:$0xff]
    %v3363 = vld [vmem:[#allocation20 + $0x380] sm:$0xff]
    %v3364 = vld [vmem:[#allocation20 + $0x388] sm:$0xff]
    %v3365 = vld [vmem:[#allocation20 + $0x390] sm:$0xff]
    %v3366 = vld [vmem:[#allocation20 + $0x398] sm:$0xff]
    %v3367 = vld [vmem:[#allocation20 + $0x3a0] sm:$0xff]
    %v3368 = vld [vmem:[#allocation20 + $0x3a8] sm:$0xff]
    %v3369 = vld [vmem:[#allocation20 + $0x3b0] sm:$0xff]
    %v3370 = vld [vmem:[#allocation20 + $0x3b8] sm:$0xff]
    %v3371 = vld [vmem:[#allocation20 + $0x3c0] sm:$0xff]
    %v3372 = vld [vmem:[#allocation20 + $0x3c8] sm:$0xff]
    %v3373 = vld [vmem:[#allocation20 + $0x3d0] sm:$0xff]
    %v3374 = vld [vmem:[#allocation20 + $0x3d8] sm:$0xff]
    %v3375 = vld [vmem:[#allocation20 + $0x3e0] sm:$0xff]
    %v3376 = vld [vmem:[#allocation20 + $0x3e8] sm:$0xff]
    %v3377 = vld [vmem:[#allocation20 + $0x3f0] sm:$0xff]
    %v3378 = vld [vmem:[#allocation20 + $0x3f8] sm:$0xff]
    %v3379 = vld [vmem:[#allocation20 + $0x400] sm:$0xff]
    %v3380 = vld [vmem:[#allocation20 + $0x408] sm:$0xff]
    %v3381 = vld [vmem:[#allocation20 + $0x410] sm:$0xff]
    %v3382 = vld [vmem:[#allocation20 + $0x418] sm:$0xff]
    %v3383 = vld [vmem:[#allocation20 + $0x420] sm:$0xff]
    %v3384 = vld [vmem:[#allocation20 + $0x428] sm:$0xff]
    %v3385 = vld [vmem:[#allocation20 + $0x430] sm:$0xff]
    %v3386 = vld [vmem:[#allocation20 + $0x438] sm:$0xff]
    %v3387 = vld [vmem:[#allocation20 + $0x440] sm:$0xff]
    %v3388 = vld [vmem:[#allocation20 + $0x448] sm:$0xff]
    %v3389 = vld [vmem:[#allocation20 + $0x450] sm:$0xff]
    %v3390 = vld [vmem:[#allocation20 + $0x458] sm:$0xff]
    %v3391 = vld [vmem:[#allocation20 + $0x460] sm:$0xff]
    %v3392 = vld [vmem:[#allocation20 + $0x468] sm:$0xff]
    %v3393 = vld [vmem:[#allocation20 + $0x470] sm:$0xff]
    %v3394 = vld [vmem:[#allocation20 + $0x478] sm:$0xff]
    %v3395 = vld [vmem:[#allocation20 + $0x480] sm:$0xff]
    %v3396 = vld [vmem:[#allocation20 + $0x488] sm:$0xff]
    %v3397 = vld [vmem:[#allocation20 + $0x490] sm:$0xff]
    %v3398 = vld [vmem:[#allocation20 + $0x498] sm:$0xff]
    %v3399 = vld [vmem:[#allocation20 + $0x4a0] sm:$0xff]
    %v3400 = vld [vmem:[#allocation20 + $0x4a8] sm:$0xff]
    %v3402 = vsel %vm933, %v2955, 0
    %3404 = vmatprep.subr.mxu0 %v3297
    %3405 = vmatpush1.msra.mxu0 %v3296
    %3406 = vmatprep.subr.mxu0 %v3294
    %3407 = vmatpush1.msra.mxu0 %v3293
    %3408 = vmatprep.subr.mxu0 %v3291
    %3409 = vmatpush1.msra.mxu0 %v3290
    %3410 = vmatprep.subr.mxu0 %v3288
    %3411 = vmatpush1.msra.mxu0 %v3287
    %3412 = vmatprep.subr.mxu0 %v3285
    %3413 = vmatpush1.msra.mxu0 %v3284
    %3414 = vmatprep.subr.mxu0 %v3282
    %3415 = vmatpush1.msra.mxu0 %v3281
    %3416 = vmatprep.subr.mxu0 %v3279
    %3417 = vmatpush1.msra.mxu0 %v3278
    %3418 = vmatprep.subr.mxu0 %v3276
    %3419 = vmatpush1.msra.mxu0 %v3275
    %3420 = vmatprep.subr.mxu0 %v3273
    %3421 = vmatpush1.msra.mxu0 %v3272
    %3422 = vmatprep.subr.mxu0 %v3270
    %3423 = vmatpush1.msra.mxu0 %v3269
    %3424 = vmatprep.subr.mxu0 %v3267
    %3425 = vmatpush1.msra.mxu0 %v3266
    %3426 = vmatprep.subr.mxu0 %v3264
    %3427 = vmatpush1.msra.mxu0 %v3263
    %3428 = vmatprep.subr.mxu0 %v3261
    %3429 = vmatpush1.msra.mxu0 %v3260
    %3430 = vmatprep.subr.mxu0 %v3258
    %3431 = vmatpush1.msra.mxu0 %v3257
    %3432 = vmatprep.subr.mxu0 %v3255
    %3433 = vmatpush1.msra.mxu0 %v3254
    %3434 = vmatprep.subr.mxu0 %v3252
    %3435 = vmatpush1.msra.mxu0 %v3251
    %3436 = vmatprep.subr.mxu0 %v3345
    %3437 = vmatpush2.msra.mxu0 %v3344
    %3438 = vmatprep.subr.mxu0 %v3342
    %3439 = vmatpush2.msra.mxu0 %v3341
    %3440 = vmatprep.subr.mxu0 %v3339
    %3441 = vmatpush2.msra.mxu0 %v3338
    %3442 = vmatprep.subr.mxu0 %v3336
    %3443 = vmatpush2.msra.mxu0 %v3335
    %3444 = vmatprep.subr.mxu0 %v3333
    %3445 = vmatpush2.msra.mxu0 %v3332
    %3446 = vmatprep.subr.mxu0 %v3330
    %3447 = vmatpush2.msra.mxu0 %v3329
    %3448 = vmatprep.subr.mxu0 %v3327
    %3449 = vmatpush2.msra.mxu0 %v3326
    %3450 = vmatprep.subr.mxu0 %v3324
    %3451 = vmatpush2.msra.mxu0 %v3323
    %3452 = vmatprep.subr.mxu0 %v3321
    %3453 = vmatpush2.msra.mxu0 %v3320
    %3454 = vmatprep.subr.mxu0 %v3318
    %3455 = vmatpush2.msra.mxu0 %v3317
    %3456 = vmatprep.subr.mxu0 %v3315
    %3457 = vmatpush2.msra.mxu0 %v3314
    %3458 = vmatprep.subr.mxu0 %v3312
    %3459 = vmatpush2.msra.mxu0 %v3311
    %3460 = vmatprep.subr.mxu0 %v3309
    %3461 = vmatpush2.msra.mxu0 %v3308
    %3462 = vmatprep.subr.mxu0 %v3306
    %3463 = vmatpush2.msra.mxu0 %v3305
    %3464 = vmatprep.subr.mxu0 %v3303
    %3465 = vmatpush2.msra.mxu0 %v3302
    %3466 = vmatprep.subr.mxu0 %v3300
    %3467 = vmatpush2.msra.mxu0 %v3299
    %3468 = vmatprep.mubr.f32.mxu0 %v2953
    %3469 = vmatmul.mubr.f32.gmra.mxu0 %v2952
    %v3470 = vpop.f32.mrf.mxu0
    %v3471 = vadd.f32 %v3105, %v3470
    %v3472 = vpop.f32.mrf.mxu0
    %v3473 = vadd.f32 %v3107, %v3472
    %3474 = vdwg.mxu0
    %3475 = vmatprep.subr.mxu0 %v3393
    %3476 = vmatpush1.msra.mxu0 %v3392
    %3477 = vmatprep.subr.mxu0 %v3390
    %3478 = vmatpush1.msra.mxu0 %v3389
    %3479 = vmatprep.subr.mxu0 %v3387
    %3480 = vmatpush1.msra.mxu0 %v3386
    %3481 = vmatprep.subr.mxu0 %v3384
    %3482 = vmatpush1.msra.mxu0 %v3383
    %3483 = vmatprep.subr.mxu0 %v3381
    %3484 = vmatpush1.msra.mxu0 %v3380
    %3485 = vmatprep.subr.mxu0 %v3378
    %3486 = vmatpush1.msra.mxu0 %v3377
    %3487 = vmatprep.subr.mxu0 %v3375
    %3488 = vmatpush1.msra.mxu0 %v3374
    %3489 = vmatprep.subr.mxu0 %v3372
    %3490 = vmatpush1.msra.mxu0 %v3371
    %3491 = vmatprep.subr.mxu0 %v3369
    %3492 = vmatpush1.msra.mxu0 %v3368
    %3493 = vmatprep.subr.mxu0 %v3366
    %3494 = vmatpush1.msra.mxu0 %v3365
    %3495 = vmatprep.subr.mxu0 %v3363
    %3496 = vmatpush1.msra.mxu0 %v3362
    %3497 = vmatprep.subr.mxu0 %v3360
    %3498 = vmatpush1.msra.mxu0 %v3359
    %3499 = vmatprep.subr.mxu0 %v3357
    %3500 = vmatpush1.msra.mxu0 %v3356
    %3501 = vmatprep.subr.mxu0 %v3354
    %3502 = vmatpush1.msra.mxu0 %v3353
    %3503 = vmatprep.subr.mxu0 %v3351
    %3504 = vmatpush1.msra.mxu0 %v3350
    %3505 = vmatprep.subr.mxu0 %v3348
    %3506 = vmatpush1.msra.mxu0 %v3347
    %3507 = vmatprep.subr.mxu0 0.0
    %3508 = vmatpush2.msra.mxu0 0.0
    %3509 = vmatprep.subr.mxu0 0.0
    %3510 = vmatpush2.msra.mxu0 0.0
    %3511 = vmatprep.subr.mxu0 0.0
    %3512 = vmatpush2.msra.mxu0 0.0
    %3513 = vmatprep.subr.mxu0 0.0
    %3514 = vmatpush2.msra.mxu0 0.0
    %3515 = vmatprep.subr.mxu0 0.0
    %3516 = vmatpush2.msra.mxu0 0.0
    %3517 = vmatprep.subr.mxu0 0.0
    %3518 = vmatpush2.msra.mxu0 0.0
    %3519 = vmatprep.subr.mxu0 0.0
    %3520 = vmatpush2.msra.mxu0 0.0
    %3521 = vmatprep.subr.mxu0 0.0
    %3522 = vmatpush2.msra.mxu0 0.0
    %3523 = vmatprep.subr.mxu0 0.0
    %3524 = vmatpush2.msra.mxu0 0.0
    %3525 = vmatprep.subr.mxu0 0.0
    %3526 = vmatpush2.msra.mxu0 0.0
    %3527 = vmatprep.subr.mxu0 0.0
    %3528 = vmatpush2.msra.mxu0 0.0
    %3529 = vmatprep.subr.mxu0 0.0
    %3530 = vmatpush2.msra.mxu0 0.0
    %3531 = vmatprep.subr.mxu0 0.0
    %3532 = vmatpush2.msra.mxu0 0.0
    %3533 = vmatprep.subr.mxu0 0.0
    %3534 = vmatpush2.msra.mxu0 0.0
    %3535 = vmatprep.subr.mxu0 %v3399
    %3536 = vmatpush2.msra.mxu0 %v3398
    %3537 = vmatprep.subr.mxu0 %v3396
    %3538 = vmatpush2.msra.mxu0 %v3395
    %3539 = vmatprep.mubr.f32.mxu0 %v3402
    %3540 = vmatmul.mubr.f32.gmra.mxu0 %v2954
    %v3541 = vpop.f32.mrf.mxu0
    %v3542 = vadd.f32 %v3471, %v3541
    %v3543 = vpop.f32.mrf.mxu0
    %v3544 = vadd.f32 %v3473, %v3543
    %3545 = vdwg.mxu0
    %3546 = vmatprep.subr.mxu0 0.0
    %3547 = vmatpush1.msra.mxu0 %v3298
    %3548 = vmatprep.subr.mxu0 0.0
    %3549 = vmatpush1.msra.mxu0 %v3295
    %3550 = vmatprep.subr.mxu0 0.0
    %3551 = vmatpush1.msra.mxu0 %v3292
    %3552 = vmatprep.subr.mxu0 0.0
    %3553 = vmatpush1.msra.mxu0 %v3289
    %3554 = vmatprep.subr.mxu0 0.0
    %3555 = vmatpush1.msra.mxu0 %v3286
    %3556 = vmatprep.subr.mxu0 0.0
    %3557 = vmatpush1.msra.mxu0 %v3283
    %3558 = vmatprep.subr.mxu0 0.0
    %3559 = vmatpush1.msra.mxu0 %v3280
    %3560 = vmatprep.subr.mxu0 0.0
    %3561 = vmatpush1.msra.mxu0 %v3277
    %3562 = vmatprep.subr.mxu0 0.0
    %3563 = vmatpush1.msra.mxu0 %v3274
    %3564 = vmatprep.subr.mxu0 0.0
    %3565 = vmatpush1.msra.mxu0 %v3271
    %3566 = vmatprep.subr.mxu0 0.0
    %3567 = vmatpush1.msra.mxu0 %v3268
    %3568 = vmatprep.subr.mxu0 0.0
    %3569 = vmatpush1.msra.mxu0 %v3265
    %3570 = vmatprep.subr.mxu0 0.0
    %3571 = vmatpush1.msra.mxu0 %v3262
    %3572 = vmatprep.subr.mxu0 0.0
    %3573 = vmatpush1.msra.mxu0 %v3259
    %3574 = vmatprep.subr.mxu0 0.0
    %3575 = vmatpush1.msra.mxu0 %v3256
    %3576 = vmatprep.subr.mxu0 0.0
    %3577 = vmatpush1.msra.mxu0 %v3253
    %3578 = vmatprep.subr.mxu0 0.0
    %3579 = vmatpush2.msra.mxu0 %v3346
    %3580 = vmatprep.subr.mxu0 0.0
    %3581 = vmatpush2.msra.mxu0 %v3343
    %3582 = vmatprep.subr.mxu0 0.0
    %3583 = vmatpush2.msra.mxu0 %v3340
    %3584 = vmatprep.subr.mxu0 0.0
    %3585 = vmatpush2.msra.mxu0 %v3337
    %3586 = vmatprep.subr.mxu0 0.0
    %3587 = vmatpush2.msra.mxu0 %v3334
    %3588 = vmatprep.subr.mxu0 0.0
    %3589 = vmatpush2.msra.mxu0 %v3331
    %3590 = vmatprep.subr.mxu0 0.0
    %3591 = vmatpush2.msra.mxu0 %v3328
    %3592 = vmatprep.subr.mxu0 0.0
    %3593 = vmatpush2.msra.mxu0 %v3325
    %3594 = vmatprep.subr.mxu0 0.0
    %3595 = vmatpush2.msra.mxu0 %v3322
    %3596 = vmatprep.subr.mxu0 0.0
    %3597 = vmatpush2.msra.mxu0 %v3319
    %3598 = vmatprep.subr.mxu0 0.0
    %3599 = vmatpush2.msra.mxu0 %v3316
    %3600 = vmatprep.subr.mxu0 0.0
    %3601 = vmatpush2.msra.mxu0 %v3313
    %3602 = vmatprep.subr.mxu0 0.0
    %3603 = vmatpush2.msra.mxu0 %v3310
    %3604 = vmatprep.subr.mxu0 0.0
    %3605 = vmatpush2.msra.mxu0 %v3307
    %3606 = vmatprep.subr.mxu0 0.0
    %3607 = vmatpush2.msra.mxu0 %v3304
    %3608 = vmatprep.subr.mxu0 0.0
    %3609 = vmatpush2.msra.mxu0 %v3301
    %3610 = vmatprep.mubr.f32.mxu0 %v2953
    %3611 = vmatmul.mubr.f32.gmra.mxu0 %v2952
    %v3612 = vpop.f32.mrf.mxu0
    %v3613 = vadd.f32 %v3176, %v3612
    %v3614 = vpop.f32.mrf.mxu0
    %3615 = vdwg.mxu0
    %3616 = vmatprep.subr.mxu0 0.0
    %3617 = vmatpush1.msra.mxu0 %v3394
    %3618 = vmatprep.subr.mxu0 0.0
    %3619 = vmatpush1.msra.mxu0 %v3391
    %3620 = vmatprep.subr.mxu0 0.0
    %3621 = vmatpush1.msra.mxu0 %v3388
    %3622 = vmatprep.subr.mxu0 0.0
    %3623 = vmatpush1.msra.mxu0 %v3385
    %3624 = vmatprep.subr.mxu0 0.0
    %3625 = vmatpush1.msra.mxu0 %v3382
    %3626 = vmatprep.subr.mxu0 0.0
    %3627 = vmatpush1.msra.mxu0 %v3379
    %3628 = vmatprep.subr.mxu0 0.0
    %3629 = vmatpush1.msra.mxu0 %v3376
    %3630 = vmatprep.subr.mxu0 0.0
    %3631 = vmatpush1.msra.mxu0 %v3373
    %3632 = vmatprep.subr.mxu0 0.0
    %3633 = vmatpush1.msra.mxu0 %v3370
    %3634 = vmatprep.subr.mxu0 0.0
    %3635 = vmatpush1.msra.mxu0 %v3367
    %3636 = vmatprep.subr.mxu0 0.0
    %3637 = vmatpush1.msra.mxu0 %v3364
    %3638 = vmatprep.subr.mxu0 0.0
    %3639 = vmatpush1.msra.mxu0 %v3361
    %3640 = vmatprep.subr.mxu0 0.0
    %3641 = vmatpush1.msra.mxu0 %v3358
    %3642 = vmatprep.subr.mxu0 0.0
    %3643 = vmatpush1.msra.mxu0 %v3355
    %3644 = vmatprep.subr.mxu0 0.0
    %3645 = vmatpush1.msra.mxu0 %v3352
    %3646 = vmatprep.subr.mxu0 0.0
    %3647 = vmatpush1.msra.mxu0 %v3349
    %3648 = vmatprep.subr.mxu0 0.0
    %3649 = vmatpush2.msra.mxu0 0.0
    %3650 = vmatprep.subr.mxu0 0.0
    %3651 = vmatpush2.msra.mxu0 0.0
    %3652 = vmatprep.subr.mxu0 0.0
    %3653 = vmatpush2.msra.mxu0 0.0
    %3654 = vmatprep.subr.mxu0 0.0
    %3655 = vmatpush2.msra.mxu0 0.0
    %3656 = vmatprep.subr.mxu0 0.0
    %3657 = vmatpush2.msra.mxu0 0.0
    %3658 = vmatprep.subr.mxu0 0.0
    %3659 = vmatpush2.msra.mxu0 0.0
    %3660 = vmatprep.subr.mxu0 0.0
    %3661 = vmatpush2.msra.mxu0 0.0
    %3662 = vmatprep.subr.mxu0 0.0
    %3663 = vmatpush2.msra.mxu0 0.0
    %3664 = vmatprep.subr.mxu0 0.0
    %3665 = vmatpush2.msra.mxu0 0.0
    %3666 = vmatprep.subr.mxu0 0.0
    %3667 = vmatpush2.msra.mxu0 0.0
    %3668 = vmatprep.subr.mxu0 0.0
    %3669 = vmatpush2.msra.mxu0 0.0
    %3670 = vmatprep.subr.mxu0 0.0
    %3671 = vmatpush2.msra.mxu0 0.0
    %3672 = vmatprep.subr.mxu0 0.0
    %3673 = vmatpush2.msra.mxu0 0.0
    %3674 = vmatprep.subr.mxu0 0.0
    %3675 = vmatpush2.msra.mxu0 0.0
    %3676 = vmatprep.subr.mxu0 0.0
    %3677 = vmatpush2.msra.mxu0 %v3400
    %3678 = vmatprep.subr.mxu0 0.0
    %3679 = vmatpush2.msra.mxu0 %v3397
    %3680 = vmatprep.mubr.f32.mxu0 %v3402
    %3681 = vmatmul.mubr.f32.gmra.mxu0 %v2954
    %v3682 = vpop.f32.mrf.mxu0
    %v3683 = vadd.f32 %v3613, %v3682
    %v3684 = vpop.f32.mrf.mxu0
    %3685 = vdwg.mxu0
    %v3686 = vmul.f32 %v3542, 0.01
    %v3687 = vmul.f32 %v3544, 0.01
    %v3688 = vmul.f32 %v3683, 0.01
    %v3689 = vmax.f32 %v3542, %v3686
    %v3690 = vmax.f32 %v3544, %v3687
    %v3691 = vmax.f32 %v3683, %v3688
    %v3692 = vld [vmem:[#allocation21] sm:$0xff]
    %v3693 = vld [vmem:[#allocation21 + $0x8] sm:$0xff]
    %v3694 = vld [vmem:[#allocation21 + $0x10] sm:$0xff]
    %v3695 = vld [vmem:[#allocation21 + $0x18] sm:$0xff]
    %v3696 = vld [vmem:[#allocation21 + $0x20] sm:$0xff]
    %v3697 = vld [vmem:[#allocation21 + $0x28] sm:$0xff]
    %v3698 = vld [vmem:[#allocation21 + $0x30] sm:$0xff]
    %v3699 = vld [vmem:[#allocation21 + $0x38] sm:$0xff]
    %v3700 = vld [vmem:[#allocation21 + $0x40] sm:$0xff]
    %v3701 = vld [vmem:[#allocation21 + $0x48] sm:$0xff]
    %v3702 = vld [vmem:[#allocation21 + $0x50] sm:$0xff]
    %v3703 = vld [vmem:[#allocation21 + $0x58] sm:$0xff]
    %v3704 = vld [vmem:[#allocation21 + $0x60] sm:$0xff]
    %v3705 = vld [vmem:[#allocation21 + $0x68] sm:$0xff]
    %v3706 = vld [vmem:[#allocation21 + $0x70] sm:$0xff]
    %v3707 = vld [vmem:[#allocation21 + $0x78] sm:$0xff]
    %v3708 = vld [vmem:[#allocation21 + $0x80] sm:$0xff]
    %v3709 = vld [vmem:[#allocation21 + $0x88] sm:$0xff]
    %v3710 = vld [vmem:[#allocation21 + $0x90] sm:$0xff]
    %v3711 = vld [vmem:[#allocation21 + $0x98] sm:$0xff]
    %v3712 = vld [vmem:[#allocation21 + $0xa0] sm:$0xff]
    %v3713 = vld [vmem:[#allocation21 + $0xa8] sm:$0xff]
    %v3714 = vld [vmem:[#allocation21 + $0xb0] sm:$0xff]
    %v3715 = vld [vmem:[#allocation21 + $0xb8] sm:$0xff]
    %v3716 = vld [vmem:[#allocation21 + $0xc0] sm:$0xff]
    %v3717 = vld [vmem:[#allocation21 + $0xc8] sm:$0xff]
    %v3718 = vld [vmem:[#allocation21 + $0xd0] sm:$0xff]
    %v3719 = vld [vmem:[#allocation21 + $0xd8] sm:$0xff]
    %v3720 = vld [vmem:[#allocation21 + $0xe0] sm:$0xff]
    %v3721 = vld [vmem:[#allocation21 + $0xe8] sm:$0xff]
    %v3722 = vld [vmem:[#allocation21 + $0xf0] sm:$0xff]
    %v3723 = vld [vmem:[#allocation21 + $0xf8] sm:$0xff]
    %v3724 = vld [vmem:[#allocation21 + $0x100] sm:$0xff]
    %v3725 = vld [vmem:[#allocation21 + $0x108] sm:$0xff]
    %v3726 = vld [vmem:[#allocation21 + $0x110] sm:$0xff]
    %v3727 = vld [vmem:[#allocation21 + $0x118] sm:$0xff]
    %v3728 = vld [vmem:[#allocation21 + $0x120] sm:$0xff]
    %v3729 = vld [vmem:[#allocation21 + $0x128] sm:$0xff]
    %v3730 = vld [vmem:[#allocation21 + $0x130] sm:$0xff]
    %v3731 = vld [vmem:[#allocation21 + $0x138] sm:$0xff]
    %v3732 = vld [vmem:[#allocation21 + $0x140] sm:$0xff]
    %v3733 = vld [vmem:[#allocation21 + $0x148] sm:$0xff]
    %v3734 = vld [vmem:[#allocation21 + $0x150] sm:$0xff]
    %v3735 = vld [vmem:[#allocation21 + $0x158] sm:$0xff]
    %v3736 = vld [vmem:[#allocation21 + $0x160] sm:$0xff]
    %v3737 = vld [vmem:[#allocation21 + $0x168] sm:$0xff]
    %v3738 = vld [vmem:[#allocation21 + $0x170] sm:$0xff]
    %v3739 = vld [vmem:[#allocation21 + $0x178] sm:$0xff]
    %v3740 = vld [vmem:[#allocation21 + $0x180] sm:$0xff]
    %v3741 = vld [vmem:[#allocation21 + $0x188] sm:$0xff]
    %v3742 = vld [vmem:[#allocation21 + $0x190] sm:$0xff]
    %v3743 = vld [vmem:[#allocation21 + $0x198] sm:$0xff]
    %v3744 = vld [vmem:[#allocation21 + $0x1a0] sm:$0xff]
    %v3745 = vld [vmem:[#allocation21 + $0x1a8] sm:$0xff]
    %v3746 = vld [vmem:[#allocation21 + $0x1b0] sm:$0xff]
    %v3747 = vld [vmem:[#allocation21 + $0x1b8] sm:$0xff]
    %v3748 = vld [vmem:[#allocation21 + $0x1c0] sm:$0xff]
    %v3749 = vld [vmem:[#allocation21 + $0x1c8] sm:$0xff]
    %v3750 = vld [vmem:[#allocation21 + $0x1d0] sm:$0xff]
    %v3751 = vld [vmem:[#allocation21 + $0x1d8] sm:$0xff]
    %v3752 = vld [vmem:[#allocation21 + $0x1e0] sm:$0xff]
    %v3753 = vld [vmem:[#allocation21 + $0x1e8] sm:$0xff]
    %v3754 = vld [vmem:[#allocation21 + $0x1f0] sm:$0xff]
    %v3755 = vld [vmem:[#allocation21 + $0x1f8] sm:$0xff]
    %v3756 = vld [vmem:[#allocation21 + $0x200] sm:$0xff]
    %v3757 = vld [vmem:[#allocation21 + $0x208] sm:$0xff]
    %v3758 = vld [vmem:[#allocation21 + $0x210] sm:$0xff]
    %v3759 = vld [vmem:[#allocation21 + $0x218] sm:$0xff]
    %v3760 = vld [vmem:[#allocation21 + $0x220] sm:$0xff]
    %v3761 = vld [vmem:[#allocation21 + $0x228] sm:$0xff]
    %v3762 = vld [vmem:[#allocation21 + $0x230] sm:$0xff]
    %v3763 = vld [vmem:[#allocation21 + $0x238] sm:$0xff]
    %v3764 = vld [vmem:[#allocation21 + $0x240] sm:$0xff]
    %v3765 = vld [vmem:[#allocation21 + $0x248] sm:$0xff]
    %v3766 = vld [vmem:[#allocation21 + $0x250] sm:$0xff]
    %v3767 = vld [vmem:[#allocation21 + $0x258] sm:$0xff]
    %v3768 = vld [vmem:[#allocation21 + $0x260] sm:$0xff]
    %v3769 = vld [vmem:[#allocation21 + $0x268] sm:$0xff]
    %v3770 = vld [vmem:[#allocation21 + $0x270] sm:$0xff]
    %v3771 = vld [vmem:[#allocation21 + $0x278] sm:$0xff]
    %v3772 = vld [vmem:[#allocation21 + $0x280] sm:$0xff]
    %v3773 = vld [vmem:[#allocation21 + $0x288] sm:$0xff]
    %v3774 = vld [vmem:[#allocation21 + $0x290] sm:$0xff]
    %v3775 = vld [vmem:[#allocation21 + $0x298] sm:$0xff]
    %v3776 = vld [vmem:[#allocation21 + $0x2a0] sm:$0xff]
    %v3777 = vld [vmem:[#allocation21 + $0x2a8] sm:$0xff]
    %v3778 = vld [vmem:[#allocation21 + $0x2b0] sm:$0xff]
    %v3779 = vld [vmem:[#allocation21 + $0x2b8] sm:$0xff]
    %v3780 = vld [vmem:[#allocation21 + $0x2c0] sm:$0xff]
    %v3781 = vld [vmem:[#allocation21 + $0x2c8] sm:$0xff]
    %v3782 = vld [vmem:[#allocation21 + $0x2d0] sm:$0xff]
    %v3783 = vld [vmem:[#allocation21 + $0x2d8] sm:$0xff]
    %v3784 = vld [vmem:[#allocation21 + $0x2e0] sm:$0xff]
    %v3785 = vld [vmem:[#allocation21 + $0x2e8] sm:$0xff]
    %v3786 = vld [vmem:[#allocation21 + $0x2f0] sm:$0xff]
    %v3787 = vld [vmem:[#allocation21 + $0x2f8] sm:$0xff]
    %v3788 = vld [vmem:[#allocation21 + $0x300] sm:$0xff]
    %v3789 = vld [vmem:[#allocation21 + $0x308] sm:$0xff]
    %v3790 = vld [vmem:[#allocation21 + $0x310] sm:$0xff]
    %v3791 = vld [vmem:[#allocation21 + $0x318] sm:$0xff]
    %v3792 = vld [vmem:[#allocation21 + $0x320] sm:$0xff]
    %v3793 = vld [vmem:[#allocation21 + $0x328] sm:$0xff]
    %v3794 = vld [vmem:[#allocation21 + $0x330] sm:$0xff]
    %v3795 = vld [vmem:[#allocation21 + $0x338] sm:$0xff]
    %v3796 = vld [vmem:[#allocation21 + $0x340] sm:$0xff]
    %v3797 = vld [vmem:[#allocation21 + $0x348] sm:$0xff]
    %v3798 = vld [vmem:[#allocation21 + $0x350] sm:$0xff]
    %v3799 = vld [vmem:[#allocation21 + $0x358] sm:$0xff]
    %v3800 = vld [vmem:[#allocation21 + $0x360] sm:$0xff]
    %v3801 = vld [vmem:[#allocation21 + $0x368] sm:$0xff]
    %v3802 = vld [vmem:[#allocation21 + $0x370] sm:$0xff]
    %v3803 = vld [vmem:[#allocation21 + $0x378] sm:$0xff]
    %v3804 = vld [vmem:[#allocation21 + $0x380] sm:$0xff]
    %v3805 = vld [vmem:[#allocation21 + $0x388] sm:$0xff]
    %v3806 = vld [vmem:[#allocation21 + $0x390] sm:$0xff]
    %v3807 = vld [vmem:[#allocation21 + $0x398] sm:$0xff]
    %v3808 = vld [vmem:[#allocation21 + $0x3a0] sm:$0xff]
    %v3809 = vld [vmem:[#allocation21 + $0x3a8] sm:$0xff]
    %v3810 = vld [vmem:[#allocation21 + $0x3b0] sm:$0xff]
    %v3811 = vld [vmem:[#allocation21 + $0x3b8] sm:$0xff]
    %v3812 = vld [vmem:[#allocation21 + $0x3c0] sm:$0xff]
    %v3813 = vld [vmem:[#allocation21 + $0x3c8] sm:$0xff]
    %v3814 = vld [vmem:[#allocation21 + $0x3d0] sm:$0xff]
    %v3815 = vld [vmem:[#allocation21 + $0x3d8] sm:$0xff]
    %v3816 = vld [vmem:[#allocation21 + $0x3e0] sm:$0xff]
    %v3817 = vld [vmem:[#allocation21 + $0x3e8] sm:$0xff]
    %v3818 = vld [vmem:[#allocation21 + $0x3f0] sm:$0xff]
    %v3819 = vld [vmem:[#allocation21 + $0x3f8] sm:$0xff]
    %v3820 = vld [vmem:[#allocation21 + $0x400] sm:$0xff]
    %v3821 = vld [vmem:[#allocation21 + $0x408] sm:$0xff]
    %v3822 = vld [vmem:[#allocation21 + $0x410] sm:$0xff]
    %v3823 = vld [vmem:[#allocation21 + $0x418] sm:$0xff]
    %v3824 = vld [vmem:[#allocation21 + $0x420] sm:$0xff]
    %v3825 = vld [vmem:[#allocation21 + $0x428] sm:$0xff]
    %v3826 = vld [vmem:[#allocation21 + $0x430] sm:$0xff]
    %v3827 = vld [vmem:[#allocation21 + $0x438] sm:$0xff]
    %v3828 = vld [vmem:[#allocation21 + $0x440] sm:$0xff]
    %v3829 = vld [vmem:[#allocation21 + $0x448] sm:$0xff]
    %v3830 = vld [vmem:[#allocation21 + $0x450] sm:$0xff]
    %v3831 = vld [vmem:[#allocation21 + $0x458] sm:$0xff]
    %v3832 = vld [vmem:[#allocation21 + $0x460] sm:$0xff]
    %v3833 = vld [vmem:[#allocation21 + $0x468] sm:$0xff]
    %v3834 = vld [vmem:[#allocation21 + $0x470] sm:$0xff]
    %v3835 = vld [vmem:[#allocation21 + $0x478] sm:$0xff]
    %v3836 = vld [vmem:[#allocation21 + $0x480] sm:$0xff]
    %v3837 = vld [vmem:[#allocation21 + $0x488] sm:$0xff]
    %v3838 = vld [vmem:[#allocation21 + $0x490] sm:$0xff]
    %v3839 = vld [vmem:[#allocation21 + $0x498] sm:$0xff]
    %v3840 = vld [vmem:[#allocation21 + $0x4a0] sm:$0xff]
    %v3841 = vld [vmem:[#allocation21 + $0x4a8] sm:$0xff]
    %v3843 = vsel %vm933, %v2959, 0
    %3845 = vmatprep.subr.mxu0 %v3738
    %3846 = vmatpush1.msra.mxu0 %v3737
    %3847 = vmatprep.subr.mxu0 %v3735
    %3848 = vmatpush1.msra.mxu0 %v3734
    %3849 = vmatprep.subr.mxu0 %v3732
    %3850 = vmatpush1.msra.mxu0 %v3731
    %3851 = vmatprep.subr.mxu0 %v3729
    %3852 = vmatpush1.msra.mxu0 %v3728
    %3853 = vmatprep.subr.mxu0 %v3726
    %3854 = vmatpush1.msra.mxu0 %v3725
    %3855 = vmatprep.subr.mxu0 %v3723
    %3856 = vmatpush1.msra.mxu0 %v3722
    %3857 = vmatprep.subr.mxu0 %v3720
    %3858 = vmatpush1.msra.mxu0 %v3719
    %3859 = vmatprep.subr.mxu0 %v3717
    %3860 = vmatpush1.msra.mxu0 %v3716
    %3861 = vmatprep.subr.mxu0 %v3714
    %3862 = vmatpush1.msra.mxu0 %v3713
    %3863 = vmatprep.subr.mxu0 %v3711
    %3864 = vmatpush1.msra.mxu0 %v3710
    %3865 = vmatprep.subr.mxu0 %v3708
    %3866 = vmatpush1.msra.mxu0 %v3707
    %3867 = vmatprep.subr.mxu0 %v3705
    %3868 = vmatpush1.msra.mxu0 %v3704
    %3869 = vmatprep.subr.mxu0 %v3702
    %3870 = vmatpush1.msra.mxu0 %v3701
    %3871 = vmatprep.subr.mxu0 %v3699
    %3872 = vmatpush1.msra.mxu0 %v3698
    %3873 = vmatprep.subr.mxu0 %v3696
    %3874 = vmatpush1.msra.mxu0 %v3695
    %3875 = vmatprep.subr.mxu0 %v3693
    %3876 = vmatpush1.msra.mxu0 %v3692
    %3877 = vmatprep.subr.mxu0 %v3786
    %3878 = vmatpush2.msra.mxu0 %v3785
    %3879 = vmatprep.subr.mxu0 %v3783
    %3880 = vmatpush2.msra.mxu0 %v3782
    %3881 = vmatprep.subr.mxu0 %v3780
    %3882 = vmatpush2.msra.mxu0 %v3779
    %3883 = vmatprep.subr.mxu0 %v3777
    %3884 = vmatpush2.msra.mxu0 %v3776
    %3885 = vmatprep.subr.mxu0 %v3774
    %3886 = vmatpush2.msra.mxu0 %v3773
    %3887 = vmatprep.subr.mxu0 %v3771
    %3888 = vmatpush2.msra.mxu0 %v3770
    %3889 = vmatprep.subr.mxu0 %v3768
    %3890 = vmatpush2.msra.mxu0 %v3767
    %3891 = vmatprep.subr.mxu0 %v3765
    %3892 = vmatpush2.msra.mxu0 %v3764
    %3893 = vmatprep.subr.mxu0 %v3762
    %3894 = vmatpush2.msra.mxu0 %v3761
    %3895 = vmatprep.subr.mxu0 %v3759
    %3896 = vmatpush2.msra.mxu0 %v3758
    %3897 = vmatprep.subr.mxu0 %v3756
    %3898 = vmatpush2.msra.mxu0 %v3755
    %3899 = vmatprep.subr.mxu0 %v3753
    %3900 = vmatpush2.msra.mxu0 %v3752
    %3901 = vmatprep.subr.mxu0 %v3750
    %3902 = vmatpush2.msra.mxu0 %v3749
    %3903 = vmatprep.subr.mxu0 %v3747
    %3904 = vmatpush2.msra.mxu0 %v3746
    %3905 = vmatprep.subr.mxu0 %v3744
    %3906 = vmatpush2.msra.mxu0 %v3743
    %3907 = vmatprep.subr.mxu0 %v3741
    %3908 = vmatpush2.msra.mxu0 %v3740
    %3909 = vmatprep.mubr.f32.mxu0 %v2957
    %3910 = vmatmul.mubr.f32.gmra.mxu0 %v2956
    %v3911 = vpop.f32.mrf.mxu0
    %v3912 = vadd.f32 %v3178, %v3911
    %v3913 = vpop.f32.mrf.mxu0
    %v3914 = vadd.f32 %v3247, %v3913
    %3915 = vdwg.mxu0
    %3916 = vmatprep.subr.mxu0 %v3834
    %3917 = vmatpush1.msra.mxu0 %v3833
    %3918 = vmatprep.subr.mxu0 %v3831
    %3919 = vmatpush1.msra.mxu0 %v3830
    %3920 = vmatprep.subr.mxu0 %v3828
    %3921 = vmatpush1.msra.mxu0 %v3827
    %3922 = vmatprep.subr.mxu0 %v3825
    %3923 = vmatpush1.msra.mxu0 %v3824
    %3924 = vmatprep.subr.mxu0 %v3822
    %3925 = vmatpush1.msra.mxu0 %v3821
    %3926 = vmatprep.subr.mxu0 %v3819
    %3927 = vmatpush1.msra.mxu0 %v3818
    %3928 = vmatprep.subr.mxu0 %v3816
    %3929 = vmatpush1.msra.mxu0 %v3815
    %3930 = vmatprep.subr.mxu0 %v3813
    %3931 = vmatpush1.msra.mxu0 %v3812
    %3932 = vmatprep.subr.mxu0 %v3810
    %3933 = vmatpush1.msra.mxu0 %v3809
    %3934 = vmatprep.subr.mxu0 %v3807
    %3935 = vmatpush1.msra.mxu0 %v3806
    %3936 = vmatprep.subr.mxu0 %v3804
    %3937 = vmatpush1.msra.mxu0 %v3803
    %3938 = vmatprep.subr.mxu0 %v3801
    %3939 = vmatpush1.msra.mxu0 %v3800
    %3940 = vmatprep.subr.mxu0 %v3798
    %3941 = vmatpush1.msra.mxu0 %v3797
    %3942 = vmatprep.subr.mxu0 %v3795
    %3943 = vmatpush1.msra.mxu0 %v3794
    %3944 = vmatprep.subr.mxu0 %v3792
    %3945 = vmatpush1.msra.mxu0 %v3791
    %3946 = vmatprep.subr.mxu0 %v3789
    %3947 = vmatpush1.msra.mxu0 %v3788
    %3948 = vmatprep.subr.mxu0 0.0
    %3949 = vmatpush2.msra.mxu0 0.0
    %3950 = vmatprep.subr.mxu0 0.0
    %3951 = vmatpush2.msra.mxu0 0.0
    %3952 = vmatprep.subr.mxu0 0.0
    %3953 = vmatpush2.msra.mxu0 0.0
    %3954 = vmatprep.subr.mxu0 0.0
    %3955 = vmatpush2.msra.mxu0 0.0
    %3956 = vmatprep.subr.mxu0 0.0
    %3957 = vmatpush2.msra.mxu0 0.0
    %3958 = vmatprep.subr.mxu0 0.0
    %3959 = vmatpush2.msra.mxu0 0.0
    %3960 = vmatprep.subr.mxu0 0.0
    %3961 = vmatpush2.msra.mxu0 0.0
    %3962 = vmatprep.subr.mxu0 0.0
    %3963 = vmatpush2.msra.mxu0 0.0
    %3964 = vmatprep.subr.mxu0 0.0
    %3965 = vmatpush2.msra.mxu0 0.0
    %3966 = vmatprep.subr.mxu0 0.0
    %3967 = vmatpush2.msra.mxu0 0.0
    %3968 = vmatprep.subr.mxu0 0.0
    %3969 = vmatpush2.msra.mxu0 0.0
    %3970 = vmatprep.subr.mxu0 0.0
    %3971 = vmatpush2.msra.mxu0 0.0
    %3972 = vmatprep.subr.mxu0 0.0
    %3973 = vmatpush2.msra.mxu0 0.0
    %3974 = vmatprep.subr.mxu0 0.0
    %3975 = vmatpush2.msra.mxu0 0.0
    %3976 = vmatprep.subr.mxu0 %v3840
    %3977 = vmatpush2.msra.mxu0 %v3839
    %3978 = vmatprep.subr.mxu0 %v3837
    %3979 = vmatpush2.msra.mxu0 %v3836
    %3980 = vmatprep.mubr.f32.mxu0 %v3843
    %3981 = vmatmul.mubr.f32.gmra.mxu0 %v2958
    %v3982 = vpop.f32.mrf.mxu0
    %v3983 = vadd.f32 %v3912, %v3982
    %v3984 = vpop.f32.mrf.mxu0
    %v3985 = vadd.f32 %v3914, %v3984
    %3986 = vdwg.mxu0
    %3987 = vmatprep.subr.mxu0 0.0
    %3988 = vmatpush1.msra.mxu0 %v3739
    %3989 = vmatprep.subr.mxu0 0.0
    %3990 = vmatpush1.msra.mxu0 %v3736
    %3991 = vmatprep.subr.mxu0 0.0
    %3992 = vmatpush1.msra.mxu0 %v3733
    %3993 = vmatprep.subr.mxu0 0.0
    %3994 = vmatpush1.msra.mxu0 %v3730
    %3995 = vmatprep.subr.mxu0 0.0
    %3996 = vmatpush1.msra.mxu0 %v3727
    %3997 = vmatprep.subr.mxu0 0.0
    %3998 = vmatpush1.msra.mxu0 %v3724
    %3999 = vmatprep.subr.mxu0 0.0
    %4000 = vmatpush1.msra.mxu0 %v3721
    %4001 = vmatprep.subr.mxu0 0.0
    %4002 = vmatpush1.msra.mxu0 %v3718
    %4003 = vmatprep.subr.mxu0 0.0
    %4004 = vmatpush1.msra.mxu0 %v3715
    %4005 = vmatprep.subr.mxu0 0.0
    %4006 = vmatpush1.msra.mxu0 %v3712
    %4007 = vmatprep.subr.mxu0 0.0
    %4008 = vmatpush1.msra.mxu0 %v3709
    %4009 = vmatprep.subr.mxu0 0.0
    %4010 = vmatpush1.msra.mxu0 %v3706
    %4011 = vmatprep.subr.mxu0 0.0
    %4012 = vmatpush1.msra.mxu0 %v3703
    %4013 = vmatprep.subr.mxu0 0.0
    %4014 = vmatpush1.msra.mxu0 %v3700
    %4015 = vmatprep.subr.mxu0 0.0
    %4016 = vmatpush1.msra.mxu0 %v3697
    %4017 = vmatprep.subr.mxu0 0.0
    %4018 = vmatpush1.msra.mxu0 %v3694
    %4019 = vmatprep.subr.mxu0 0.0
    %4020 = vmatpush2.msra.mxu0 %v3787
    %4021 = vmatprep.subr.mxu0 0.0
    %4022 = vmatpush2.msra.mxu0 %v3784
    %4023 = vmatprep.subr.mxu0 0.0
    %4024 = vmatpush2.msra.mxu0 %v3781
    %4025 = vmatprep.subr.mxu0 0.0
    %4026 = vmatpush2.msra.mxu0 %v3778
    %4027 = vmatprep.subr.mxu0 0.0
    %4028 = vmatpush2.msra.mxu0 %v3775
    %4029 = vmatprep.subr.mxu0 0.0
    %4030 = vmatpush2.msra.mxu0 %v3772
    %4031 = vmatprep.subr.mxu0 0.0
    %4032 = vmatpush2.msra.mxu0 %v3769
    %4033 = vmatprep.subr.mxu0 0.0
    %4034 = vmatpush2.msra.mxu0 %v3766
    %4035 = vmatprep.subr.mxu0 0.0
    %4036 = vmatpush2.msra.mxu0 %v3763
    %4037 = vmatprep.subr.mxu0 0.0
    %4038 = vmatpush2.msra.mxu0 %v3760
    %4039 = vmatprep.subr.mxu0 0.0
    %4040 = vmatpush2.msra.mxu0 %v3757
    %4041 = vmatprep.subr.mxu0 0.0
    %4042 = vmatpush2.msra.mxu0 %v3754
    %4043 = vmatprep.subr.mxu0 0.0
    %4044 = vmatpush2.msra.mxu0 %v3751
    %4045 = vmatprep.subr.mxu0 0.0
    %4046 = vmatpush2.msra.mxu0 %v3748
    %4047 = vmatprep.subr.mxu0 0.0
    %4048 = vmatpush2.msra.mxu0 %v3745
    %4049 = vmatprep.subr.mxu0 0.0
    %4050 = vmatpush2.msra.mxu0 %v3742
    %4051 = vmatprep.mubr.f32.mxu0 %v2957
    %4052 = vmatmul.mubr.f32.gmra.mxu0 %v2956
    %v4053 = vpop.f32.mrf.mxu0
    %v4054 = vadd.f32 %v3249, %v4053
    %v4055 = vpop.f32.mrf.mxu0
    %4056 = vdwg.mxu0
    %4057 = vmatprep.subr.mxu0 0.0
    %4058 = vmatpush1.msra.mxu0 %v3835
    %4059 = vmatprep.subr.mxu0 0.0
    %4060 = vmatpush1.msra.mxu0 %v3832
    %4061 = vmatprep.subr.mxu0 0.0
    %4062 = vmatpush1.msra.mxu0 %v3829
    %4063 = vmatprep.subr.mxu0 0.0
    %4064 = vmatpush1.msra.mxu0 %v3826
    %4065 = vmatprep.subr.mxu0 0.0
    %4066 = vmatpush1.msra.mxu0 %v3823
    %4067 = vmatprep.subr.mxu0 0.0
    %4068 = vmatpush1.msra.mxu0 %v3820
    %4069 = vmatprep.subr.mxu0 0.0
    %4070 = vmatpush1.msra.mxu0 %v3817
    %4071 = vmatprep.subr.mxu0 0.0
    %4072 = vmatpush1.msra.mxu0 %v3814
    %4073 = vmatprep.subr.mxu0 0.0
    %4074 = vmatpush1.msra.mxu0 %v3811
    %4075 = vmatprep.subr.mxu0 0.0
    %4076 = vmatpush1.msra.mxu0 %v3808
    %4077 = vmatprep.subr.mxu0 0.0
    %4078 = vmatpush1.msra.mxu0 %v3805
    %4079 = vmatprep.subr.mxu0 0.0
    %4080 = vmatpush1.msra.mxu0 %v3802
    %4081 = vmatprep.subr.mxu0 0.0
    %4082 = vmatpush1.msra.mxu0 %v3799
    %4083 = vmatprep.subr.mxu0 0.0
    %4084 = vmatpush1.msra.mxu0 %v3796
    %4085 = vmatprep.subr.mxu0 0.0
    %4086 = vmatpush1.msra.mxu0 %v3793
    %4087 = vmatprep.subr.mxu0 0.0
    %4088 = vmatpush1.msra.mxu0 %v3790
    %4089 = vmatprep.subr.mxu0 0.0
    %4090 = vmatpush2.msra.mxu0 0.0
    %4091 = vmatprep.subr.mxu0 0.0
    %4092 = vmatpush2.msra.mxu0 0.0
    %4093 = vmatprep.subr.mxu0 0.0
    %4094 = vmatpush2.msra.mxu0 0.0
    %4095 = vmatprep.subr.mxu0 0.0
    %4096 = vmatpush2.msra.mxu0 0.0
    %4097 = vmatprep.subr.mxu0 0.0
    %4098 = vmatpush2.msra.mxu0 0.0
    %4099 = vmatprep.subr.mxu0 0.0
    %4100 = vmatpush2.msra.mxu0 0.0
    %4101 = vmatprep.subr.mxu0 0.0
    %4102 = vmatpush2.msra.mxu0 0.0
    %4103 = vmatprep.subr.mxu0 0.0
    %4104 = vmatpush2.msra.mxu0 0.0
    %4105 = vmatprep.subr.mxu0 0.0
    %4106 = vmatpush2.msra.mxu0 0.0
    %4107 = vmatprep.subr.mxu0 0.0
    %4108 = vmatpush2.msra.mxu0 0.0
    %4109 = vmatprep.subr.mxu0 0.0
    %4110 = vmatpush2.msra.mxu0 0.0
    %4111 = vmatprep.subr.mxu0 0.0
    %4112 = vmatpush2.msra.mxu0 0.0
    %4113 = vmatprep.subr.mxu0 0.0
    %4114 = vmatpush2.msra.mxu0 0.0
    %4115 = vmatprep.subr.mxu0 0.0
    %4116 = vmatpush2.msra.mxu0 0.0
    %4117 = vmatprep.subr.mxu0 0.0
    %4118 = vmatpush2.msra.mxu0 %v3841
    %4119 = vmatprep.subr.mxu0 0.0
    %4120 = vmatpush2.msra.mxu0 %v3838
    %4121 = vmatprep.mubr.f32.mxu0 %v3843
    %4122 = vmatmul.mubr.f32.gmra.mxu0 %v2958
    %v4123 = vpop.f32.mrf.mxu0
    %v4124 = vadd.f32 %v4054, %v4123
    %v4125 = vpop.f32.mrf.mxu0
    %4126 = vdwg.mxu0
    %v4127 = vmul.f32 %v3983, 0.01
    %v4128 = vmul.f32 %v3985, 0.01
    %v4129 = vmul.f32 %v4124, 0.01
    %v4130 = vmax.f32 %v3983, %v4127
    %v4131 = vmax.f32 %v3985, %v4128
    %v4132 = vmax.f32 %v4124, %v4129
    %v4133 = vld [vmem:[#allocation23] sm:$0xff]
    %v4134 = vld [vmem:[#allocation23 + $0x8] sm:$0xff]
    %v4135 = vld [vmem:[#allocation23 + $0x10] sm:$0xff]
    %v4136 = vld [vmem:[#allocation23 + $0x18] sm:$0xff]
    %v4137 = vld [vmem:[#allocation23 + $0x20] sm:$0xff]
    %v4138 = vld [vmem:[#allocation23 + $0x28] sm:$0xff]
    %v4139 = vld [vmem:[#allocation23 + $0x30] sm:$0xff]
    %v4140 = vld [vmem:[#allocation23 + $0x38] sm:$0xff]
    %v4141 = vld [vmem:[#allocation23 + $0x40] sm:$0xff]
    %v4142 = vld [vmem:[#allocation23 + $0x48] sm:$0xff]
    %v4143 = vld [vmem:[#allocation23 + $0x50] sm:$0xff]
    %v4144 = vld [vmem:[#allocation23 + $0x58] sm:$0xff]
    %v4145 = vld [vmem:[#allocation23 + $0x60] sm:$0xff]
    %v4146 = vld [vmem:[#allocation23 + $0x68] sm:$0xff]
    %v4147 = vld [vmem:[#allocation23 + $0x70] sm:$0xff]
    %v4148 = vld [vmem:[#allocation23 + $0x78] sm:$0xff]
    %v4149 = vld [vmem:[#allocation23 + $0x80] sm:$0xff]
    %v4150 = vld [vmem:[#allocation23 + $0x88] sm:$0xff]
    %v4151 = vld [vmem:[#allocation23 + $0x90] sm:$0xff]
    %v4152 = vld [vmem:[#allocation23 + $0x98] sm:$0xff]
    %v4153 = vld [vmem:[#allocation23 + $0xa0] sm:$0xff]
    %v4154 = vld [vmem:[#allocation23 + $0xa8] sm:$0xff]
    %v4155 = vld [vmem:[#allocation23 + $0xb0] sm:$0xff]
    %v4156 = vld [vmem:[#allocation23 + $0xb8] sm:$0xff]
    %v4157 = vld [vmem:[#allocation23 + $0xc0] sm:$0xff]
    %v4158 = vld [vmem:[#allocation23 + $0xc8] sm:$0xff]
    %v4159 = vld [vmem:[#allocation23 + $0xd0] sm:$0xff]
    %v4160 = vld [vmem:[#allocation23 + $0xd8] sm:$0xff]
    %v4161 = vld [vmem:[#allocation23 + $0xe0] sm:$0xff]
    %v4162 = vld [vmem:[#allocation23 + $0xe8] sm:$0xff]
    %v4163 = vld [vmem:[#allocation23 + $0xf0] sm:$0xff]
    %v4164 = vld [vmem:[#allocation23 + $0xf8] sm:$0xff]
    %v4165 = vld [vmem:[#allocation23 + $0x100] sm:$0xff]
    %v4166 = vld [vmem:[#allocation23 + $0x108] sm:$0xff]
    %v4167 = vld [vmem:[#allocation23 + $0x110] sm:$0xff]
    %v4168 = vld [vmem:[#allocation23 + $0x118] sm:$0xff]
    %v4169 = vld [vmem:[#allocation23 + $0x120] sm:$0xff]
    %v4170 = vld [vmem:[#allocation23 + $0x128] sm:$0xf]
    %v4171 = vld [vmem:[#allocation2] sm:$0x1]
    %v4173 = vlaneseq
    %v4174 = vshrl.u32 %v4173, 7
    %v4175 = vsub.s32 0, %v4174
    %v4176 = vrot.slane %v4171, %v4175
    %vm4178 = vcmask 359424
    %v4180 = vsel %vm4178, %v3691, 0
    %v4183 = vsel %vm771, %v4170, 0
    %4185 = vmatprep.subr.mxu0 0.0
    %4186 = vmatpush1.msra.mxu0 %v4148
    %4187 = vmatprep.subr.mxu0 0.0
    %4188 = vmatpush1.msra.mxu0 %v4147
    %4189 = vmatprep.subr.mxu0 0.0
    %4190 = vmatpush1.msra.mxu0 %v4146
    %4191 = vmatprep.subr.mxu0 0.0
    %4192 = vmatpush1.msra.mxu0 %v4145
    %4193 = vmatprep.subr.mxu0 0.0
    %4194 = vmatpush1.msra.mxu0 %v4144
    %4195 = vmatprep.subr.mxu0 0.0
    %4196 = vmatpush1.msra.mxu0 %v4143
    %4197 = vmatprep.subr.mxu0 0.0
    %4198 = vmatpush1.msra.mxu0 %v4142
    %4199 = vmatprep.subr.mxu0 0.0
    %4200 = vmatpush1.msra.mxu0 %v4141
    %4201 = vmatprep.subr.mxu0 0.0
    %4202 = vmatpush1.msra.mxu0 %v4140
    %4203 = vmatprep.subr.mxu0 0.0
    %4204 = vmatpush1.msra.mxu0 %v4139
    %4205 = vmatprep.subr.mxu0 0.0
    %4206 = vmatpush1.msra.mxu0 %v4138
    %4207 = vmatprep.subr.mxu0 0.0
    %4208 = vmatpush1.msra.mxu0 %v4137
    %4209 = vmatprep.subr.mxu0 0.0
    %4210 = vmatpush1.msra.mxu0 %v4136
    %4211 = vmatprep.subr.mxu0 0.0
    %4212 = vmatpush1.msra.mxu0 %v4135
    %4213 = vmatprep.subr.mxu0 0.0
    %4214 = vmatpush1.msra.mxu0 %v4134
    %4215 = vmatprep.subr.mxu0 0.0
    %4216 = vmatpush1.msra.mxu0 %v4133
    %4217 = vmatprep.subr.mxu0 0.0
    %4218 = vmatpush2.msra.mxu0 %v4164
    %4219 = vmatprep.subr.mxu0 0.0
    %4220 = vmatpush2.msra.mxu0 %v4163
    %4221 = vmatprep.subr.mxu0 0.0
    %4222 = vmatpush2.msra.mxu0 %v4162
    %4223 = vmatprep.subr.mxu0 0.0
    %4224 = vmatpush2.msra.mxu0 %v4161
    %4225 = vmatprep.subr.mxu0 0.0
    %4226 = vmatpush2.msra.mxu0 %v4160
    %4227 = vmatprep.subr.mxu0 0.0
    %4228 = vmatpush2.msra.mxu0 %v4159
    %4229 = vmatprep.subr.mxu0 0.0
    %4230 = vmatpush2.msra.mxu0 %v4158
    %4231 = vmatprep.subr.mxu0 0.0
    %4232 = vmatpush2.msra.mxu0 %v4157
    %4233 = vmatprep.subr.mxu0 0.0
    %4234 = vmatpush2.msra.mxu0 %v4156
    %4235 = vmatprep.subr.mxu0 0.0
    %4236 = vmatpush2.msra.mxu0 %v4155
    %4237 = vmatprep.subr.mxu0 0.0
    %4238 = vmatpush2.msra.mxu0 %v4154
    %4239 = vmatprep.subr.mxu0 0.0
    %4240 = vmatpush2.msra.mxu0 %v4153
    %4241 = vmatprep.subr.mxu0 0.0
    %4242 = vmatpush2.msra.mxu0 %v4152
    %4243 = vmatprep.subr.mxu0 0.0
    %4244 = vmatpush2.msra.mxu0 %v4151
    %4245 = vmatprep.subr.mxu0 0.0
    %4246 = vmatpush2.msra.mxu0 %v4150
    %4247 = vmatprep.subr.mxu0 0.0
    %4248 = vmatpush2.msra.mxu0 %v4149
    %4249 = vmatprep.mubr.f32.mxu0 %v3690
    %4250 = vmatmul.mubr.f32.gmra.mxu0 %v3689
    %v4251 = vpop.f32.mrf.mxu0
    %v4252 = vadd.f32 %v4176, %v4251
    %v4253 = vpop.f32.mrf.mxu0
    %4254 = vdwg.mxu0
    %4255 = vmatprep.subr.mxu0 0.0
    %4256 = vmatpush1.msra.mxu0 0.0
    %4257 = vmatprep.subr.mxu0 0.0
    %4258 = vmatpush1.msra.mxu0 0.0
    %4259 = vmatprep.subr.mxu0 0.0
    %4260 = vmatpush1.msra.mxu0 0.0
    %4261 = vmatprep.subr.mxu0 0.0
    %4262 = vmatpush1.msra.mxu0 0.0
    %4263 = vmatprep.subr.mxu0 0.0
    %4264 = vmatpush1.msra.mxu0 0.0
    %4265 = vmatprep.subr.mxu0 0.0
    %4266 = vmatpush1.msra.mxu0 0.0
    %4267 = vmatprep.subr.mxu0 0.0
    %4268 = vmatpush1.msra.mxu0 0.0
    %4269 = vmatprep.subr.mxu0 0.0
    %4270 = vmatpush1.msra.mxu0 0.0
    %4271 = vmatprep.subr.mxu0 0.0
    %4272 = vmatpush1.msra.mxu0 0.0
    %4273 = vmatprep.subr.mxu0 0.0
    %4274 = vmatpush1.msra.mxu0 0.0
    %4275 = vmatprep.subr.mxu0 0.0
    %4276 = vmatpush1.msra.mxu0 %v4183
    %4277 = vmatprep.subr.mxu0 0.0
    %4278 = vmatpush1.msra.mxu0 %v4169
    %4279 = vmatprep.subr.mxu0 0.0
    %4280 = vmatpush1.msra.mxu0 %v4168
    %4281 = vmatprep.subr.mxu0 0.0
    %4282 = vmatpush1.msra.mxu0 %v4167
    %4283 = vmatprep.subr.mxu0 0.0
    %4284 = vmatpush1.msra.mxu0 %v4166
    %4285 = vmatprep.subr.mxu0 0.0
    %4286 = vmatpush1.msra.mxu0 %v4165
    %4287 = vmatprep.subr.mxu0 0.0
    %4288 = vmatpush2.msra.mxu0 0.0
    %4289 = vmatprep.subr.mxu0 0.0
    %4290 = vmatpush2.msra.mxu0 0.0
    %4291 = vmatprep.subr.mxu0 0.0
    %4292 = vmatpush2.msra.mxu0 0.0
    %4293 = vmatprep.subr.mxu0 0.0
    %4294 = vmatpush2.msra.mxu0 0.0
    %4295 = vmatprep.subr.mxu0 0.0
    %4296 = vmatpush2.msra.mxu0 0.0
    %4297 = vmatprep.subr.mxu0 0.0
    %4298 = vmatpush2.msra.mxu0 0.0
    %4299 = vmatprep.subr.mxu0 0.0
    %4300 = vmatpush2.msra.mxu0 0.0
    %4301 = vmatprep.subr.mxu0 0.0
    %4302 = vmatpush2.msra.mxu0 0.0
    %4303 = vmatprep.subr.mxu0 0.0
    %4304 = vmatpush2.msra.mxu0 0.0
    %4305 = vmatprep.subr.mxu0 0.0
    %4306 = vmatpush2.msra.mxu0 0.0
    %4307 = vmatprep.subr.mxu0 0.0
    %4308 = vmatpush2.msra.mxu0 0.0
    %4309 = vmatprep.subr.mxu0 0.0
    %4310 = vmatpush2.msra.mxu0 0.0
    %4311 = vmatprep.subr.mxu0 0.0
    %4312 = vmatpush2.msra.mxu0 0.0
    %4313 = vmatprep.subr.mxu0 0.0
    %4314 = vmatpush2.msra.mxu0 0.0
    %4315 = vmatprep.subr.mxu0 0.0
    %4316 = vmatpush2.msra.mxu0 0.0
    %4317 = vmatprep.subr.mxu0 0.0
    %4318 = vmatpush2.msra.mxu0 0.0
    %4319 = vmatprep.mubr.f32.mxu0 0.0
    %4320 = vmatmul.mubr.f32.gmra.mxu0 %v4180
    %v4321 = vpop.f32.mrf.mxu0
    %v4322 = vadd.f32 %v4252, %v4321
    %v4323 = vpop.f32.mrf.mxu0
    %4324 = vdwg.mxu0
    %vm4325 = vcmask 1024
    %4326 = vst.msk [vmem:[%s22] sm:$0x3] %vm4325, %v4322
    %v4327 = vld [vmem:[#allocation24] sm:$0xff]
    %v4328 = vld [vmem:[#allocation24 + $0x8] sm:$0xff]
    %v4329 = vld [vmem:[#allocation24 + $0x10] sm:$0xff]
    %v4330 = vld [vmem:[#allocation24 + $0x18] sm:$0xff]
    %v4331 = vld [vmem:[#allocation24 + $0x20] sm:$0xff]
    %v4332 = vld [vmem:[#allocation24 + $0x28] sm:$0xff]
    %v4333 = vld [vmem:[#allocation24 + $0x30] sm:$0xff]
    %v4334 = vld [vmem:[#allocation24 + $0x38] sm:$0xff]
    %v4335 = vld [vmem:[#allocation24 + $0x40] sm:$0xff]
    %v4336 = vld [vmem:[#allocation24 + $0x48] sm:$0xff]
    %v4337 = vld [vmem:[#allocation24 + $0x50] sm:$0xff]
    %v4338 = vld [vmem:[#allocation24 + $0x58] sm:$0xff]
    %v4339 = vld [vmem:[#allocation24 + $0x60] sm:$0xff]
    %v4340 = vld [vmem:[#allocation24 + $0x68] sm:$0xff]
    %v4341 = vld [vmem:[#allocation24 + $0x70] sm:$0xff]
    %v4342 = vld [vmem:[#allocation24 + $0x78] sm:$0xff]
    %v4343 = vld [vmem:[#allocation24 + $0x80] sm:$0xff]
    %v4344 = vld [vmem:[#allocation24 + $0x88] sm:$0xff]
    %v4345 = vld [vmem:[#allocation24 + $0x90] sm:$0xff]
    %v4346 = vld [vmem:[#allocation24 + $0x98] sm:$0xff]
    %v4347 = vld [vmem:[#allocation24 + $0xa0] sm:$0xff]
    %v4348 = vld [vmem:[#allocation24 + $0xa8] sm:$0xff]
    %v4349 = vld [vmem:[#allocation24 + $0xb0] sm:$0xff]
    %v4350 = vld [vmem:[#allocation24 + $0xb8] sm:$0xff]
    %v4351 = vld [vmem:[#allocation24 + $0xc0] sm:$0xff]
    %v4352 = vld [vmem:[#allocation24 + $0xc8] sm:$0xff]
    %v4353 = vld [vmem:[#allocation24 + $0xd0] sm:$0xff]
    %v4354 = vld [vmem:[#allocation24 + $0xd8] sm:$0xff]
    %v4355 = vld [vmem:[#allocation24 + $0xe0] sm:$0xff]
    %v4356 = vld [vmem:[#allocation24 + $0xe8] sm:$0xff]
    %v4357 = vld [vmem:[#allocation24 + $0xf0] sm:$0xff]
    %v4358 = vld [vmem:[#allocation24 + $0xf8] sm:$0xff]
    %v4359 = vld [vmem:[#allocation24 + $0x100] sm:$0xff]
    %v4360 = vld [vmem:[#allocation24 + $0x108] sm:$0xff]
    %v4361 = vld [vmem:[#allocation24 + $0x110] sm:$0xff]
    %v4362 = vld [vmem:[#allocation24 + $0x118] sm:$0xff]
    %v4363 = vld [vmem:[#allocation24 + $0x120] sm:$0xff]
    %v4364 = vld [vmem:[#allocation24 + $0x128] sm:$0xf]
    %v4365 = vld [vmem:[#allocation3] sm:$0x1]
    %v4367 = vlaneseq
    %v4368 = vshrl.u32 %v4367, 7
    %v4369 = vsub.s32 0, %v4368
    %v4370 = vrot.slane %v4365, %v4369
    %v4373 = vsel %vm4178, %v4132, 0
    %v4376 = vsel %vm771, %v4364, 0
    %4378 = vmatprep.subr.mxu0 0.0
    %4379 = vmatpush1.msra.mxu0 %v4342
    %4380 = vmatprep.subr.mxu0 0.0
    %4381 = vmatpush1.msra.mxu0 %v4341
    %4382 = vmatprep.subr.mxu0 0.0
    %4383 = vmatpush1.msra.mxu0 %v4340
    %4384 = vmatprep.subr.mxu0 0.0
    %4385 = vmatpush1.msra.mxu0 %v4339
    %4386 = vmatprep.subr.mxu0 0.0
    %4387 = vmatpush1.msra.mxu0 %v4338
    %4388 = vmatprep.subr.mxu0 0.0
    %4389 = vmatpush1.msra.mxu0 %v4337
    %4390 = vmatprep.subr.mxu0 0.0
    %4391 = vmatpush1.msra.mxu0 %v4336
    %4392 = vmatprep.subr.mxu0 0.0
    %4393 = vmatpush1.msra.mxu0 %v4335
    %4394 = vmatprep.subr.mxu0 0.0
    %4395 = vmatpush1.msra.mxu0 %v4334
    %4396 = vmatprep.subr.mxu0 0.0
    %4397 = vmatpush1.msra.mxu0 %v4333
    %4398 = vmatprep.subr.mxu0 0.0
    %4399 = vmatpush1.msra.mxu0 %v4332
    %4400 = vmatprep.subr.mxu0 0.0
    %4401 = vmatpush1.msra.mxu0 %v4331
    %4402 = vmatprep.subr.mxu0 0.0
    %4403 = vmatpush1.msra.mxu0 %v4330
    %4404 = vmatprep.subr.mxu0 0.0
    %4405 = vmatpush1.msra.mxu0 %v4329
    %4406 = vmatprep.subr.mxu0 0.0
    %4407 = vmatpush1.msra.mxu0 %v4328
    %4408 = vmatprep.subr.mxu0 0.0
    %4409 = vmatpush1.msra.mxu0 %v4327
    %4410 = vmatprep.subr.mxu0 0.0
    %4411 = vmatpush2.msra.mxu0 %v4358
    %4412 = vmatprep.subr.mxu0 0.0
    %4413 = vmatpush2.msra.mxu0 %v4357
    %4414 = vmatprep.subr.mxu0 0.0
    %4415 = vmatpush2.msra.mxu0 %v4356
    %4416 = vmatprep.subr.mxu0 0.0
    %4417 = vmatpush2.msra.mxu0 %v4355
    %4418 = vmatprep.subr.mxu0 0.0
    %4419 = vmatpush2.msra.mxu0 %v4354
    %4420 = vmatprep.subr.mxu0 0.0
    %4421 = vmatpush2.msra.mxu0 %v4353
    %4422 = vmatprep.subr.mxu0 0.0
    %4423 = vmatpush2.msra.mxu0 %v4352
    %4424 = vmatprep.subr.mxu0 0.0
    %4425 = vmatpush2.msra.mxu0 %v4351
    %4426 = vmatprep.subr.mxu0 0.0
    %4427 = vmatpush2.msra.mxu0 %v4350
    %4428 = vmatprep.subr.mxu0 0.0
    %4429 = vmatpush2.msra.mxu0 %v4349
    %4430 = vmatprep.subr.mxu0 0.0
    %4431 = vmatpush2.msra.mxu0 %v4348
    %4432 = vmatprep.subr.mxu0 0.0
    %4433 = vmatpush2.msra.mxu0 %v4347
    %4434 = vmatprep.subr.mxu0 0.0
    %4435 = vmatpush2.msra.mxu0 %v4346
    %4436 = vmatprep.subr.mxu0 0.0
    %4437 = vmatpush2.msra.mxu0 %v4345
    %4438 = vmatprep.subr.mxu0 0.0
    %4439 = vmatpush2.msra.mxu0 %v4344
    %4440 = vmatprep.subr.mxu0 0.0
    %4441 = vmatpush2.msra.mxu0 %v4343
    %4442 = vmatprep.mubr.f32.mxu0 %v4131
    %4443 = vmatmul.mubr.f32.gmra.mxu0 %v4130
    %v4444 = vpop.f32.mrf.mxu0
    %v4445 = vadd.f32 %v4370, %v4444
    %v4446 = vpop.f32.mrf.mxu0
    %4447 = vdwg.mxu0
    %4448 = vmatprep.subr.mxu0 0.0
    %4449 = vmatpush1.msra.mxu0 0.0
    %4450 = vmatprep.subr.mxu0 0.0
    %4451 = vmatpush1.msra.mxu0 0.0
    %4452 = vmatprep.subr.mxu0 0.0
    %4453 = vmatpush1.msra.mxu0 0.0
    %4454 = vmatprep.subr.mxu0 0.0
    %4455 = vmatpush1.msra.mxu0 0.0
    %4456 = vmatprep.subr.mxu0 0.0
    %4457 = vmatpush1.msra.mxu0 0.0
    %4458 = vmatprep.subr.mxu0 0.0
    %4459 = vmatpush1.msra.mxu0 0.0
    %4460 = vmatprep.subr.mxu0 0.0
    %4461 = vmatpush1.msra.mxu0 0.0
    %4462 = vmatprep.subr.mxu0 0.0
    %4463 = vmatpush1.msra.mxu0 0.0
    %4464 = vmatprep.subr.mxu0 0.0
    %4465 = vmatpush1.msra.mxu0 0.0
    %4466 = vmatprep.subr.mxu0 0.0
    %4467 = vmatpush1.msra.mxu0 0.0
    %4468 = vmatprep.subr.mxu0 0.0
    %4469 = vmatpush1.msra.mxu0 %v4376
    %4470 = vmatprep.subr.mxu0 0.0
    %4471 = vmatpush1.msra.mxu0 %v4363
    %4472 = vmatprep.subr.mxu0 0.0
    %4473 = vmatpush1.msra.mxu0 %v4362
    %4474 = vmatprep.subr.mxu0 0.0
    %4475 = vmatpush1.msra.mxu0 %v4361
    %4476 = vmatprep.subr.mxu0 0.0
    %4477 = vmatpush1.msra.mxu0 %v4360
    %4478 = vmatprep.subr.mxu0 0.0
    %4479 = vmatpush1.msra.mxu0 %v4359
    %4480 = vmatprep.subr.mxu0 0.0
    %4481 = vmatpush2.msra.mxu0 0.0
    %4482 = vmatprep.subr.mxu0 0.0
    %4483 = vmatpush2.msra.mxu0 0.0
    %4484 = vmatprep.subr.mxu0 0.0
    %4485 = vmatpush2.msra.mxu0 0.0
    %4486 = vmatprep.subr.mxu0 0.0
    %4487 = vmatpush2.msra.mxu0 0.0
    %4488 = vmatprep.subr.mxu0 0.0
    %4489 = vmatpush2.msra.mxu0 0.0
    %4490 = vmatprep.subr.mxu0 0.0
    %4491 = vmatpush2.msra.mxu0 0.0
    %4492 = vmatprep.subr.mxu0 0.0
    %4493 = vmatpush2.msra.mxu0 0.0
    %4494 = vmatprep.subr.mxu0 0.0
    %4495 = vmatpush2.msra.mxu0 0.0
    %4496 = vmatprep.subr.mxu0 0.0
    %4497 = vmatpush2.msra.mxu0 0.0
    %4498 = vmatprep.subr.mxu0 0.0
    %4499 = vmatpush2.msra.mxu0 0.0
    %4500 = vmatprep.subr.mxu0 0.0
    %4501 = vmatpush2.msra.mxu0 0.0
    %4502 = vmatprep.subr.mxu0 0.0
    %4503 = vmatpush2.msra.mxu0 0.0
    %4504 = vmatprep.subr.mxu0 0.0
    %4505 = vmatpush2.msra.mxu0 0.0
    %4506 = vmatprep.subr.mxu0 0.0
    %4507 = vmatpush2.msra.mxu0 0.0
    %4508 = vmatprep.subr.mxu0 0.0
    %4509 = vmatpush2.msra.mxu0 0.0
    %4510 = vmatprep.subr.mxu0 0.0
    %4511 = vmatpush2.msra.mxu0 0.0
    %4512 = vmatprep.mubr.f32.mxu0 0.0
    %4513 = vmatmul.mubr.f32.gmra.mxu0 %v4373
    %v4514 = vpop.f32.mrf.mxu0
    %v4515 = vadd.f32 %v4445, %v4514
    %v4516 = vpop.f32.mrf.mxu0
    %4517 = vdwg.mxu0
    %4518 = vst.msk [vmem:[%s23] sm:$0x3] %vm4325, %v4515
    // Predicated region
    $region146: #{_lambda_.1} parent=1 // pred_check
      _
    $region147: #{_lambda_.1} parent=1 // pred_check_branch
      %4520 = sbr.rel (0) target = $region149
    $region148: #{_lambda_.1} parent=1 // pred_region
      _
    $region149: #{_lambda_.1} parent=1 // pred_fallthru
      _
    // Predicated region
    $region150: #{_lambda_.1} parent=1 // pred_check
      _
    $region151: #{_lambda_.1} parent=1 // pred_check_branch
      %4522 = sbr.rel (0) target = $region153
    $region152: #{_lambda_.1} parent=1 // pred_region
      _
    $region153: #{_lambda_.1} parent=1 // pred_fallthru
      _
    // Predicated region
    $region154: #{_lambda_.1} parent=1 // pred_check
      _
    $region155: #{_lambda_.1} parent=1 // pred_check_branch
      %4524 = sbr.rel (0) target = $region157
    $region156: #{_lambda_.1} parent=1 // pred_region
      _
    $region157: #{_lambda_.1} parent=1 // pred_fallthru
      _
    // Predicated region
    $region158: #{_lambda_.1} parent=1 // pred_check
      _
    $region159: #{_lambda_.1} parent=1 // pred_check_branch
      %4526 = sbr.rel (0) target = $region161
    $region160: #{_lambda_.1} parent=1 // pred_region
      _
    $region161: #{_lambda_.1} parent=1 // pred_fallthru
      _
    %4527 = vsyncpa [#allocation5], 1
    %4528 = vsyncpa [#allocation7], 1
    %4529 = vsyncpa [#allocation10], 1
    %4530 = vsyncpa [#allocation13], 1
    %4531 = vsyncpa [#allocation16], 1
    %4532 = vsyncpa [#allocation19], 1
    %4533 = vsyncpa [#allocation22], 1
    %4534 = vsyncpa [#allocation25], 1

</llo_original>
